<compile_context>
chip_gen: v7x
topology: tpu7x:2x2x1
jax: 0.10.0
libtpu: 0.0.40
codegen_flags: <defaults>
</compile_context>

<pallas_src>
import numpy as np
import jax
import jax.numpy as jnp
from jax.experimental import pallas as pl
from jax.experimental.pallas import tpu as pltpu

INPUT_SIZE = 2
HIDDEN = 32
NUM_LAYERS = 4
OUTPUT_SIZE = 1


def lstm_kernel(x_ref, w_in_ref, w_ih_ref, w_hh_ref, b_ref, w_fc_ref,
                b_fc_ref, y_ref, seq_ref):
    """Whole sequence in one invocation; everything resident in VMEM.

    x_ref    : (T*B, in)   f32   time-major flattened input (row = t*B + b)
    w_in_ref : (in, 4H)    bf16  layer-0 W_ih^T
    w_ih_ref : (L-1, H, 4H) bf16 layers 1..L-1 W_ih^T
    w_hh_ref : (L, H, 4H)  bf16  all layers W_hh^T
    b_ref    : (L, 1, 4H)  f32   per-layer (b_ih + b_hh)
    w_fc_ref : (H, 1) bf16, b_fc_ref : (1, 1) f32
    y_ref    : (B, 1) f32
    seq_ref  : (T*B, H) f32 VMEM scratch  (per-layer output sequence)
    """
    TB = x_ref.shape[0]
    L, H, _ = w_hh_ref.shape
    B = y_ref.shape[0]
    T = TB // B
    f32, bf16 = jnp.float32, jnp.bfloat16

    # Hoisted activation constants: one tanh pass computes all four gates.
    #   i/f/o gates: sigmoid(x) = 0.5*tanh(0.5*x) + 0.5 ;  g gate: tanh(x).
    lane = jax.lax.broadcasted_iota(jnp.int32, (B, 4 * H), 1)
    is_g = jnp.logical_and(lane >= 2 * H, lane < 3 * H)
    pre_scale = jnp.where(is_g, 1.0, 0.5).astype(f32)   # arg scale before tanh
    post_off = jnp.where(is_g, 0.0, 0.5).astype(f32)    # affine after tanh

    def cell(gates, c_prev):
        t = jnp.tanh(gates * pre_scale)                  # 1 EUP pass, f32
        act = t * pre_scale + post_off                   # [i f g o] activations
        c_new = act[:, H:2 * H] * c_prev + act[:, :H] * act[:, 2 * H:3 * H]
        h_new = act[:, 3 * H:] * jnp.tanh(c_new)         # 2nd EUP pass
        return h_new, c_new

    # Hoist every weight / bias ref read out of the unrolled loops.
    w_x = [w_in_ref[...]] + [w_ih_ref[l] for l in range(L - 1)]   # bf16
    w_hh = [w_hh_ref[l] for l in range(L)]                        # bf16 (H,4H)
    bias = [b_ref[l] for l in range(L)]                           # f32 (1,4H)

    seq = x_ref[...].astype(bf16)                     # layer input, (T*B, K)
    h = None
    for l in range(L):
        # Hoisted input projection for ALL timesteps of this layer: one big
        # (T*B, K) @ (K, 4H) matmul off the serial chain, bias folded in.
        proj = jnp.dot(seq, w_x[l], preferred_element_type=f32) + bias[l]
        h = jnp.zeros((B, H), f32)
        c = jnp.zeros((B, H), f32)
        whl = w_hh[l]
        for t in range(T):                            # serial recurrence
            gates = proj[t * B:(t + 1) * B, :] + jnp.dot(
                h.astype(bf16), whl, preferred_element_type=f32)
            h, c = cell(gates, c)
            if l < L - 1:
                seq_ref[t * B:(t + 1) * B, :] = h     # off-chain writeback
        if l < L - 1:
            seq = seq_ref[...].astype(bf16)           # next layer's input

    # fc head on the last layer's output at the final timestep.
    y_ref[...] = jnp.dot(h.astype(bf16), w_fc_ref[...],
                         preferred_element_type=f32) + b_fc_ref[...]


def net_forward(x, params):
    """x: (B, T, input_size) float32 -> (B, 1) float32."""
    w_in, w_ih, w_hh, b, w_fc, b_fc = params
    B, T, in_size = x.shape
    # Time-major flatten (row index t*B + b).
    x_flat = jnp.transpose(x, (1, 0, 2)).reshape(T * B, in_size)
    vmem = lambda: pl.BlockSpec(memory_space=pltpu.MemorySpace.VMEM)
    return pl.pallas_call(
        lstm_kernel,
        out_shape=jax.ShapeDtypeStruct((B, OUTPUT_SIZE), jnp.float32),
        in_specs=[vmem() for _ in range(7)],
        out_specs=vmem(),
        scratch_shapes=[pltpu.VMEM((T * B, HIDDEN), jnp.float32)],
    )(x_flat, w_in, w_ih, w_hh, b, w_fc, b_fc)


def init_params(key, input_size=INPUT_SIZE, hidden=HIDDEN,
                num_layers=NUM_LAYERS, output_size=OUTPUT_SIZE):
    """Synthetic init mimicking PyTorch's U(-1/sqrt(H), 1/sqrt(H)), stored in
    the kernel layout (transposed weights in bf16, fused biases in f32)."""
    k = 1.0 / np.sqrt(hidden)
    keys = jax.random.split(key, 4 * num_layers + 2)
    w_ih_list, w_hh_list, b_list = [], [], []
    w_in = None
    for l in range(num_layers):
        in_dim = input_size if l == 0 else hidden
        wi = jax.random.uniform(keys[4 * l + 0], (4 * hidden, in_dim),
                                jnp.float32, -k, k)
        wh = jax.random.uniform(keys[4 * l + 1], (4 * hidden, hidden),
                                jnp.float32, -k, k)
        bi = jax.random.uniform(keys[4 * l + 2], (4 * hidden,), jnp.float32, -k, k)
        bh = jax.random.uniform(keys[4 * l + 3], (4 * hidden,), jnp.float32, -k, k)
        if l == 0:
            w_in = wi.T.astype(jnp.bfloat16)                    # (in, 4H)
        else:
            w_ih_list.append(wi.T.astype(jnp.bfloat16))         # (H, 4H)
        w_hh_list.append(wh.T.astype(jnp.bfloat16))             # (H, 4H)
        b_list.append((bi + bh)[None, :])                       # (1, 4H) f32
    w_ih = jnp.stack(w_ih_list)                                 # (L-1, H, 4H)
    w_hh = jnp.stack(w_hh_list)                                 # (L, H, 4H)
    b = jnp.stack(b_list)                                       # (L, 1, 4H)
    w_fc = jax.random.uniform(keys[-2], (output_size, hidden),
                              jnp.float32, -k, k).T.astype(jnp.bfloat16)  # (H,1)
    b_fc = jax.random.uniform(keys[-1], (1, output_size), jnp.float32, -k, k)
    return w_in, w_ih, w_hh, b, w_fc, b_fc


def ref_forward(x, params):
    """Pure-JAX reference of the same math (bf16 dot operands, f32 state)."""
    w_in, w_ih, w_hh, b, w_fc, b_fc = params
    B, T, _ = x.shape
    L, H, _ = w_hh.shape
    f32, bf16 = jnp.float32, jnp.bfloat16
    h = [jnp.zeros((B, H), f32) for _ in range(L)]
    c = [jnp.zeros((B, H), f32) for _ in range(L)]
    for t in range(T):
        inp = x[:, t]
        for l in range(L):
            w_x = w_in if l == 0 else w_ih[l - 1]
            gates = (jnp.dot(inp.astype(bf16), w_x, preferred_element_type=f32)
                     + jnp.dot(h[l].astype(bf16), w_hh[l],
                               preferred_element_type=f32)
                     + b[l])
            i_g = jax.nn.sigmoid(gates[:, :H])
            f_g = jax.nn.sigmoid(gates[:, H:2 * H])
            g_g = jnp.tanh(gates[:, 2 * H:3 * H])
            o_g = jax.nn.sigmoid(gates[:, 3 * H:])
            c[l] = f_g * c[l] + i_g * g_g
            h[l] = o_g * jnp.tanh(c[l])
            inp = h[l]
    return jnp.dot(inp.astype(bf16), w_fc, preferred_element_type=f32) + b_fc


if __name__ == "__main__":
    B, T = 2, 8
    key = jax.random.PRNGKey(0)
    k_x, k_p = jax.random.split(key)
    x = jax.random.normal(k_x, (B, T, INPUT_SIZE), jnp.float32)
    params = init_params(k_p)

    y = net_forward(x, params)
    y = jax.block_until_ready(y)

    y_ref = ref_forward(x, params)
    np.testing.assert_allclose(np.asarray(y), np.asarray(y_ref),
                               rtol=1e-3, atol=1e-3)
    assert y.shape == (B, OUTPUT_SIZE)
    print("KERNEL_OK")
</pallas_src>

<mosaic_0001>
module attributes {stable_mosaic.version = 11 : i64} {
  func.func @lstm_kernel(%arg0: memref<16x2xf32, #tpu.memory_space<vmem>>, %arg1: memref<2x128xbf16, #tpu.memory_space<vmem>>, %arg2: memref<3x32x128xbf16, #tpu.memory_space<vmem>>, %arg3: memref<4x32x128xbf16, #tpu.memory_space<vmem>>, %arg4: memref<4x1x128xf32, #tpu.memory_space<vmem>>, %arg5: memref<32x1xbf16, #tpu.memory_space<vmem>>, %arg6: memref<1x1xf32, #tpu.memory_space<vmem>>, %arg7: memref<2x1xf32, #tpu.memory_space<vmem>>, %arg8: memref<16x32xf32, #tpu.memory_space<vmem>>) attributes {dimension_semantics = [], scalar_prefetch = 0 : i64, scratch_operands = 1 : i64, tpu.core_type = #tpu.core_type<tc>} {
    %0 = tpu.iota {dimensions = array<i32: 1>} : vector<2x128xi32>
    %c64_i32 = arith.constant 64 : i32
    %1 = vector.broadcast %c64_i32 : i32 to vector<2x128xi32>
    %2 = arith.cmpi sge, %0, %1 : vector<2x128xi32>
    %c96_i32 = arith.constant 96 : i32
    %3 = vector.broadcast %c96_i32 : i32 to vector<2x128xi32>
    %4 = arith.cmpi slt, %0, %3 : vector<2x128xi32>
    %5 = arith.andi %2, %4 : vector<2x128xi1>
    %cst = arith.constant 1.000000e+00 : f32
    %cst_0 = arith.constant 5.000000e-01 : f32
    %6 = vector.broadcast %cst : f32 to vector<2x128xf32>
    %7 = vector.broadcast %cst_0 : f32 to vector<2x128xf32>
    %8 = arith.select %5, %6, %7 : vector<2x128xi1>, vector<2x128xf32>
    %cst_1 = arith.constant 0.000000e+00 : f32
    %cst_2 = arith.constant 5.000000e-01 : f32
    %9 = vector.broadcast %cst_1 : f32 to vector<2x128xf32>
    %10 = vector.broadcast %cst_2 : f32 to vector<2x128xf32>
    %11 = arith.select %5, %9, %10 : vector<2x128xi1>, vector<2x128xf32>
    %c0 = arith.constant 0 : index
    %c0_3 = arith.constant 0 : index
    %12 = vector.load %arg1[%c0, %c0_3] : memref<2x128xbf16, #tpu.memory_space<vmem>>, vector<2x128xbf16>
    %c0_4 = arith.constant 0 : index
    %c0_5 = arith.constant 0 : index
    %c0_6 = arith.constant 0 : index
    %13 = vector.load %arg2[%c0_4, %c0_5, %c0_6] : memref<3x32x128xbf16, #tpu.memory_space<vmem>>, vector<1x32x128xbf16>
    %14 = vector.shape_cast %13 : vector<1x32x128xbf16> to vector<32x128xbf16>
    %c1 = arith.constant 1 : index
    %c0_7 = arith.constant 0 : index
    %c0_8 = arith.constant 0 : index
    %15 = vector.load %arg2[%c1, %c0_7, %c0_8] : memref<3x32x128xbf16, #tpu.memory_space<vmem>>, vector<1x32x128xbf16>
    %16 = vector.shape_cast %15 : vector<1x32x128xbf16> to vector<32x128xbf16>
    %c2 = arith.constant 2 : index
    %c0_9 = arith.constant 0 : index
    %c0_10 = arith.constant 0 : index
    %17 = vector.load %arg2[%c2, %c0_9, %c0_10] : memref<3x32x128xbf16, #tpu.memory_space<vmem>>, vector<1x32x128xbf16>
    %18 = vector.shape_cast %17 : vector<1x32x128xbf16> to vector<32x128xbf16>
    %c0_11 = arith.constant 0 : index
    %c0_12 = arith.constant 0 : index
    %c0_13 = arith.constant 0 : index
    %19 = vector.load %arg3[%c0_11, %c0_12, %c0_13] : memref<4x32x128xbf16, #tpu.memory_space<vmem>>, vector<1x32x128xbf16>
    %20 = vector.shape_cast %19 : vector<1x32x128xbf16> to vector<32x128xbf16>
    %c1_14 = arith.constant 1 : index
    %c0_15 = arith.constant 0 : index
    %c0_16 = arith.constant 0 : index
    %21 = vector.load %arg3[%c1_14, %c0_15, %c0_16] : memref<4x32x128xbf16, #tpu.memory_space<vmem>>, vector<1x32x128xbf16>
    %22 = vector.shape_cast %21 : vector<1x32x128xbf16> to vector<32x128xbf16>
    %c2_17 = arith.constant 2 : index
    %c0_18 = arith.constant 0 : index
    %c0_19 = arith.constant 0 : index
    %23 = vector.load %arg3[%c2_17, %c0_18, %c0_19] : memref<4x32x128xbf16, #tpu.memory_space<vmem>>, vector<1x32x128xbf16>
    %24 = vector.shape_cast %23 : vector<1x32x128xbf16> to vector<32x128xbf16>
    %c3 = arith.constant 3 : index
    %c0_20 = arith.constant 0 : index
    %c0_21 = arith.constant 0 : index
    %25 = vector.load %arg3[%c3, %c0_20, %c0_21] : memref<4x32x128xbf16, #tpu.memory_space<vmem>>, vector<1x32x128xbf16>
    %26 = vector.shape_cast %25 : vector<1x32x128xbf16> to vector<32x128xbf16>
    %c0_22 = arith.constant 0 : index
    %c0_23 = arith.constant 0 : index
    %c0_24 = arith.constant 0 : index
    %27 = vector.load %arg4[%c0_22, %c0_23, %c0_24] : memref<4x1x128xf32, #tpu.memory_space<vmem>>, vector<1x1x128xf32>
    %28 = vector.shape_cast %27 : vector<1x1x128xf32> to vector<1x128xf32>
    %c1_25 = arith.constant 1 : index
    %c0_26 = arith.constant 0 : index
    %c0_27 = arith.constant 0 : index
    %29 = vector.load %arg4[%c1_25, %c0_26, %c0_27] : memref<4x1x128xf32, #tpu.memory_space<vmem>>, vector<1x1x128xf32>
    %30 = vector.shape_cast %29 : vector<1x1x128xf32> to vector<1x128xf32>
    %c2_28 = arith.constant 2 : index
    %c0_29 = arith.constant 0 : index
    %c0_30 = arith.constant 0 : index
    %31 = vector.load %arg4[%c2_28, %c0_29, %c0_30] : memref<4x1x128xf32, #tpu.memory_space<vmem>>, vector<1x1x128xf32>
    %32 = vector.shape_cast %31 : vector<1x1x128xf32> to vector<1x128xf32>
    %c3_31 = arith.constant 3 : index
    %c0_32 = arith.constant 0 : index
    %c0_33 = arith.constant 0 : index
    %33 = vector.load %arg4[%c3_31, %c0_32, %c0_33] : memref<4x1x128xf32, #tpu.memory_space<vmem>>, vector<1x1x128xf32>
    %34 = vector.shape_cast %33 : vector<1x1x128xf32> to vector<1x128xf32>
    %c0_34 = arith.constant 0 : index
    %c0_35 = arith.constant 0 : index
    %35 = vector.load %arg0[%c0_34, %c0_35] : memref<16x2xf32, #tpu.memory_space<vmem>>, vector<16x2xf32>
    %36 = arith.truncf %35 : vector<16x2xf32> to vector<16x2xbf16>
    %cst_36 = arith.constant dense<0.000000e+00> : vector<16x128xf32>
    %37 = tpu.matmul %36, %12, %cst_36 {dimension_numbers = #tpu.dot_dimension_numbers<[1], [0], [0], [1], [0, 0, 1, 1], [], []>} : vector<16x2xbf16>, vector<2x128xbf16>, vector<16x128xf32> -> vector<16x128xf32>
    %38 = vector.broadcast %28 : vector<1x128xf32> to vector<16x128xf32>
    %39 = arith.addf %37, %38 : vector<16x128xf32>
    %cst_37 = arith.constant 0.000000e+00 : f32
    %40 = vector.broadcast %cst_37 : f32 to vector<2x32xf32>
    %cst_38 = arith.constant 0.000000e+00 : f32
    %41 = vector.broadcast %cst_38 : f32 to vector<2x32xf32>
    %42 = vector.extract_strided_slice %39 {offsets = [0, 0], sizes = [2, 128], strides = [1, 1]} : vector<16x128xf32> to vector<2x128xf32>
    %43 = arith.truncf %40 : vector<2x32xf32> to vector<2x32xbf16>
    %cst_39 = arith.constant dense<0.000000e+00> : vector<2x128xf32>
    %44 = tpu.matmul %43, %20, %cst_39 {dimension_numbers = #tpu.dot_dimension_numbers<[1], [0], [0], [1], [0, 0, 1, 1], [], []>} : vector<2x32xbf16>, vector<32x128xbf16>, vector<2x128xf32> -> vector<2x128xf32>
    %45 = arith.addf %42, %44 : vector<2x128xf32>
    %46 = arith.mulf %45, %8 : vector<2x128xf32>
    %47 = math.tanh %46 : vector<2x128xf32>
    %48 = arith.mulf %47, %8 : vector<2x128xf32>
    %49 = arith.addf %48, %11 : vector<2x128xf32>
    %50 = vector.extract_strided_slice %49 {offsets = [0, 32], sizes = [2, 32], strides = [1, 1]} : vector<2x128xf32> to vector<2x32xf32>
    %51 = arith.mulf %50, %41 : vector<2x32xf32>
    %52 = vector.extract_strided_slice %49 {offsets = [0, 0], sizes = [2, 32], strides = [1, 1]} : vector<2x128xf32> to vector<2x32xf32>
    %53 = vector.extract_strided_slice %49 {offsets = [0, 64], sizes = [2, 32], strides = [1, 1]} : vector<2x128xf32> to vector<2x32xf32>
    %54 = arith.mulf %52, %53 : vector<2x32xf32>
    %55 = arith.addf %51, %54 : vector<2x32xf32>
    %56 = vector.extract_strided_slice %49 {offsets = [0, 96], sizes = [2, 32], strides = [1, 1]} : vector<2x128xf32> to vector<2x32xf32>
    %57 = math.tanh %55 : vector<2x32xf32>
    %58 = arith.mulf %56, %57 : vector<2x32xf32>
    %c0_40 = arith.constant 0 : index
    %c0_41 = arith.constant 0 : index
    %59 = vector.load %arg8[%c0_40, %c0_41] : memref<16x32xf32, #tpu.memory_space<vmem>>, vector<2x32xf32>
    tpu.vector_store %arg8[%c0_40, %c0_41], %58 {strides = array<i32>} : memref<16x32xf32, #tpu.memory_space<vmem>>, vector<2x32xf32>,
    %60 = vector.extract_strided_slice %39 {offsets = [2, 0], sizes = [2, 128], strides = [1, 1]} : vector<16x128xf32> to vector<2x128xf32>
    %61 = arith.truncf %58 : vector<2x32xf32> to vector<2x32xbf16>
    %cst_42 = arith.constant dense<0.000000e+00> : vector<2x128xf32>
    %62 = tpu.matmul %61, %20, %cst_42 {dimension_numbers = #tpu.dot_dimension_numbers<[1], [0], [0], [1], [0, 0, 1, 1], [], []>} : vector<2x32xbf16>, vector<32x128xbf16>, vector<2x128xf32> -> vector<2x128xf32>
    %63 = arith.addf %60, %62 : vector<2x128xf32>
    %64 = arith.mulf %63, %8 : vector<2x128xf32>
    %65 = math.tanh %64 : vector<2x128xf32>
    %66 = arith.mulf %65, %8 : vector<2x128xf32>
    %67 = arith.addf %66, %11 : vector<2x128xf32>
    %68 = vector.extract_strided_slice %67 {offsets = [0, 32], sizes = [2, 32], strides = [1, 1]} : vector<2x128xf32> to vector<2x32xf32>
    %69 = arith.mulf %68, %55 : vector<2x32xf32>
    %70 = vector.extract_strided_slice %67 {offsets = [0, 0], sizes = [2, 32], strides = [1, 1]} : vector<2x128xf32> to vector<2x32xf32>
    %71 = vector.extract_strided_slice %67 {offsets = [0, 64], sizes = [2, 32], strides = [1, 1]} : vector<2x128xf32> to vector<2x32xf32>
    %72 = arith.mulf %70, %71 : vector<2x32xf32>
    %73 = arith.addf %69, %72 : vector<2x32xf32>
    %74 = vector.extract_strided_slice %67 {offsets = [0, 96], sizes = [2, 32], strides = [1, 1]} : vector<2x128xf32> to vector<2x32xf32>
    %75 = math.tanh %73 : vector<2x32xf32>
    %76 = arith.mulf %74, %75 : vector<2x32xf32>
    %c2_43 = arith.constant 2 : index
    %c0_44 = arith.constant 0 : index
    %77 = vector.load %arg8[%c2_43, %c0_44] : memref<16x32xf32, #tpu.memory_space<vmem>>, vector<2x32xf32>
    tpu.vector_store %arg8[%c2_43, %c0_44], %76 {strides = array<i32>} : memref<16x32xf32, #tpu.memory_space<vmem>>, vector<2x32xf32>,
    %78 = vector.extract_strided_slice %39 {offsets = [4, 0], sizes = [2, 128], strides = [1, 1]} : vector<16x128xf32> to vector<2x128xf32>
    %79 = arith.truncf %76 : vector<2x32xf32> to vector<2x32xbf16>
    %cst_45 = arith.constant dense<0.000000e+00> : vector<2x128xf32>
    %80 = tpu.matmul %79, %20, %cst_45 {dimension_numbers = #tpu.dot_dimension_numbers<[1], [0], [0], [1], [0, 0, 1, 1], [], []>} : vector<2x32xbf16>, vector<32x128xbf16>, vector<2x128xf32> -> vector<2x128xf32>
    %81 = arith.addf %78, %80 : vector<2x128xf32>
    %82 = arith.mulf %81, %8 : vector<2x128xf32>
    %83 = math.tanh %82 : vector<2x128xf32>
    %84 = arith.mulf %83, %8 : vector<2x128xf32>
    %85 = arith.addf %84, %11 : vector<2x128xf32>
    %86 = vector.extract_strided_slice %85 {offsets = [0, 32], sizes = [2, 32], strides = [1, 1]} : vector<2x128xf32> to vector<2x32xf32>
    %87 = arith.mulf %86, %73 : vector<2x32xf32>
    %88 = vector.extract_strided_slice %85 {offsets = [0, 0], sizes = [2, 32], strides = [1, 1]} : vector<2x128xf32> to vector<2x32xf32>
    %89 = vector.extract_strided_slice %85 {offsets = [0, 64], sizes = [2, 32], strides = [1, 1]} : vector<2x128xf32> to vector<2x32xf32>
    %90 = arith.mulf %88, %89 : vector<2x32xf32>
    %91 = arith.addf %87, %90 : vector<2x32xf32>
    %92 = vector.extract_strided_slice %85 {offsets = [0, 96], sizes = [2, 32], strides = [1, 1]} : vector<2x128xf32> to vector<2x32xf32>
    %93 = math.tanh %91 : vector<2x32xf32>
    %94 = arith.mulf %92, %93 : vector<2x32xf32>
    %c4 = arith.constant 4 : index
    %c0_46 = arith.constant 0 : index
    %95 = vector.load %arg8[%c4, %c0_46] : memref<16x32xf32, #tpu.memory_space<vmem>>, vector<2x32xf32>
    tpu.vector_store %arg8[%c4, %c0_46], %94 {strides = array<i32>} : memref<16x32xf32, #tpu.memory_space<vmem>>, vector<2x32xf32>,
    %96 = vector.extract_strided_slice %39 {offsets = [6, 0], sizes = [2, 128], strides = [1, 1]} : vector<16x128xf32> to vector<2x128xf32>
    %97 = arith.truncf %94 : vector<2x32xf32> to vector<2x32xbf16>
    %cst_47 = arith.constant dense<0.000000e+00> : vector<2x128xf32>
    %98 = tpu.matmul %97, %20, %cst_47 {dimension_numbers = #tpu.dot_dimension_numbers<[1], [0], [0], [1], [0, 0, 1, 1], [], []>} : vector<2x32xbf16>, vector<32x128xbf16>, vector<2x128xf32> -> vector<2x128xf32>
    %99 = arith.addf %96, %98 : vector<2x128xf32>
    %100 = arith.mulf %99, %8 : vector<2x128xf32>
    %101 = math.tanh %100 : vector<2x128xf32>
    %102 = arith.mulf %101, %8 : vector<2x128xf32>
    %103 = arith.addf %102, %11 : vector<2x128xf32>
    %104 = vector.extract_strided_slice %103 {offsets = [0, 32], sizes = [2, 32], strides = [1, 1]} : vector<2x128xf32> to vector<2x32xf32>
    %105 = arith.mulf %104, %91 : vector<2x32xf32>
    %106 = vector.extract_strided_slice %103 {offsets = [0, 0], sizes = [2, 32], strides = [1, 1]} : vector<2x128xf32> to vector<2x32xf32>
    %107 = vector.extract_strided_slice %103 {offsets = [0, 64], sizes = [2, 32], strides = [1, 1]} : vector<2x128xf32> to vector<2x32xf32>
    %108 = arith.mulf %106, %107 : vector<2x32xf32>
    %109 = arith.addf %105, %108 : vector<2x32xf32>
    %110 = vector.extract_strided_slice %103 {offsets = [0, 96], sizes = [2, 32], strides = [1, 1]} : vector<2x128xf32> to vector<2x32xf32>
    %111 = math.tanh %109 : vector<2x32xf32>
    %112 = arith.mulf %110, %111 : vector<2x32xf32>
    %c6 = arith.constant 6 : index
    %c0_48 = arith.constant 0 : index
    %113 = vector.load %arg8[%c6, %c0_48] : memref<16x32xf32, #tpu.memory_space<vmem>>, vector<2x32xf32>
    tpu.vector_store %arg8[%c6, %c0_48], %112 {strides = array<i32>} : memref<16x32xf32, #tpu.memory_space<vmem>>, vector<2x32xf32>,
    %114 = vector.extract_strided_slice %39 {offsets = [8, 0], sizes = [2, 128], strides = [1, 1]} : vector<16x128xf32> to vector<2x128xf32>
    %115 = arith.truncf %112 : vector<2x32xf32> to vector<2x32xbf16>
    %cst_49 = arith.constant dense<0.000000e+00> : vector<2x128xf32>
    %116 = tpu.matmul %115, %20, %cst_49 {dimension_numbers = #tpu.dot_dimension_numbers<[1], [0], [0], [1], [0, 0, 1, 1], [], []>} : vector<2x32xbf16>, vector<32x128xbf16>, vector<2x128xf32> -> vector<2x128xf32>
    %117 = arith.addf %114, %116 : vector<2x128xf32>
    %118 = arith.mulf %117, %8 : vector<2x128xf32>
    %119 = math.tanh %118 : vector<2x128xf32>
    %120 = arith.mulf %119, %8 : vector<2x128xf32>
    %121 = arith.addf %120, %11 : vector<2x128xf32>
    %122 = vector.extract_strided_slice %121 {offsets = [0, 32], sizes = [2, 32], strides = [1, 1]} : vector<2x128xf32> to vector<2x32xf32>
    %123 = arith.mulf %122, %109 : vector<2x32xf32>
    %124 = vector.extract_strided_slice %121 {offsets = [0, 0], sizes = [2, 32], strides = [1, 1]} : vector<2x128xf32> to vector<2x32xf32>
    %125 = vector.extract_strided_slice %121 {offsets = [0, 64], sizes = [2, 32], strides = [1, 1]} : vector<2x128xf32> to vector<2x32xf32>
    %126 = arith.mulf %124, %125 : vector<2x32xf32>
    %127 = arith.addf %123, %126 : vector<2x32xf32>
    %128 = vector.extract_strided_slice %121 {offsets = [0, 96], sizes = [2, 32], strides = [1, 1]} : vector<2x128xf32> to vector<2x32xf32>
    %129 = math.tanh %127 : vector<2x32xf32>
    %130 = arith.mulf %128, %129 : vector<2x32xf32>
    %c8 = arith.constant 8 : index
    %c0_50 = arith.constant 0 : index
    %131 = vector.load %arg8[%c8, %c0_50] : memref<16x32xf32, #tpu.memory_space<vmem>>, vector<2x32xf32>
    tpu.vector_store %arg8[%c8, %c0_50], %130 {strides = array<i32>} : memref<16x32xf32, #tpu.memory_space<vmem>>, vector<2x32xf32>,
    %132 = vector.extract_strided_slice %39 {offsets = [10, 0], sizes = [2, 128], strides = [1, 1]} : vector<16x128xf32> to vector<2x128xf32>
    %133 = arith.truncf %130 : vector<2x32xf32> to vector<2x32xbf16>
    %cst_51 = arith.constant dense<0.000000e+00> : vector<2x128xf32>
    %134 = tpu.matmul %133, %20, %cst_51 {dimension_numbers = #tpu.dot_dimension_numbers<[1], [0], [0], [1], [0, 0, 1, 1], [], []>} : vector<2x32xbf16>, vector<32x128xbf16>, vector<2x128xf32> -> vector<2x128xf32>
    %135 = arith.addf %132, %134 : vector<2x128xf32>
    %136 = arith.mulf %135, %8 : vector<2x128xf32>
    %137 = math.tanh %136 : vector<2x128xf32>
    %138 = arith.mulf %137, %8 : vector<2x128xf32>
    %139 = arith.addf %138, %11 : vector<2x128xf32>
    %140 = vector.extract_strided_slice %139 {offsets = [0, 32], sizes = [2, 32], strides = [1, 1]} : vector<2x128xf32> to vector<2x32xf32>
    %141 = arith.mulf %140, %127 : vector<2x32xf32>
    %142 = vector.extract_strided_slice %139 {offsets = [0, 0], sizes = [2, 32], strides = [1, 1]} : vector<2x128xf32> to vector<2x32xf32>
    %143 = vector.extract_strided_slice %139 {offsets = [0, 64], sizes = [2, 32], strides = [1, 1]} : vector<2x128xf32> to vector<2x32xf32>
    %144 = arith.mulf %142, %143 : vector<2x32xf32>
    %145 = arith.addf %141, %144 : vector<2x32xf32>
    %146 = vector.extract_strided_slice %139 {offsets = [0, 96], sizes = [2, 32], strides = [1, 1]} : vector<2x128xf32> to vector<2x32xf32>
    %147 = math.tanh %145 : vector<2x32xf32>
    %148 = arith.mulf %146, %147 : vector<2x32xf32>
    %c10 = arith.constant 10 : index
    %c0_52 = arith.constant 0 : index
    %149 = vector.load %arg8[%c10, %c0_52] : memref<16x32xf32, #tpu.memory_space<vmem>>, vector<2x32xf32>
    tpu.vector_store %arg8[%c10, %c0_52], %148 {strides = array<i32>} : memref<16x32xf32, #tpu.memory_space<vmem>>, vector<2x32xf32>,
    %150 = vector.extract_strided_slice %39 {offsets = [12, 0], sizes = [2, 128], strides = [1, 1]} : vector<16x128xf32> to vector<2x128xf32>
    %151 = arith.truncf %148 : vector<2x32xf32> to vector<2x32xbf16>
    %cst_53 = arith.constant dense<0.000000e+00> : vector<2x128xf32>
    %152 = tpu.matmul %151, %20, %cst_53 {dimension_numbers = #tpu.dot_dimension_numbers<[1], [0], [0], [1], [0, 0, 1, 1], [], []>} : vector<2x32xbf16>, vector<32x128xbf16>, vector<2x128xf32> -> vector<2x128xf32>
    %153 = arith.addf %150, %152 : vector<2x128xf32>
    %154 = arith.mulf %153, %8 : vector<2x128xf32>
    %155 = math.tanh %154 : vector<2x128xf32>
    %156 = arith.mulf %155, %8 : vector<2x128xf32>
    %157 = arith.addf %156, %11 : vector<2x128xf32>
    %158 = vector.extract_strided_slice %157 {offsets = [0, 32], sizes = [2, 32], strides = [1, 1]} : vector<2x128xf32> to vector<2x32xf32>
    %159 = arith.mulf %158, %145 : vector<2x32xf32>
    %160 = vector.extract_strided_slice %157 {offsets = [0, 0], sizes = [2, 32], strides = [1, 1]} : vector<2x128xf32> to vector<2x32xf32>
    %161 = vector.extract_strided_slice %157 {offsets = [0, 64], sizes = [2, 32], strides = [1, 1]} : vector<2x128xf32> to vector<2x32xf32>
    %162 = arith.mulf %160, %161 : vector<2x32xf32>
    %163 = arith.addf %159, %162 : vector<2x32xf32>
    %164 = vector.extract_strided_slice %157 {offsets = [0, 96], sizes = [2, 32], strides = [1, 1]} : vector<2x128xf32> to vector<2x32xf32>
    %165 = math.tanh %163 : vector<2x32xf32>
    %166 = arith.mulf %164, %165 : vector<2x32xf32>
    %c12 = arith.constant 12 : index
    %c0_54 = arith.constant 0 : index
    %167 = vector.load %arg8[%c12, %c0_54] : memref<16x32xf32, #tpu.memory_space<vmem>>, vector<2x32xf32>
    tpu.vector_store %arg8[%c12, %c0_54], %166 {strides = array<i32>} : memref<16x32xf32, #tpu.memory_space<vmem>>, vector<2x32xf32>,
    %168 = vector.extract_strided_slice %39 {offsets = [14, 0], sizes = [2, 128], strides = [1, 1]} : vector<16x128xf32> to vector<2x128xf32>
    %169 = arith.truncf %166 : vector<2x32xf32> to vector<2x32xbf16>
    %cst_55 = arith.constant dense<0.000000e+00> : vector<2x128xf32>
    %170 = tpu.matmul %169, %20, %cst_55 {dimension_numbers = #tpu.dot_dimension_numbers<[1], [0], [0], [1], [0, 0, 1, 1], [], []>} : vector<2x32xbf16>, vector<32x128xbf16>, vector<2x128xf32> -> vector<2x128xf32>
    %171 = arith.addf %168, %170 : vector<2x128xf32>
    %172 = arith.mulf %171, %8 : vector<2x128xf32>
    %173 = math.tanh %172 : vector<2x128xf32>
    %174 = arith.mulf %173, %8 : vector<2x128xf32>
    %175 = arith.addf %174, %11 : vector<2x128xf32>
    %176 = vector.extract_strided_slice %175 {offsets = [0, 32], sizes = [2, 32], strides = [1, 1]} : vector<2x128xf32> to vector<2x32xf32>
    %177 = arith.mulf %176, %163 : vector<2x32xf32>
    %178 = vector.extract_strided_slice %175 {offsets = [0, 0], sizes = [2, 32], strides = [1, 1]} : vector<2x128xf32> to vector<2x32xf32>
    %179 = vector.extract_strided_slice %175 {offsets = [0, 64], sizes = [2, 32], strides = [1, 1]} : vector<2x128xf32> to vector<2x32xf32>
    %180 = arith.mulf %178, %179 : vector<2x32xf32>
    %181 = arith.addf %177, %180 : vector<2x32xf32>
    %182 = vector.extract_strided_slice %175 {offsets = [0, 96], sizes = [2, 32], strides = [1, 1]} : vector<2x128xf32> to vector<2x32xf32>
    %183 = math.tanh %181 : vector<2x32xf32>
    %184 = arith.mulf %182, %183 : vector<2x32xf32>
    %c14 = arith.constant 14 : index
    %c0_56 = arith.constant 0 : index
    %185 = vector.load %arg8[%c14, %c0_56] : memref<16x32xf32, #tpu.memory_space<vmem>>, vector<2x32xf32>
    tpu.vector_store %arg8[%c14, %c0_56], %184 {strides = array<i32>} : memref<16x32xf32, #tpu.memory_space<vmem>>, vector<2x32xf32>,
    %c0_57 = arith.constant 0 : index
    %c0_58 = arith.constant 0 : index
    %186 = vector.load %arg8[%c0_57, %c0_58] : memref<16x32xf32, #tpu.memory_space<vmem>>, vector<16x32xf32>
    %187 = arith.truncf %186 : vector<16x32xf32> to vector<16x32xbf16>
    %cst_59 = arith.constant dense<0.000000e+00> : vector<16x128xf32>
    %188 = tpu.matmul %187, %14, %cst_59 {dimension_numbers = #tpu.dot_dimension_numbers<[1], [0], [0], [1], [0, 0, 1, 1], [], []>} : vector<16x32xbf16>, vector<32x128xbf16>, vector<16x128xf32> -> vector<16x128xf32>
    %189 = vector.broadcast %30 : vector<1x128xf32> to vector<16x128xf32>
    %190 = arith.addf %188, %189 : vector<16x128xf32>
    %cst_60 = arith.constant 0.000000e+00 : f32
    %191 = vector.broadcast %cst_60 : f32 to vector<2x32xf32>
    %cst_61 = arith.constant 0.000000e+00 : f32
    %192 = vector.broadcast %cst_61 : f32 to vector<2x32xf32>
    %193 = vector.extract_strided_slice %190 {offsets = [0, 0], sizes = [2, 128], strides = [1, 1]} : vector<16x128xf32> to vector<2x128xf32>
    %194 = arith.truncf %191 : vector<2x32xf32> to vector<2x32xbf16>
    %cst_62 = arith.constant dense<0.000000e+00> : vector<2x128xf32>
    %195 = tpu.matmul %194, %22, %cst_62 {dimension_numbers = #tpu.dot_dimension_numbers<[1], [0], [0], [1], [0, 0, 1, 1], [], []>} : vector<2x32xbf16>, vector<32x128xbf16>, vector<2x128xf32> -> vector<2x128xf32>
    %196 = arith.addf %193, %195 : vector<2x128xf32>
    %197 = arith.mulf %196, %8 : vector<2x128xf32>
    %198 = math.tanh %197 : vector<2x128xf32>
    %199 = arith.mulf %198, %8 : vector<2x128xf32>
    %200 = arith.addf %199, %11 : vector<2x128xf32>
    %201 = vector.extract_strided_slice %200 {offsets = [0, 32], sizes = [2, 32], strides = [1, 1]} : vector<2x128xf32> to vector<2x32xf32>
    %202 = arith.mulf %201, %192 : vector<2x32xf32>
    %203 = vector.extract_strided_slice %200 {offsets = [0, 0], sizes = [2, 32], strides = [1, 1]} : vector<2x128xf32> to vector<2x32xf32>
    %204 = vector.extract_strided_slice %200 {offsets = [0, 64], sizes = [2, 32], strides = [1, 1]} : vector<2x128xf32> to vector<2x32xf32>
    %205 = arith.mulf %203, %204 : vector<2x32xf32>
    %206 = arith.addf %202, %205 : vector<2x32xf32>
    %207 = vector.extract_strided_slice %200 {offsets = [0, 96], sizes = [2, 32], strides = [1, 1]} : vector<2x128xf32> to vector<2x32xf32>
    %208 = math.tanh %206 : vector<2x32xf32>
    %209 = arith.mulf %207, %208 : vector<2x32xf32>
    %c0_63 = arith.constant 0 : index
    %c0_64 = arith.constant 0 : index
    %210 = vector.load %arg8[%c0_63, %c0_64] : memref<16x32xf32, #tpu.memory_space<vmem>>, vector<2x32xf32>
    tpu.vector_store %arg8[%c0_63, %c0_64], %209 {strides = array<i32>} : memref<16x32xf32, #tpu.memory_space<vmem>>, vector<2x32xf32>,
    %211 = vector.extract_strided_slice %190 {offsets = [2, 0], sizes = [2, 128], strides = [1, 1]} : vector<16x128xf32> to vector<2x128xf32>
    %212 = arith.truncf %209 : vector<2x32xf32> to vector<2x32xbf16>
    %cst_65 = arith.constant dense<0.000000e+00> : vector<2x128xf32>
    %213 = tpu.matmul %212, %22, %cst_65 {dimension_numbers = #tpu.dot_dimension_numbers<[1], [0], [0], [1], [0, 0, 1, 1], [], []>} : vector<2x32xbf16>, vector<32x128xbf16>, vector<2x128xf32> -> vector<2x128xf32>
    %214 = arith.addf %211, %213 : vector<2x128xf32>
    %215 = arith.mulf %214, %8 : vector<2x128xf32>
    %216 = math.tanh %215 : vector<2x128xf32>
    %217 = arith.mulf %216, %8 : vector<2x128xf32>
    %218 = arith.addf %217, %11 : vector<2x128xf32>
    %219 = vector.extract_strided_slice %218 {offsets = [0, 32], sizes = [2, 32], strides = [1, 1]} : vector<2x128xf32> to vector<2x32xf32>
    %220 = arith.mulf %219, %206 : vector<2x32xf32>
    %221 = vector.extract_strided_slice %218 {offsets = [0, 0], sizes = [2, 32], strides = [1, 1]} : vector<2x128xf32> to vector<2x32xf32>
    %222 = vector.extract_strided_slice %218 {offsets = [0, 64], sizes = [2, 32], strides = [1, 1]} : vector<2x128xf32> to vector<2x32xf32>
    %223 = arith.mulf %221, %222 : vector<2x32xf32>
    %224 = arith.addf %220, %223 : vector<2x32xf32>
    %225 = vector.extract_strided_slice %218 {offsets = [0, 96], sizes = [2, 32], strides = [1, 1]} : vector<2x128xf32> to vector<2x32xf32>
    %226 = math.tanh %224 : vector<2x32xf32>
    %227 = arith.mulf %225, %226 : vector<2x32xf32>
    %c2_66 = arith.constant 2 : index
    %c0_67 = arith.constant 0 : index
    %228 = vector.load %arg8[%c2_66, %c0_67] : memref<16x32xf32, #tpu.memory_space<vmem>>, vector<2x32xf32>
    tpu.vector_store %arg8[%c2_66, %c0_67], %227 {strides = array<i32>} : memref<16x32xf32, #tpu.memory_space<vmem>>, vector<2x32xf32>,
    %229 = vector.extract_strided_slice %190 {offsets = [4, 0], sizes = [2, 128], strides = [1, 1]} : vector<16x128xf32> to vector<2x128xf32>
    %230 = arith.truncf %227 : vector<2x32xf32> to vector<2x32xbf16>
    %cst_68 = arith.constant dense<0.000000e+00> : vector<2x128xf32>
    %231 = tpu.matmul %230, %22, %cst_68 {dimension_numbers = #tpu.dot_dimension_numbers<[1], [0], [0], [1], [0, 0, 1, 1], [], []>} : vector<2x32xbf16>, vector<32x128xbf16>, vector<2x128xf32> -> vector<2x128xf32>
    %232 = arith.addf %229, %231 : vector<2x128xf32>
    %233 = arith.mulf %232, %8 : vector<2x128xf32>
    %234 = math.tanh %233 : vector<2x128xf32>
    %235 = arith.mulf %234, %8 : vector<2x128xf32>
    %236 = arith.addf %235, %11 : vector<2x128xf32>
    %237 = vector.extract_strided_slice %236 {offsets = [0, 32], sizes = [2, 32], strides = [1, 1]} : vector<2x128xf32> to vector<2x32xf32>
    %238 = arith.mulf %237, %224 : vector<2x32xf32>
    %239 = vector.extract_strided_slice %236 {offsets = [0, 0], sizes = [2, 32], strides = [1, 1]} : vector<2x128xf32> to vector<2x32xf32>
    %240 = vector.extract_strided_slice %236 {offsets = [0, 64], sizes = [2, 32], strides = [1, 1]} : vector<2x128xf32> to vector<2x32xf32>
    %241 = arith.mulf %239, %240 : vector<2x32xf32>
    %242 = arith.addf %238, %241 : vector<2x32xf32>
    %243 = vector.extract_strided_slice %236 {offsets = [0, 96], sizes = [2, 32], strides = [1, 1]} : vector<2x128xf32> to vector<2x32xf32>
    %244 = math.tanh %242 : vector<2x32xf32>
    %245 = arith.mulf %243, %244 : vector<2x32xf32>
    %c4_69 = arith.constant 4 : index
    %c0_70 = arith.constant 0 : index
    %246 = vector.load %arg8[%c4_69, %c0_70] : memref<16x32xf32, #tpu.memory_space<vmem>>, vector<2x32xf32>
    tpu.vector_store %arg8[%c4_69, %c0_70], %245 {strides = array<i32>} : memref<16x32xf32, #tpu.memory_space<vmem>>, vector<2x32xf32>,
    %247 = vector.extract_strided_slice %190 {offsets = [6, 0], sizes = [2, 128], strides = [1, 1]} : vector<16x128xf32> to vector<2x128xf32>
    %248 = arith.truncf %245 : vector<2x32xf32> to vector<2x32xbf16>
    %cst_71 = arith.constant dense<0.000000e+00> : vector<2x128xf32>
    %249 = tpu.matmul %248, %22, %cst_71 {dimension_numbers = #tpu.dot_dimension_numbers<[1], [0], [0], [1], [0, 0, 1, 1], [], []>} : vector<2x32xbf16>, vector<32x128xbf16>, vector<2x128xf32> -> vector<2x128xf32>
    %250 = arith.addf %247, %249 : vector<2x128xf32>
    %251 = arith.mulf %250, %8 : vector<2x128xf32>
    %252 = math.tanh %251 : vector<2x128xf32>
    %253 = arith.mulf %252, %8 : vector<2x128xf32>
    %254 = arith.addf %253, %11 : vector<2x128xf32>
    %255 = vector.extract_strided_slice %254 {offsets = [0, 32], sizes = [2, 32], strides = [1, 1]} : vector<2x128xf32> to vector<2x32xf32>
    %256 = arith.mulf %255, %242 : vector<2x32xf32>
    %257 = vector.extract_strided_slice %254 {offsets = [0, 0], sizes = [2, 32], strides = [1, 1]} : vector<2x128xf32> to vector<2x32xf32>
    %258 = vector.extract_strided_slice %254 {offsets = [0, 64], sizes = [2, 32], strides = [1, 1]} : vector<2x128xf32> to vector<2x32xf32>
    %259 = arith.mulf %257, %258 : vector<2x32xf32>
    %260 = arith.addf %256, %259 : vector<2x32xf32>
    %261 = vector.extract_strided_slice %254 {offsets = [0, 96], sizes = [2, 32], strides = [1, 1]} : vector<2x128xf32> to vector<2x32xf32>
    %262 = math.tanh %260 : vector<2x32xf32>
    %263 = arith.mulf %261, %262 : vector<2x32xf32>
    %c6_72 = arith.constant 6 : index
    %c0_73 = arith.constant 0 : index
    %264 = vector.load %arg8[%c6_72, %c0_73] : memref<16x32xf32, #tpu.memory_space<vmem>>, vector<2x32xf32>
    tpu.vector_store %arg8[%c6_72, %c0_73], %263 {strides = array<i32>} : memref<16x32xf32, #tpu.memory_space<vmem>>, vector<2x32xf32>,
    %265 = vector.extract_strided_slice %190 {offsets = [8, 0], sizes = [2, 128], strides = [1, 1]} : vector<16x128xf32> to vector<2x128xf32>
    %266 = arith.truncf %263 : vector<2x32xf32> to vector<2x32xbf16>
    %cst_74 = arith.constant dense<0.000000e+00> : vector<2x128xf32>
    %267 = tpu.matmul %266, %22, %cst_74 {dimension_numbers = #tpu.dot_dimension_numbers<[1], [0], [0], [1], [0, 0, 1, 1], [], []>} : vector<2x32xbf16>, vector<32x128xbf16>, vector<2x128xf32> -> vector<2x128xf32>
    %268 = arith.addf %265, %267 : vector<2x128xf32>
    %269 = arith.mulf %268, %8 : vector<2x128xf32>
    %270 = math.tanh %269 : vector<2x128xf32>
    %271 = arith.mulf %270, %8 : vector<2x128xf32>
    %272 = arith.addf %271, %11 : vector<2x128xf32>
    %273 = vector.extract_strided_slice %272 {offsets = [0, 32], sizes = [2, 32], strides = [1, 1]} : vector<2x128xf32> to vector<2x32xf32>
    %274 = arith.mulf %273, %260 : vector<2x32xf32>
    %275 = vector.extract_strided_slice %272 {offsets = [0, 0], sizes = [2, 32], strides = [1, 1]} : vector<2x128xf32> to vector<2x32xf32>
    %276 = vector.extract_strided_slice %272 {offsets = [0, 64], sizes = [2, 32], strides = [1, 1]} : vector<2x128xf32> to vector<2x32xf32>
    %277 = arith.mulf %275, %276 : vector<2x32xf32>
    %278 = arith.addf %274, %277 : vector<2x32xf32>
    %279 = vector.extract_strided_slice %272 {offsets = [0, 96], sizes = [2, 32], strides = [1, 1]} : vector<2x128xf32> to vector<2x32xf32>
    %280 = math.tanh %278 : vector<2x32xf32>
    %281 = arith.mulf %279, %280 : vector<2x32xf32>
    %c8_75 = arith.constant 8 : index
    %c0_76 = arith.constant 0 : index
    %282 = vector.load %arg8[%c8_75, %c0_76] : memref<16x32xf32, #tpu.memory_space<vmem>>, vector<2x32xf32>
    tpu.vector_store %arg8[%c8_75, %c0_76], %281 {strides = array<i32>} : memref<16x32xf32, #tpu.memory_space<vmem>>, vector<2x32xf32>,
    %283 = vector.extract_strided_slice %190 {offsets = [10, 0], sizes = [2, 128], strides = [1, 1]} : vector<16x128xf32> to vector<2x128xf32>
    %284 = arith.truncf %281 : vector<2x32xf32> to vector<2x32xbf16>
    %cst_77 = arith.constant dense<0.000000e+00> : vector<2x128xf32>
    %285 = tpu.matmul %284, %22, %cst_77 {dimension_numbers = #tpu.dot_dimension_numbers<[1], [0], [0], [1], [0, 0, 1, 1], [], []>} : vector<2x32xbf16>, vector<32x128xbf16>, vector<2x128xf32> -> vector<2x128xf32>
    %286 = arith.addf %283, %285 : vector<2x128xf32>
    %287 = arith.mulf %286, %8 : vector<2x128xf32>
    %288 = math.tanh %287 : vector<2x128xf32>
    %289 = arith.mulf %288, %8 : vector<2x128xf32>
    %290 = arith.addf %289, %11 : vector<2x128xf32>
    %291 = vector.extract_strided_slice %290 {offsets = [0, 32], sizes = [2, 32], strides = [1, 1]} : vector<2x128xf32> to vector<2x32xf32>
    %292 = arith.mulf %291, %278 : vector<2x32xf32>
    %293 = vector.extract_strided_slice %290 {offsets = [0, 0], sizes = [2, 32], strides = [1, 1]} : vector<2x128xf32> to vector<2x32xf32>
    %294 = vector.extract_strided_slice %290 {offsets = [0, 64], sizes = [2, 32], strides = [1, 1]} : vector<2x128xf32> to vector<2x32xf32>
    %295 = arith.mulf %293, %294 : vector<2x32xf32>
    %296 = arith.addf %292, %295 : vector<2x32xf32>
    %297 = vector.extract_strided_slice %290 {offsets = [0, 96], sizes = [2, 32], strides = [1, 1]} : vector<2x128xf32> to vector<2x32xf32>
    %298 = math.tanh %296 : vector<2x32xf32>
    %299 = arith.mulf %297, %298 : vector<2x32xf32>
    %c10_78 = arith.constant 10 : index
    %c0_79 = arith.constant 0 : index
    %300 = vector.load %arg8[%c10_78, %c0_79] : memref<16x32xf32, #tpu.memory_space<vmem>>, vector<2x32xf32>
    tpu.vector_store %arg8[%c10_78, %c0_79], %299 {strides = array<i32>} : memref<16x32xf32, #tpu.memory_space<vmem>>, vector<2x32xf32>,
    %301 = vector.extract_strided_slice %190 {offsets = [12, 0], sizes = [2, 128], strides = [1, 1]} : vector<16x128xf32> to vector<2x128xf32>
    %302 = arith.truncf %299 : vector<2x32xf32> to vector<2x32xbf16>
    %cst_80 = arith.constant dense<0.000000e+00> : vector<2x128xf32>
    %303 = tpu.matmul %302, %22, %cst_80 {dimension_numbers = #tpu.dot_dimension_numbers<[1], [0], [0], [1], [0, 0, 1, 1], [], []>} : vector<2x32xbf16>, vector<32x128xbf16>, vector<2x128xf32> -> vector<2x128xf32>
    %304 = arith.addf %301, %303 : vector<2x128xf32>
    %305 = arith.mulf %304, %8 : vector<2x128xf32>
    %306 = math.tanh %305 : vector<2x128xf32>
    %307 = arith.mulf %306, %8 : vector<2x128xf32>
    %308 = arith.addf %307, %11 : vector<2x128xf32>
    %309 = vector.extract_strided_slice %308 {offsets = [0, 32], sizes = [2, 32], strides = [1, 1]} : vector<2x128xf32> to vector<2x32xf32>
    %310 = arith.mulf %309, %296 : vector<2x32xf32>
    %311 = vector.extract_strided_slice %308 {offsets = [0, 0], sizes = [2, 32], strides = [1, 1]} : vector<2x128xf32> to vector<2x32xf32>
    %312 = vector.extract_strided_slice %308 {offsets = [0, 64], sizes = [2, 32], strides = [1, 1]} : vector<2x128xf32> to vector<2x32xf32>
    %313 = arith.mulf %311, %312 : vector<2x32xf32>
    %314 = arith.addf %310, %313 : vector<2x32xf32>
    %315 = vector.extract_strided_slice %308 {offsets = [0, 96], sizes = [2, 32], strides = [1, 1]} : vector<2x128xf32> to vector<2x32xf32>
    %316 = math.tanh %314 : vector<2x32xf32>
    %317 = arith.mulf %315, %316 : vector<2x32xf32>
    %c12_81 = arith.constant 12 : index
    %c0_82 = arith.constant 0 : index
    %318 = vector.load %arg8[%c12_81, %c0_82] : memref<16x32xf32, #tpu.memory_space<vmem>>, vector<2x32xf32>
    tpu.vector_store %arg8[%c12_81, %c0_82], %317 {strides = array<i32>} : memref<16x32xf32, #tpu.memory_space<vmem>>, vector<2x32xf32>,
    %319 = vector.extract_strided_slice %190 {offsets = [14, 0], sizes = [2, 128], strides = [1, 1]} : vector<16x128xf32> to vector<2x128xf32>
    %320 = arith.truncf %317 : vector<2x32xf32> to vector<2x32xbf16>
    %cst_83 = arith.constant dense<0.000000e+00> : vector<2x128xf32>
    %321 = tpu.matmul %320, %22, %cst_83 {dimension_numbers = #tpu.dot_dimension_numbers<[1], [0], [0], [1], [0, 0, 1, 1], [], []>} : vector<2x32xbf16>, vector<32x128xbf16>, vector<2x128xf32> -> vector<2x128xf32>
    %322 = arith.addf %319, %321 : vector<2x128xf32>
    %323 = arith.mulf %322, %8 : vector<2x128xf32>
    %324 = math.tanh %323 : vector<2x128xf32>
    %325 = arith.mulf %324, %8 : vector<2x128xf32>
    %326 = arith.addf %325, %11 : vector<2x128xf32>
    %327 = vector.extract_strided_slice %326 {offsets = [0, 32], sizes = [2, 32], strides = [1, 1]} : vector<2x128xf32> to vector<2x32xf32>
    %328 = arith.mulf %327, %314 : vector<2x32xf32>
    %329 = vector.extract_strided_slice %326 {offsets = [0, 0], sizes = [2, 32], strides = [1, 1]} : vector<2x128xf32> to vector<2x32xf32>
    %330 = vector.extract_strided_slice %326 {offsets = [0, 64], sizes = [2, 32], strides = [1, 1]} : vector<2x128xf32> to vector<2x32xf32>
    %331 = arith.mulf %329, %330 : vector<2x32xf32>
    %332 = arith.addf %328, %331 : vector<2x32xf32>
    %333 = vector.extract_strided_slice %326 {offsets = [0, 96], sizes = [2, 32], strides = [1, 1]} : vector<2x128xf32> to vector<2x32xf32>
    %334 = math.tanh %332 : vector<2x32xf32>
    %335 = arith.mulf %333, %334 : vector<2x32xf32>
    %c14_84 = arith.constant 14 : index
    %c0_85 = arith.constant 0 : index
    %336 = vector.load %arg8[%c14_84, %c0_85] : memref<16x32xf32, #tpu.memory_space<vmem>>, vector<2x32xf32>
    tpu.vector_store %arg8[%c14_84, %c0_85], %335 {strides = array<i32>} : memref<16x32xf32, #tpu.memory_space<vmem>>, vector<2x32xf32>,
    %c0_86 = arith.constant 0 : index
    %c0_87 = arith.constant 0 : index
    %337 = vector.load %arg8[%c0_86, %c0_87] : memref<16x32xf32, #tpu.memory_space<vmem>>, vector<16x32xf32>
    %338 = arith.truncf %337 : vector<16x32xf32> to vector<16x32xbf16>
    %cst_88 = arith.constant dense<0.000000e+00> : vector<16x128xf32>
    %339 = tpu.matmul %338, %16, %cst_88 {dimension_numbers = #tpu.dot_dimension_numbers<[1], [0], [0], [1], [0, 0, 1, 1], [], []>} : vector<16x32xbf16>, vector<32x128xbf16>, vector<16x128xf32> -> vector<16x128xf32>
    %340 = vector.broadcast %32 : vector<1x128xf32> to vector<16x128xf32>
    %341 = arith.addf %339, %340 : vector<16x128xf32>
    %cst_89 = arith.constant 0.000000e+00 : f32
    %342 = vector.broadcast %cst_89 : f32 to vector<2x32xf32>
    %cst_90 = arith.constant 0.000000e+00 : f32
    %343 = vector.broadcast %cst_90 : f32 to vector<2x32xf32>
    %344 = vector.extract_strided_slice %341 {offsets = [0, 0], sizes = [2, 128], strides = [1, 1]} : vector<16x128xf32> to vector<2x128xf32>
    %345 = arith.truncf %342 : vector<2x32xf32> to vector<2x32xbf16>
    %cst_91 = arith.constant dense<0.000000e+00> : vector<2x128xf32>
    %346 = tpu.matmul %345, %24, %cst_91 {dimension_numbers = #tpu.dot_dimension_numbers<[1], [0], [0], [1], [0, 0, 1, 1], [], []>} : vector<2x32xbf16>, vector<32x128xbf16>, vector<2x128xf32> -> vector<2x128xf32>
    %347 = arith.addf %344, %346 : vector<2x128xf32>
    %348 = arith.mulf %347, %8 : vector<2x128xf32>
    %349 = math.tanh %348 : vector<2x128xf32>
    %350 = arith.mulf %349, %8 : vector<2x128xf32>
    %351 = arith.addf %350, %11 : vector<2x128xf32>
    %352 = vector.extract_strided_slice %351 {offsets = [0, 32], sizes = [2, 32], strides = [1, 1]} : vector<2x128xf32> to vector<2x32xf32>
    %353 = arith.mulf %352, %343 : vector<2x32xf32>
    %354 = vector.extract_strided_slice %351 {offsets = [0, 0], sizes = [2, 32], strides = [1, 1]} : vector<2x128xf32> to vector<2x32xf32>
    %355 = vector.extract_strided_slice %351 {offsets = [0, 64], sizes = [2, 32], strides = [1, 1]} : vector<2x128xf32> to vector<2x32xf32>
    %356 = arith.mulf %354, %355 : vector<2x32xf32>
    %357 = arith.addf %353, %356 : vector<2x32xf32>
    %358 = vector.extract_strided_slice %351 {offsets = [0, 96], sizes = [2, 32], strides = [1, 1]} : vector<2x128xf32> to vector<2x32xf32>
    %359 = math.tanh %357 : vector<2x32xf32>
    %360 = arith.mulf %358, %359 : vector<2x32xf32>
    %c0_92 = arith.constant 0 : index
    %c0_93 = arith.constant 0 : index
    %361 = vector.load %arg8[%c0_92, %c0_93] : memref<16x32xf32, #tpu.memory_space<vmem>>, vector<2x32xf32>
    tpu.vector_store %arg8[%c0_92, %c0_93], %360 {strides = array<i32>} : memref<16x32xf32, #tpu.memory_space<vmem>>, vector<2x32xf32>,
    %362 = vector.extract_strided_slice %341 {offsets = [2, 0], sizes = [2, 128], strides = [1, 1]} : vector<16x128xf32> to vector<2x128xf32>
    %363 = arith.truncf %360 : vector<2x32xf32> to vector<2x32xbf16>
    %cst_94 = arith.constant dense<0.000000e+00> : vector<2x128xf32>
    %364 = tpu.matmul %363, %24, %cst_94 {dimension_numbers = #tpu.dot_dimension_numbers<[1], [0], [0], [1], [0, 0, 1, 1], [], []>} : vector<2x32xbf16>, vector<32x128xbf16>, vector<2x128xf32> -> vector<2x128xf32>
    %365 = arith.addf %362, %364 : vector<2x128xf32>
    %366 = arith.mulf %365, %8 : vector<2x128xf32>
    %367 = math.tanh %366 : vector<2x128xf32>
    %368 = arith.mulf %367, %8 : vector<2x128xf32>
    %369 = arith.addf %368, %11 : vector<2x128xf32>
    %370 = vector.extract_strided_slice %369 {offsets = [0, 32], sizes = [2, 32], strides = [1, 1]} : vector<2x128xf32> to vector<2x32xf32>
    %371 = arith.mulf %370, %357 : vector<2x32xf32>
    %372 = vector.extract_strided_slice %369 {offsets = [0, 0], sizes = [2, 32], strides = [1, 1]} : vector<2x128xf32> to vector<2x32xf32>
    %373 = vector.extract_strided_slice %369 {offsets = [0, 64], sizes = [2, 32], strides = [1, 1]} : vector<2x128xf32> to vector<2x32xf32>
    %374 = arith.mulf %372, %373 : vector<2x32xf32>
    %375 = arith.addf %371, %374 : vector<2x32xf32>
    %376 = vector.extract_strided_slice %369 {offsets = [0, 96], sizes = [2, 32], strides = [1, 1]} : vector<2x128xf32> to vector<2x32xf32>
    %377 = math.tanh %375 : vector<2x32xf32>
    %378 = arith.mulf %376, %377 : vector<2x32xf32>
    %c2_95 = arith.constant 2 : index
    %c0_96 = arith.constant 0 : index
    %379 = vector.load %arg8[%c2_95, %c0_96] : memref<16x32xf32, #tpu.memory_space<vmem>>, vector<2x32xf32>
    tpu.vector_store %arg8[%c2_95, %c0_96], %378 {strides = array<i32>} : memref<16x32xf32, #tpu.memory_space<vmem>>, vector<2x32xf32>,
    %380 = vector.extract_strided_slice %341 {offsets = [4, 0], sizes = [2, 128], strides = [1, 1]} : vector<16x128xf32> to vector<2x128xf32>
    %381 = arith.truncf %378 : vector<2x32xf32> to vector<2x32xbf16>
    %cst_97 = arith.constant dense<0.000000e+00> : vector<2x128xf32>
    %382 = tpu.matmul %381, %24, %cst_97 {dimension_numbers = #tpu.dot_dimension_numbers<[1], [0], [0], [1], [0, 0, 1, 1], [], []>} : vector<2x32xbf16>, vector<32x128xbf16>, vector<2x128xf32> -> vector<2x128xf32>
    %383 = arith.addf %380, %382 : vector<2x128xf32>
    %384 = arith.mulf %383, %8 : vector<2x128xf32>
    %385 = math.tanh %384 : vector<2x128xf32>
    %386 = arith.mulf %385, %8 : vector<2x128xf32>
    %387 = arith.addf %386, %11 : vector<2x128xf32>
    %388 = vector.extract_strided_slice %387 {offsets = [0, 32], sizes = [2, 32], strides = [1, 1]} : vector<2x128xf32> to vector<2x32xf32>
    %389 = arith.mulf %388, %375 : vector<2x32xf32>
    %390 = vector.extract_strided_slice %387 {offsets = [0, 0], sizes = [2, 32], strides = [1, 1]} : vector<2x128xf32> to vector<2x32xf32>
    %391 = vector.extract_strided_slice %387 {offsets = [0, 64], sizes = [2, 32], strides = [1, 1]} : vector<2x128xf32> to vector<2x32xf32>
    %392 = arith.mulf %390, %391 : vector<2x32xf32>
    %393 = arith.addf %389, %392 : vector<2x32xf32>
    %394 = vector.extract_strided_slice %387 {offsets = [0, 96], sizes = [2, 32], strides = [1, 1]} : vector<2x128xf32> to vector<2x32xf32>
    %395 = math.tanh %393 : vector<2x32xf32>
    %396 = arith.mulf %394, %395 : vector<2x32xf32>
    %c4_98 = arith.constant 4 : index
    %c0_99 = arith.constant 0 : index
    %397 = vector.load %arg8[%c4_98, %c0_99] : memref<16x32xf32, #tpu.memory_space<vmem>>, vector<2x32xf32>
    tpu.vector_store %arg8[%c4_98, %c0_99], %396 {strides = array<i32>} : memref<16x32xf32, #tpu.memory_space<vmem>>, vector<2x32xf32>,
    %398 = vector.extract_strided_slice %341 {offsets = [6, 0], sizes = [2, 128], strides = [1, 1]} : vector<16x128xf32> to vector<2x128xf32>
    %399 = arith.truncf %396 : vector<2x32xf32> to vector<2x32xbf16>
    %cst_100 = arith.constant dense<0.000000e+00> : vector<2x128xf32>
    %400 = tpu.matmul %399, %24, %cst_100 {dimension_numbers = #tpu.dot_dimension_numbers<[1], [0], [0], [1], [0, 0, 1, 1], [], []>} : vector<2x32xbf16>, vector<32x128xbf16>, vector<2x128xf32> -> vector<2x128xf32>
    %401 = arith.addf %398, %400 : vector<2x128xf32>
    %402 = arith.mulf %401, %8 : vector<2x128xf32>
    %403 = math.tanh %402 : vector<2x128xf32>
    %404 = arith.mulf %403, %8 : vector<2x128xf32>
    %405 = arith.addf %404, %11 : vector<2x128xf32>
    %406 = vector.extract_strided_slice %405 {offsets = [0, 32], sizes = [2, 32], strides = [1, 1]} : vector<2x128xf32> to vector<2x32xf32>
    %407 = arith.mulf %406, %393 : vector<2x32xf32>
    %408 = vector.extract_strided_slice %405 {offsets = [0, 0], sizes = [2, 32], strides = [1, 1]} : vector<2x128xf32> to vector<2x32xf32>
    %409 = vector.extract_strided_slice %405 {offsets = [0, 64], sizes = [2, 32], strides = [1, 1]} : vector<2x128xf32> to vector<2x32xf32>
    %410 = arith.mulf %408, %409 : vector<2x32xf32>
    %411 = arith.addf %407, %410 : vector<2x32xf32>
    %412 = vector.extract_strided_slice %405 {offsets = [0, 96], sizes = [2, 32], strides = [1, 1]} : vector<2x128xf32> to vector<2x32xf32>
    %413 = math.tanh %411 : vector<2x32xf32>
    %414 = arith.mulf %412, %413 : vector<2x32xf32>
    %c6_101 = arith.constant 6 : index
    %c0_102 = arith.constant 0 : index
    %415 = vector.load %arg8[%c6_101, %c0_102] : memref<16x32xf32, #tpu.memory_space<vmem>>, vector<2x32xf32>
    tpu.vector_store %arg8[%c6_101, %c0_102], %414 {strides = array<i32>} : memref<16x32xf32, #tpu.memory_space<vmem>>, vector<2x32xf32>,
    %416 = vector.extract_strided_slice %341 {offsets = [8, 0], sizes = [2, 128], strides = [1, 1]} : vector<16x128xf32> to vector<2x128xf32>
    %417 = arith.truncf %414 : vector<2x32xf32> to vector<2x32xbf16>
    %cst_103 = arith.constant dense<0.000000e+00> : vector<2x128xf32>
    %418 = tpu.matmul %417, %24, %cst_103 {dimension_numbers = #tpu.dot_dimension_numbers<[1], [0], [0], [1], [0, 0, 1, 1], [], []>} : vector<2x32xbf16>, vector<32x128xbf16>, vector<2x128xf32> -> vector<2x128xf32>
    %419 = arith.addf %416, %418 : vector<2x128xf32>
    %420 = arith.mulf %419, %8 : vector<2x128xf32>
    %421 = math.tanh %420 : vector<2x128xf32>
    %422 = arith.mulf %421, %8 : vector<2x128xf32>
    %423 = arith.addf %422, %11 : vector<2x128xf32>
    %424 = vector.extract_strided_slice %423 {offsets = [0, 32], sizes = [2, 32], strides = [1, 1]} : vector<2x128xf32> to vector<2x32xf32>
    %425 = arith.mulf %424, %411 : vector<2x32xf32>
    %426 = vector.extract_strided_slice %423 {offsets = [0, 0], sizes = [2, 32], strides = [1, 1]} : vector<2x128xf32> to vector<2x32xf32>
    %427 = vector.extract_strided_slice %423 {offsets = [0, 64], sizes = [2, 32], strides = [1, 1]} : vector<2x128xf32> to vector<2x32xf32>
    %428 = arith.mulf %426, %427 : vector<2x32xf32>
    %429 = arith.addf %425, %428 : vector<2x32xf32>
    %430 = vector.extract_strided_slice %423 {offsets = [0, 96], sizes = [2, 32], strides = [1, 1]} : vector<2x128xf32> to vector<2x32xf32>
    %431 = math.tanh %429 : vector<2x32xf32>
    %432 = arith.mulf %430, %431 : vector<2x32xf32>
    %c8_104 = arith.constant 8 : index
    %c0_105 = arith.constant 0 : index
    %433 = vector.load %arg8[%c8_104, %c0_105] : memref<16x32xf32, #tpu.memory_space<vmem>>, vector<2x32xf32>
    tpu.vector_store %arg8[%c8_104, %c0_105], %432 {strides = array<i32>} : memref<16x32xf32, #tpu.memory_space<vmem>>, vector<2x32xf32>,
    %434 = vector.extract_strided_slice %341 {offsets = [10, 0], sizes = [2, 128], strides = [1, 1]} : vector<16x128xf32> to vector<2x128xf32>
    %435 = arith.truncf %432 : vector<2x32xf32> to vector<2x32xbf16>
    %cst_106 = arith.constant dense<0.000000e+00> : vector<2x128xf32>
    %436 = tpu.matmul %435, %24, %cst_106 {dimension_numbers = #tpu.dot_dimension_numbers<[1], [0], [0], [1], [0, 0, 1, 1], [], []>} : vector<2x32xbf16>, vector<32x128xbf16>, vector<2x128xf32> -> vector<2x128xf32>
    %437 = arith.addf %434, %436 : vector<2x128xf32>
    %438 = arith.mulf %437, %8 : vector<2x128xf32>
    %439 = math.tanh %438 : vector<2x128xf32>
    %440 = arith.mulf %439, %8 : vector<2x128xf32>
    %441 = arith.addf %440, %11 : vector<2x128xf32>
    %442 = vector.extract_strided_slice %441 {offsets = [0, 32], sizes = [2, 32], strides = [1, 1]} : vector<2x128xf32> to vector<2x32xf32>
    %443 = arith.mulf %442, %429 : vector<2x32xf32>
    %444 = vector.extract_strided_slice %441 {offsets = [0, 0], sizes = [2, 32], strides = [1, 1]} : vector<2x128xf32> to vector<2x32xf32>
    %445 = vector.extract_strided_slice %441 {offsets = [0, 64], sizes = [2, 32], strides = [1, 1]} : vector<2x128xf32> to vector<2x32xf32>
    %446 = arith.mulf %444, %445 : vector<2x32xf32>
    %447 = arith.addf %443, %446 : vector<2x32xf32>
    %448 = vector.extract_strided_slice %441 {offsets = [0, 96], sizes = [2, 32], strides = [1, 1]} : vector<2x128xf32> to vector<2x32xf32>
    %449 = math.tanh %447 : vector<2x32xf32>
    %450 = arith.mulf %448, %449 : vector<2x32xf32>
    %c10_107 = arith.constant 10 : index
    %c0_108 = arith.constant 0 : index
    %451 = vector.load %arg8[%c10_107, %c0_108] : memref<16x32xf32, #tpu.memory_space<vmem>>, vector<2x32xf32>
    tpu.vector_store %arg8[%c10_107, %c0_108], %450 {strides = array<i32>} : memref<16x32xf32, #tpu.memory_space<vmem>>, vector<2x32xf32>,
    %452 = vector.extract_strided_slice %341 {offsets = [12, 0], sizes = [2, 128], strides = [1, 1]} : vector<16x128xf32> to vector<2x128xf32>
    %453 = arith.truncf %450 : vector<2x32xf32> to vector<2x32xbf16>
    %cst_109 = arith.constant dense<0.000000e+00> : vector<2x128xf32>
    %454 = tpu.matmul %453, %24, %cst_109 {dimension_numbers = #tpu.dot_dimension_numbers<[1], [0], [0], [1], [0, 0, 1, 1], [], []>} : vector<2x32xbf16>, vector<32x128xbf16>, vector<2x128xf32> -> vector<2x128xf32>
    %455 = arith.addf %452, %454 : vector<2x128xf32>
    %456 = arith.mulf %455, %8 : vector<2x128xf32>
    %457 = math.tanh %456 : vector<2x128xf32>
    %458 = arith.mulf %457, %8 : vector<2x128xf32>
    %459 = arith.addf %458, %11 : vector<2x128xf32>
    %460 = vector.extract_strided_slice %459 {offsets = [0, 32], sizes = [2, 32], strides = [1, 1]} : vector<2x128xf32> to vector<2x32xf32>
    %461 = arith.mulf %460, %447 : vector<2x32xf32>
    %462 = vector.extract_strided_slice %459 {offsets = [0, 0], sizes = [2, 32], strides = [1, 1]} : vector<2x128xf32> to vector<2x32xf32>
    %463 = vector.extract_strided_slice %459 {offsets = [0, 64], sizes = [2, 32], strides = [1, 1]} : vector<2x128xf32> to vector<2x32xf32>
    %464 = arith.mulf %462, %463 : vector<2x32xf32>
    %465 = arith.addf %461, %464 : vector<2x32xf32>
    %466 = vector.extract_strided_slice %459 {offsets = [0, 96], sizes = [2, 32], strides = [1, 1]} : vector<2x128xf32> to vector<2x32xf32>
    %467 = math.tanh %465 : vector<2x32xf32>
    %468 = arith.mulf %466, %467 : vector<2x32xf32>
    %c12_110 = arith.constant 12 : index
    %c0_111 = arith.constant 0 : index
    %469 = vector.load %arg8[%c12_110, %c0_111] : memref<16x32xf32, #tpu.memory_space<vmem>>, vector<2x32xf32>
    tpu.vector_store %arg8[%c12_110, %c0_111], %468 {strides = array<i32>} : memref<16x32xf32, #tpu.memory_space<vmem>>, vector<2x32xf32>,
    %470 = vector.extract_strided_slice %341 {offsets = [14, 0], sizes = [2, 128], strides = [1, 1]} : vector<16x128xf32> to vector<2x128xf32>
    %471 = arith.truncf %468 : vector<2x32xf32> to vector<2x32xbf16>
    %cst_112 = arith.constant dense<0.000000e+00> : vector<2x128xf32>
    %472 = tpu.matmul %471, %24, %cst_112 {dimension_numbers = #tpu.dot_dimension_numbers<[1], [0], [0], [1], [0, 0, 1, 1], [], []>} : vector<2x32xbf16>, vector<32x128xbf16>, vector<2x128xf32> -> vector<2x128xf32>
    %473 = arith.addf %470, %472 : vector<2x128xf32>
    %474 = arith.mulf %473, %8 : vector<2x128xf32>
    %475 = math.tanh %474 : vector<2x128xf32>
    %476 = arith.mulf %475, %8 : vector<2x128xf32>
    %477 = arith.addf %476, %11 : vector<2x128xf32>
    %478 = vector.extract_strided_slice %477 {offsets = [0, 32], sizes = [2, 32], strides = [1, 1]} : vector<2x128xf32> to vector<2x32xf32>
    %479 = arith.mulf %478, %465 : vector<2x32xf32>
    %480 = vector.extract_strided_slice %477 {offsets = [0, 0], sizes = [2, 32], strides = [1, 1]} : vector<2x128xf32> to vector<2x32xf32>
    %481 = vector.extract_strided_slice %477 {offsets = [0, 64], sizes = [2, 32], strides = [1, 1]} : vector<2x128xf32> to vector<2x32xf32>
    %482 = arith.mulf %480, %481 : vector<2x32xf32>
    %483 = arith.addf %479, %482 : vector<2x32xf32>
    %484 = vector.extract_strided_slice %477 {offsets = [0, 96], sizes = [2, 32], strides = [1, 1]} : vector<2x128xf32> to vector<2x32xf32>
    %485 = math.tanh %483 : vector<2x32xf32>
    %486 = arith.mulf %484, %485 : vector<2x32xf32>
    %c14_113 = arith.constant 14 : index
    %c0_114 = arith.constant 0 : index
    %487 = vector.load %arg8[%c14_113, %c0_114] : memref<16x32xf32, #tpu.memory_space<vmem>>, vector<2x32xf32>
    tpu.vector_store %arg8[%c14_113, %c0_114], %486 {strides = array<i32>} : memref<16x32xf32, #tpu.memory_space<vmem>>, vector<2x32xf32>,
    %c0_115 = arith.constant 0 : index
    %c0_116 = arith.constant 0 : index
    %488 = vector.load %arg8[%c0_115, %c0_116] : memref<16x32xf32, #tpu.memory_space<vmem>>, vector<16x32xf32>
    %489 = arith.truncf %488 : vector<16x32xf32> to vector<16x32xbf16>
    %cst_117 = arith.constant dense<0.000000e+00> : vector<16x128xf32>
    %490 = tpu.matmul %489, %18, %cst_117 {dimension_numbers = #tpu.dot_dimension_numbers<[1], [0], [0], [1], [0, 0, 1, 1], [], []>} : vector<16x32xbf16>, vector<32x128xbf16>, vector<16x128xf32> -> vector<16x128xf32>
    %491 = vector.broadcast %34 : vector<1x128xf32> to vector<16x128xf32>
    %492 = arith.addf %490, %491 : vector<16x128xf32>
    %cst_118 = arith.constant 0.000000e+00 : f32
    %493 = vector.broadcast %cst_118 : f32 to vector<2x32xf32>
    %cst_119 = arith.constant 0.000000e+00 : f32
    %494 = vector.broadcast %cst_119 : f32 to vector<2x32xf32>
    %495 = vector.extract_strided_slice %492 {offsets = [0, 0], sizes = [2, 128], strides = [1, 1]} : vector<16x128xf32> to vector<2x128xf32>
    %496 = arith.truncf %493 : vector<2x32xf32> to vector<2x32xbf16>
    %cst_120 = arith.constant dense<0.000000e+00> : vector<2x128xf32>
    %497 = tpu.matmul %496, %26, %cst_120 {dimension_numbers = #tpu.dot_dimension_numbers<[1], [0], [0], [1], [0, 0, 1, 1], [], []>} : vector<2x32xbf16>, vector<32x128xbf16>, vector<2x128xf32> -> vector<2x128xf32>
    %498 = arith.addf %495, %497 : vector<2x128xf32>
    %499 = arith.mulf %498, %8 : vector<2x128xf32>
    %500 = math.tanh %499 : vector<2x128xf32>
    %501 = arith.mulf %500, %8 : vector<2x128xf32>
    %502 = arith.addf %501, %11 : vector<2x128xf32>
    %503 = vector.extract_strided_slice %502 {offsets = [0, 32], sizes = [2, 32], strides = [1, 1]} : vector<2x128xf32> to vector<2x32xf32>
    %504 = arith.mulf %503, %494 : vector<2x32xf32>
    %505 = vector.extract_strided_slice %502 {offsets = [0, 0], sizes = [2, 32], strides = [1, 1]} : vector<2x128xf32> to vector<2x32xf32>
    %506 = vector.extract_strided_slice %502 {offsets = [0, 64], sizes = [2, 32], strides = [1, 1]} : vector<2x128xf32> to vector<2x32xf32>
    %507 = arith.mulf %505, %506 : vector<2x32xf32>
    %508 = arith.addf %504, %507 : vector<2x32xf32>
    %509 = vector.extract_strided_slice %502 {offsets = [0, 96], sizes = [2, 32], strides = [1, 1]} : vector<2x128xf32> to vector<2x32xf32>
    %510 = math.tanh %508 : vector<2x32xf32>
    %511 = arith.mulf %509, %510 : vector<2x32xf32>
    %512 = vector.extract_strided_slice %492 {offsets = [2, 0], sizes = [2, 128], strides = [1, 1]} : vector<16x128xf32> to vector<2x128xf32>
    %513 = arith.truncf %511 : vector<2x32xf32> to vector<2x32xbf16>
    %cst_121 = arith.constant dense<0.000000e+00> : vector<2x128xf32>
    %514 = tpu.matmul %513, %26, %cst_121 {dimension_numbers = #tpu.dot_dimension_numbers<[1], [0], [0], [1], [0, 0, 1, 1], [], []>} : vector<2x32xbf16>, vector<32x128xbf16>, vector<2x128xf32> -> vector<2x128xf32>
    %515 = arith.addf %512, %514 : vector<2x128xf32>
    %516 = arith.mulf %515, %8 : vector<2x128xf32>
    %517 = math.tanh %516 : vector<2x128xf32>
    %518 = arith.mulf %517, %8 : vector<2x128xf32>
    %519 = arith.addf %518, %11 : vector<2x128xf32>
    %520 = vector.extract_strided_slice %519 {offsets = [0, 32], sizes = [2, 32], strides = [1, 1]} : vector<2x128xf32> to vector<2x32xf32>
    %521 = arith.mulf %520, %508 : vector<2x32xf32>
    %522 = vector.extract_strided_slice %519 {offsets = [0, 0], sizes = [2, 32], strides = [1, 1]} : vector<2x128xf32> to vector<2x32xf32>
    %523 = vector.extract_strided_slice %519 {offsets = [0, 64], sizes = [2, 32], strides = [1, 1]} : vector<2x128xf32> to vector<2x32xf32>
    %524 = arith.mulf %522, %523 : vector<2x32xf32>
    %525 = arith.addf %521, %524 : vector<2x32xf32>
    %526 = vector.extract_strided_slice %519 {offsets = [0, 96], sizes = [2, 32], strides = [1, 1]} : vector<2x128xf32> to vector<2x32xf32>
    %527 = math.tanh %525 : vector<2x32xf32>
    %528 = arith.mulf %526, %527 : vector<2x32xf32>
    %529 = vector.extract_strided_slice %492 {offsets = [4, 0], sizes = [2, 128], strides = [1, 1]} : vector<16x128xf32> to vector<2x128xf32>
    %530 = arith.truncf %528 : vector<2x32xf32> to vector<2x32xbf16>
    %cst_122 = arith.constant dense<0.000000e+00> : vector<2x128xf32>
    %531 = tpu.matmul %530, %26, %cst_122 {dimension_numbers = #tpu.dot_dimension_numbers<[1], [0], [0], [1], [0, 0, 1, 1], [], []>} : vector<2x32xbf16>, vector<32x128xbf16>, vector<2x128xf32> -> vector<2x128xf32>
    %532 = arith.addf %529, %531 : vector<2x128xf32>
    %533 = arith.mulf %532, %8 : vector<2x128xf32>
    %534 = math.tanh %533 : vector<2x128xf32>
    %535 = arith.mulf %534, %8 : vector<2x128xf32>
    %536 = arith.addf %535, %11 : vector<2x128xf32>
    %537 = vector.extract_strided_slice %536 {offsets = [0, 32], sizes = [2, 32], strides = [1, 1]} : vector<2x128xf32> to vector<2x32xf32>
    %538 = arith.mulf %537, %525 : vector<2x32xf32>
    %539 = vector.extract_strided_slice %536 {offsets = [0, 0], sizes = [2, 32], strides = [1, 1]} : vector<2x128xf32> to vector<2x32xf32>
    %540 = vector.extract_strided_slice %536 {offsets = [0, 64], sizes = [2, 32], strides = [1, 1]} : vector<2x128xf32> to vector<2x32xf32>
    %541 = arith.mulf %539, %540 : vector<2x32xf32>
    %542 = arith.addf %538, %541 : vector<2x32xf32>
    %543 = vector.extract_strided_slice %536 {offsets = [0, 96], sizes = [2, 32], strides = [1, 1]} : vector<2x128xf32> to vector<2x32xf32>
    %544 = math.tanh %542 : vector<2x32xf32>
    %545 = arith.mulf %543, %544 : vector<2x32xf32>
    %546 = vector.extract_strided_slice %492 {offsets = [6, 0], sizes = [2, 128], strides = [1, 1]} : vector<16x128xf32> to vector<2x128xf32>
    %547 = arith.truncf %545 : vector<2x32xf32> to vector<2x32xbf16>
    %cst_123 = arith.constant dense<0.000000e+00> : vector<2x128xf32>
    %548 = tpu.matmul %547, %26, %cst_123 {dimension_numbers = #tpu.dot_dimension_numbers<[1], [0], [0], [1], [0, 0, 1, 1], [], []>} : vector<2x32xbf16>, vector<32x128xbf16>, vector<2x128xf32> -> vector<2x128xf32>
    %549 = arith.addf %546, %548 : vector<2x128xf32>
    %550 = arith.mulf %549, %8 : vector<2x128xf32>
    %551 = math.tanh %550 : vector<2x128xf32>
    %552 = arith.mulf %551, %8 : vector<2x128xf32>
    %553 = arith.addf %552, %11 : vector<2x128xf32>
    %554 = vector.extract_strided_slice %553 {offsets = [0, 32], sizes = [2, 32], strides = [1, 1]} : vector<2x128xf32> to vector<2x32xf32>
    %555 = arith.mulf %554, %542 : vector<2x32xf32>
    %556 = vector.extract_strided_slice %553 {offsets = [0, 0], sizes = [2, 32], strides = [1, 1]} : vector<2x128xf32> to vector<2x32xf32>
    %557 = vector.extract_strided_slice %553 {offsets = [0, 64], sizes = [2, 32], strides = [1, 1]} : vector<2x128xf32> to vector<2x32xf32>
    %558 = arith.mulf %556, %557 : vector<2x32xf32>
    %559 = arith.addf %555, %558 : vector<2x32xf32>
    %560 = vector.extract_strided_slice %553 {offsets = [0, 96], sizes = [2, 32], strides = [1, 1]} : vector<2x128xf32> to vector<2x32xf32>
    %561 = math.tanh %559 : vector<2x32xf32>
    %562 = arith.mulf %560, %561 : vector<2x32xf32>
    %563 = vector.extract_strided_slice %492 {offsets = [8, 0], sizes = [2, 128], strides = [1, 1]} : vector<16x128xf32> to vector<2x128xf32>
    %564 = arith.truncf %562 : vector<2x32xf32> to vector<2x32xbf16>
    %cst_124 = arith.constant dense<0.000000e+00> : vector<2x128xf32>
    %565 = tpu.matmul %564, %26, %cst_124 {dimension_numbers = #tpu.dot_dimension_numbers<[1], [0], [0], [1], [0, 0, 1, 1], [], []>} : vector<2x32xbf16>, vector<32x128xbf16>, vector<2x128xf32> -> vector<2x128xf32>
    %566 = arith.addf %563, %565 : vector<2x128xf32>
    %567 = arith.mulf %566, %8 : vector<2x128xf32>
    %568 = math.tanh %567 : vector<2x128xf32>
    %569 = arith.mulf %568, %8 : vector<2x128xf32>
    %570 = arith.addf %569, %11 : vector<2x128xf32>
    %571 = vector.extract_strided_slice %570 {offsets = [0, 32], sizes = [2, 32], strides = [1, 1]} : vector<2x128xf32> to vector<2x32xf32>
    %572 = arith.mulf %571, %559 : vector<2x32xf32>
    %573 = vector.extract_strided_slice %570 {offsets = [0, 0], sizes = [2, 32], strides = [1, 1]} : vector<2x128xf32> to vector<2x32xf32>
    %574 = vector.extract_strided_slice %570 {offsets = [0, 64], sizes = [2, 32], strides = [1, 1]} : vector<2x128xf32> to vector<2x32xf32>
    %575 = arith.mulf %573, %574 : vector<2x32xf32>
    %576 = arith.addf %572, %575 : vector<2x32xf32>
    %577 = vector.extract_strided_slice %570 {offsets = [0, 96], sizes = [2, 32], strides = [1, 1]} : vector<2x128xf32> to vector<2x32xf32>
    %578 = math.tanh %576 : vector<2x32xf32>
    %579 = arith.mulf %577, %578 : vector<2x32xf32>
    %580 = vector.extract_strided_slice %492 {offsets = [10, 0], sizes = [2, 128], strides = [1, 1]} : vector<16x128xf32> to vector<2x128xf32>
    %581 = arith.truncf %579 : vector<2x32xf32> to vector<2x32xbf16>
    %cst_125 = arith.constant dense<0.000000e+00> : vector<2x128xf32>
    %582 = tpu.matmul %581, %26, %cst_125 {dimension_numbers = #tpu.dot_dimension_numbers<[1], [0], [0], [1], [0, 0, 1, 1], [], []>} : vector<2x32xbf16>, vector<32x128xbf16>, vector<2x128xf32> -> vector<2x128xf32>
    %583 = arith.addf %580, %582 : vector<2x128xf32>
    %584 = arith.mulf %583, %8 : vector<2x128xf32>
    %585 = math.tanh %584 : vector<2x128xf32>
    %586 = arith.mulf %585, %8 : vector<2x128xf32>
    %587 = arith.addf %586, %11 : vector<2x128xf32>
    %588 = vector.extract_strided_slice %587 {offsets = [0, 32], sizes = [2, 32], strides = [1, 1]} : vector<2x128xf32> to vector<2x32xf32>
    %589 = arith.mulf %588, %576 : vector<2x32xf32>
    %590 = vector.extract_strided_slice %587 {offsets = [0, 0], sizes = [2, 32], strides = [1, 1]} : vector<2x128xf32> to vector<2x32xf32>
    %591 = vector.extract_strided_slice %587 {offsets = [0, 64], sizes = [2, 32], strides = [1, 1]} : vector<2x128xf32> to vector<2x32xf32>
    %592 = arith.mulf %590, %591 : vector<2x32xf32>
    %593 = arith.addf %589, %592 : vector<2x32xf32>
    %594 = vector.extract_strided_slice %587 {offsets = [0, 96], sizes = [2, 32], strides = [1, 1]} : vector<2x128xf32> to vector<2x32xf32>
    %595 = math.tanh %593 : vector<2x32xf32>
    %596 = arith.mulf %594, %595 : vector<2x32xf32>
    %597 = vector.extract_strided_slice %492 {offsets = [12, 0], sizes = [2, 128], strides = [1, 1]} : vector<16x128xf32> to vector<2x128xf32>
    %598 = arith.truncf %596 : vector<2x32xf32> to vector<2x32xbf16>
    %cst_126 = arith.constant dense<0.000000e+00> : vector<2x128xf32>
    %599 = tpu.matmul %598, %26, %cst_126 {dimension_numbers = #tpu.dot_dimension_numbers<[1], [0], [0], [1], [0, 0, 1, 1], [], []>} : vector<2x32xbf16>, vector<32x128xbf16>, vector<2x128xf32> -> vector<2x128xf32>
    %600 = arith.addf %597, %599 : vector<2x128xf32>
    %601 = arith.mulf %600, %8 : vector<2x128xf32>
    %602 = math.tanh %601 : vector<2x128xf32>
    %603 = arith.mulf %602, %8 : vector<2x128xf32>
    %604 = arith.addf %603, %11 : vector<2x128xf32>
    %605 = vector.extract_strided_slice %604 {offsets = [0, 32], sizes = [2, 32], strides = [1, 1]} : vector<2x128xf32> to vector<2x32xf32>
    %606 = arith.mulf %605, %593 : vector<2x32xf32>
    %607 = vector.extract_strided_slice %604 {offsets = [0, 0], sizes = [2, 32], strides = [1, 1]} : vector<2x128xf32> to vector<2x32xf32>
    %608 = vector.extract_strided_slice %604 {offsets = [0, 64], sizes = [2, 32], strides = [1, 1]} : vector<2x128xf32> to vector<2x32xf32>
    %609 = arith.mulf %607, %608 : vector<2x32xf32>
    %610 = arith.addf %606, %609 : vector<2x32xf32>
    %611 = vector.extract_strided_slice %604 {offsets = [0, 96], sizes = [2, 32], strides = [1, 1]} : vector<2x128xf32> to vector<2x32xf32>
    %612 = math.tanh %610 : vector<2x32xf32>
    %613 = arith.mulf %611, %612 : vector<2x32xf32>
    %614 = vector.extract_strided_slice %492 {offsets = [14, 0], sizes = [2, 128], strides = [1, 1]} : vector<16x128xf32> to vector<2x128xf32>
    %615 = arith.truncf %613 : vector<2x32xf32> to vector<2x32xbf16>
    %cst_127 = arith.constant dense<0.000000e+00> : vector<2x128xf32>
    %616 = tpu.matmul %615, %26, %cst_127 {dimension_numbers = #tpu.dot_dimension_numbers<[1], [0], [0], [1], [0, 0, 1, 1], [], []>} : vector<2x32xbf16>, vector<32x128xbf16>, vector<2x128xf32> -> vector<2x128xf32>
    %617 = arith.addf %614, %616 : vector<2x128xf32>
    %618 = arith.mulf %617, %8 : vector<2x128xf32>
    %619 = math.tanh %618 : vector<2x128xf32>
    %620 = arith.mulf %619, %8 : vector<2x128xf32>
    %621 = arith.addf %620, %11 : vector<2x128xf32>
    %622 = vector.extract_strided_slice %621 {offsets = [0, 32], sizes = [2, 32], strides = [1, 1]} : vector<2x128xf32> to vector<2x32xf32>
    %623 = arith.mulf %622, %610 : vector<2x32xf32>
    %624 = vector.extract_strided_slice %621 {offsets = [0, 0], sizes = [2, 32], strides = [1, 1]} : vector<2x128xf32> to vector<2x32xf32>
    %625 = vector.extract_strided_slice %621 {offsets = [0, 64], sizes = [2, 32], strides = [1, 1]} : vector<2x128xf32> to vector<2x32xf32>
    %626 = arith.mulf %624, %625 : vector<2x32xf32>
    %627 = arith.addf %623, %626 : vector<2x32xf32>
    %628 = vector.extract_strided_slice %621 {offsets = [0, 96], sizes = [2, 32], strides = [1, 1]} : vector<2x128xf32> to vector<2x32xf32>
    %629 = math.tanh %627 : vector<2x32xf32>
    %630 = arith.mulf %628, %629 : vector<2x32xf32>
    %631 = arith.truncf %630 : vector<2x32xf32> to vector<2x32xbf16>
    %c0_128 = arith.constant 0 : index
    %c0_129 = arith.constant 0 : index
    %632 = vector.load %arg5[%c0_128, %c0_129] : memref<32x1xbf16, #tpu.memory_space<vmem>>, vector<32x1xbf16>
    %cst_130 = arith.constant dense<0.000000e+00> : vector<2x1xf32>
    %633 = tpu.matmul %631, %632, %cst_130 {dimension_numbers = #tpu.dot_dimension_numbers<[1], [0], [0], [1], [0, 0, 1, 1], [], []>} : vector<2x32xbf16>, vector<32x1xbf16>, vector<2x1xf32> -> vector<2x1xf32>
    %c0_131 = arith.constant 0 : index
    %c0_132 = arith.constant 0 : index
    %634 = vector.load %arg6[%c0_131, %c0_132] : memref<1x1xf32, #tpu.memory_space<vmem>>, vector<1x1xf32>
    %635 = vector.broadcast %634 : vector<1x1xf32> to vector<2x1xf32>
    %636 = arith.addf %633, %635 : vector<2x1xf32>
    %c0_133 = arith.constant 0 : index
    %c0_134 = arith.constant 0 : index
    %637 = vector.load %arg7[%c0_133, %c0_134] : memref<2x1xf32, #tpu.memory_space<vmem>>, vector<2x1xf32>
    tpu.vector_store %arg7[%c0_133, %c0_134], %636 {strides = array<i32>} : memref<2x1xf32, #tpu.memory_space<vmem>>, vector<2x1xf32>,
    return
  }
}

</mosaic_0001>

<llo_original>
// kernel: tpu_custom_call.1
$region0: #{tpu_custom_call.1}
  #allocation0 [shape = 'u32[]', space=smem, size = 0x4, offset = 0x4, fixed_abs, tag = 'smem constant byte address 0x4 - core index']
  #allocation1 [shape = 'u32[144,128]{1,0:T(1,128)}', space=vmem, size = 0x12000, scoped, tag = 'internal scratch']
  #allocation2 [shape = 'f32[16,32]{1,0:T(8,128)}', space=vmem, size = 0x2000, scoped, tag = 'scratch operand']
  #allocation3 [shape = 'f32[1,1]{1,0:T(1,128)S(1)}', space=vmem, size = 0x200, scoped, tag = 'scoped memory for tpu_custom_call.1']
  %s0 = inlined_call_operand.vmem [shape: f32[16,2], index: 0, kind: input, shape index: {}]
  %s1 = inlined_call_operand.vmem [shape: bf16[2,128], index: 1, kind: input, shape index: {}]
  %s2 = inlined_call_operand.hbm [shape: bf16[3,32,128], index: 2, kind: input, shape index: {}]
  %s3 = inlined_call_operand.hbm [shape: bf16[4,32,128], index: 3, kind: input, shape index: {}]
  %s4 = inlined_call_operand.vmem [shape: f32[4,1,128], index: 4, kind: input, shape index: {}]
  %s5 = inlined_call_operand.vmem [shape: bf16[32,1], index: 5, kind: input, shape index: {}]
  %s6 = inlined_call_operand.<no memory space> [shape: f32[1,1], index: 6, kind: input, shape index: {}]
  %s7 = inlined_call_operand.vmem [shape: f32[2,1], index: 7, kind: output, shape index: {}]
  %s8 = sld [smem:[#allocation0]]
  $region46: #{tpu_custom_call.1} parent=0
    _
  %s10 = ssub.s32 1, %s8
  %s11 = scalar_select 0, %s10, %s8
  %v12 = vstv %s6
  %13 = vst [vmem:[#allocation3] sm:$0x1] %v12
  $region1: #{tpu_custom_call.1} parent=0
    #allocation4 [shape = 'u8[24576]{0}', space=vmem, size = 0x6000, scoped, tag = 'input window, operand 2, single buffered']
    #allocation5 [shape = 's32[1]{0}', space=sflag, size = 0x4, scoped, tag = 'scoped memory for tpu_custom_call.1']
    #allocation6 [shape = 'u8[32768]{0}', space=vmem, size = 0x8000, scoped, tag = 'input window, operand 3, single buffered']
    #allocation7 [shape = 's32[1]{0}', space=sflag, size = 0x4, scoped, tag = 'scoped memory for tpu_custom_call.1']
    %14 = vsyncpa [#allocation5], 0
    %15 = vsyncpa [#allocation7], 0
    // Predicated region
    $region2: #{tpu_custom_call.1} parent=1 // pred_check
      _
    $region3: #{tpu_custom_call.1} parent=1 // pred_check_branch
      %17 = sbr.rel (0) target = $region5
    $region4: #{tpu_custom_call.1} parent=1 // pred_region
      _
    $region5: #{tpu_custom_call.1} parent=1 // pred_fallthru
      _
    // Predicated region
    $region6: #{tpu_custom_call.1} parent=1 // pred_check
      _
    $region7: #{tpu_custom_call.1} parent=1 // pred_check_branch
      %19 = sbr.rel (0) target = $region9
    $region8: #{tpu_custom_call.1} parent=1 // pred_region
      _
    $region9: #{tpu_custom_call.1} parent=1 // pred_fallthru
      _
    // Predicated region
    $region10: #{tpu_custom_call.1} parent=1 // pred_check
      _
    $region11: #{tpu_custom_call.1} parent=1 // pred_check_branch
      %21 = sbr.rel (0) target = $region13
    $region12: #{tpu_custom_call.1} parent=1 // pred_region
      %s23 = ssub.s32 768, 768
      %24 = vsyncadd [#allocation5], %s23
      %s25 = sshll.u32 [#allocation4], 4
      %s26 = int_to_ptr.vmem [resolvable:$true] %s25
      %31 = dma.hbm_to_vmem [thread:$0]  %s2, 768, %s26, [#allocation5], 64, 64, 4
    $region13: #{tpu_custom_call.1} parent=1 // pred_fallthru
      _
    // Predicated region
    $region14: #{tpu_custom_call.1} parent=1 // pred_check
      _
    $region15: #{tpu_custom_call.1} parent=1 // pred_check_branch
      %33 = sbr.rel (0) target = $region17
    $region16: #{tpu_custom_call.1} parent=1 // pred_region
      %s35 = ssub.s32 1024, 1024
      %36 = vsyncadd [#allocation7], %s35
      %s37 = sshll.u32 [#allocation6], 4
      %s38 = int_to_ptr.vmem [resolvable:$true] %s37
      %43 = dma.hbm_to_vmem [thread:$0]  %s3, 1024, %s38, [#allocation7], 64, 64, 4
    $region17: #{tpu_custom_call.1} parent=1 // pred_fallthru
      _
    // Predicated region
    $region18: #{tpu_custom_call.1} parent=1 // pred_check
      _
    $region19: #{tpu_custom_call.1} parent=1 // pred_check_branch
      %45 = sbr.rel (0) target = $region21
    $region20: #{tpu_custom_call.1} parent=1 // pred_region
      _
    $region21: #{tpu_custom_call.1} parent=1 // pred_fallthru
      _
    // Predicated region
    $region22: #{tpu_custom_call.1} parent=1 // pred_check
      _
    $region23: #{tpu_custom_call.1} parent=1 // pred_check_branch
      %47 = sbr.rel (0) target = $region25
    $region24: #{tpu_custom_call.1} parent=1 // pred_region
      _
    $region25: #{tpu_custom_call.1} parent=1 // pred_fallthru
      _
    // Predicated region
    $region26: #{tpu_custom_call.1} parent=1 // pred_check
      _
    $region27: #{tpu_custom_call.1} parent=1 // pred_check_branch
      %49 = sbr.rel (0) target = $region29
    $region28: #{tpu_custom_call.1} parent=1 // pred_region
      _
    $region29: #{tpu_custom_call.1} parent=1 // pred_fallthru
      _
    // Predicated region
    $region30: #{tpu_custom_call.1} parent=1 // pred_check
      _
    $region31: #{tpu_custom_call.1} parent=1 // pred_check_branch
      %51 = sbr.rel (0) target = $region33
    $region32: #{tpu_custom_call.1} parent=1 // pred_region
      %52 = dma.done [#allocation5], 768
    $region33: #{tpu_custom_call.1} parent=1 // pred_fallthru
      _
    // Predicated region
    $region34: #{tpu_custom_call.1} parent=1 // pred_check
      _
    $region35: #{tpu_custom_call.1} parent=1 // pred_check_branch
      %54 = sbr.rel (0) target = $region37
    $region36: #{tpu_custom_call.1} parent=1 // pred_region
      %55 = dma.done [#allocation7], 1024
    $region37: #{tpu_custom_call.1} parent=1 // pred_fallthru
      _
    %v57 = vlaneseq
    %v58 = vand.u32 %v57, 127
    %vm59 = vcmp.ge.s32.totalorder %v58, 64
    %vm60 = vcmp.lt.s32.totalorder %v58, 96
    %vm61 = vmand %vm59, %vm60
    %v62 = vsel %vm61, 1.0, 0.5
    %v63 = vsel %vm61, 0.0, 0.5
    %v64 = vld [vmem:[%s1] sm:$0x1]
    %v65 = vld [vmem:[#allocation4] sm:$0xf]
    %v66 = vld [vmem:[#allocation4 + $0x4] sm:$0xf]
    %v67 = vld [vmem:[#allocation4 + $0x8] sm:$0xf]
    %v68 = vld [vmem:[#allocation4 + $0xc] sm:$0xf]
    %s69 = scalar_lea.vmem [#allocation4], 16
    %v70 = vld [vmem:[%s69] sm:$0xf]
    %v71 = vld [vmem:[%s69 + $0x4] sm:$0xf]
    %v72 = vld [vmem:[%s69 + $0x8] sm:$0xf]
    %v73 = vld [vmem:[%s69 + $0xc] sm:$0xf]
    %s74 = scalar_lea.vmem [#allocation4], 32
    %v75 = vld [vmem:[%s74] sm:$0xf]
    %v76 = vld [vmem:[%s74 + $0x4] sm:$0xf]
    %v77 = vld [vmem:[%s74 + $0x8] sm:$0xf]
    %v78 = vld [vmem:[%s74 + $0xc] sm:$0xf]
    %v79 = vld [vmem:[#allocation6] sm:$0xf]
    %v80 = vld [vmem:[#allocation6 + $0x4] sm:$0xf]
    %v81 = vld [vmem:[#allocation6 + $0x8] sm:$0xf]
    %v82 = vld [vmem:[#allocation6 + $0xc] sm:$0xf]
    %s83 = scalar_lea.vmem [#allocation6], 16
    %v84 = vld [vmem:[%s83] sm:$0xf]
    %v85 = vld [vmem:[%s83 + $0x4] sm:$0xf]
    %v86 = vld [vmem:[%s83 + $0x8] sm:$0xf]
    %v87 = vld [vmem:[%s83 + $0xc] sm:$0xf]
    %s88 = scalar_lea.vmem [#allocation6], 32
    %v89 = vld [vmem:[%s88] sm:$0xf]
    %v90 = vld [vmem:[%s88 + $0x4] sm:$0xf]
    %v91 = vld [vmem:[%s88 + $0x8] sm:$0xf]
    %v92 = vld [vmem:[%s88 + $0xc] sm:$0xf]
    %s93 = scalar_lea.vmem [#allocation6], 48
    %v94 = vld [vmem:[%s93] sm:$0xf]
    %v95 = vld [vmem:[%s93 + $0x4] sm:$0xf]
    %v96 = vld [vmem:[%s93 + $0x8] sm:$0xf]
    %v97 = vld [vmem:[%s93 + $0xc] sm:$0xf]
    %v98 = vld [vmem:[%s4] sm:$0x1]
    %s99 = scalar_lea.vmem %s4, 1
    %v100 = vld [vmem:[%s99] sm:$0x1]
    %s101 = scalar_lea.vmem %s4, 2
    %v102 = vld [vmem:[%s101] sm:$0x1]
    %s103 = scalar_lea.vmem %s4, 3
    %v104 = vld [vmem:[%s103] sm:$0x1]
    %v105 = vld [vmem:[%s0] sm:$0xff]
    %v106 = vld [vmem:[%s0 + $0x8] sm:$0xff]
    %v107 = vpack.c.bf16 %v106, %v105
    %v109 = vlaneseq
    %v110 = vshrl.u32 %v109, 7
    %v111 = vsub.s32 0, %v110
    %v112 = vrot.slane %v98, %v111
    %vm114 = vcmask 15360
    %v116 = vsel %vm114, %v107, 0
    %vm118 = vcmask 1040384
    %v120 = vsel %vm118, %v64, 0
    %122 = vmatprep.subr.bf16.mxu0 0
    %123 = vmatpush1.bf16.msra.mxu0 %v120
    %124 = vmatprep.subr.bf16.mxu0 0
    %125 = vmatpush1.bf16.msra.mxu0 0
    %126 = vmatprep.subr.bf16.mxu0 0
    %127 = vmatpush1.bf16.msra.mxu0 0
    %128 = vmatprep.subr.bf16.mxu0 0
    %129 = vmatpush1.bf16.msra.mxu0 0
    %130 = vmatprep.subr.bf16.mxu0 0
    %131 = vmatpush1.bf16.msra.mxu0 0
    %132 = vmatprep.subr.bf16.mxu0 0
    %133 = vmatpush1.bf16.msra.mxu0 0
    %134 = vmatprep.subr.bf16.mxu0 0
    %135 = vmatpush1.bf16.msra.mxu0 0
    %136 = vmatprep.subr.bf16.mxu0 0
    %137 = vmatpush1.bf16.msra.mxu0 0
    %138 = vmatprep.subr.bf16.mxu0 0
    %139 = vmatpush1.bf16.msra.mxu0 0
    %140 = vmatprep.subr.bf16.mxu0 0
    %141 = vmatpush1.bf16.msra.mxu0 0
    %142 = vmatprep.subr.bf16.mxu0 0
    %143 = vmatpush1.bf16.msra.mxu0 0
    %144 = vmatprep.subr.bf16.mxu0 0
    %145 = vmatpush1.bf16.msra.mxu0 0
    %146 = vmatprep.subr.bf16.mxu0 0
    %147 = vmatpush1.bf16.msra.mxu0 0
    %148 = vmatprep.subr.bf16.mxu0 0
    %149 = vmatpush1.bf16.msra.mxu0 0
    %150 = vmatprep.subr.bf16.mxu0 0
    %151 = vmatpush1.bf16.msra.mxu0 0
    %152 = vmatprep.subr.bf16.mxu0 0
    %153 = vmatpush1.bf16.msra.mxu0 0
    %154 = vmatprep.mubr.bf16.mxu0 0
    %155 = vmatmul.mubr.bf16.gmra.mrb[0].mxu0 %v116
    %v156 = vpop.f32.mrb[0].mxu0
    %v157 = vadd.f32 %v112, %v156
    %v158 = vpop.f32.mrb[0].mxu0
    %v159 = vpop.f32.mrb[0].mxu0
    %v160 = vadd.f32 %v112, %v159
    %v161 = vpop.f32.mrb[0].mxu0
    %162 = vdwg.mxu0
    %v167 = vunpack.c.l.b16 %v79
    %v168 = vunpack.c.l.b16 %v80
    %v169 = vunpack.c.l.b16 %v81
    %v170 = vunpack.c.l.b16 %v82
    %v171 = vpack.c.b16 %v168, %v167
    %v172 = vpack.c.b16 %v170, %v169
    %vm175 = vcmask 261120
    %v177 = vsel %vm175, 0, 0
    %179 = vmatprep.subr.bf16.mxu0 0
    %180 = vmatpush1.bf16.msra.mxu0 %v171
    %181 = vmatprep.subr.bf16.mxu0 0
    %182 = vmatpush1.bf16.msra.mxu0 %v172
    %183 = vmatprep.subr.bf16.mxu0 0
    %184 = vmatpush1.bf16.msra.mxu0 0
    %185 = vmatprep.subr.bf16.mxu0 0
    %186 = vmatpush1.bf16.msra.mxu0 0
    %187 = vmatprep.subr.bf16.mxu0 0
    %188 = vmatpush1.bf16.msra.mxu0 0
    %189 = vmatprep.subr.bf16.mxu0 0
    %190 = vmatpush1.bf16.msra.mxu0 0
    %191 = vmatprep.subr.bf16.mxu0 0
    %192 = vmatpush1.bf16.msra.mxu0 0
    %193 = vmatprep.subr.bf16.mxu0 0
    %194 = vmatpush1.bf16.msra.mxu0 0
    %195 = vmatprep.subr.bf16.mxu0 0
    %196 = vmatpush1.bf16.msra.mxu0 0
    %197 = vmatprep.subr.bf16.mxu0 0
    %198 = vmatpush1.bf16.msra.mxu0 0
    %199 = vmatprep.subr.bf16.mxu0 0
    %200 = vmatpush1.bf16.msra.mxu0 0
    %201 = vmatprep.subr.bf16.mxu0 0
    %202 = vmatpush1.bf16.msra.mxu0 0
    %203 = vmatprep.subr.bf16.mxu0 0
    %204 = vmatpush1.bf16.msra.mxu0 0
    %205 = vmatprep.subr.bf16.mxu0 0
    %206 = vmatpush1.bf16.msra.mxu0 0
    %207 = vmatprep.subr.bf16.mxu0 0
    %208 = vmatpush1.bf16.msra.mxu0 0
    %209 = vmatprep.subr.bf16.mxu0 0
    %210 = vmatpush1.bf16.msra.mxu0 0
    %211 = vmatprep.mubr.bf16.mxu0 0
    %212 = vmatmul.mubr.bf16.gmra.mrb[0].mxu0 %v177
    %v213 = vpop.f32.mrb[0].mxu0
    %v214 = vadd.f32 0.0, %v213
    %v215 = vpop.f32.mrb[0].mxu0
    %v216 = vpop.f32.mrb[0].mxu0
    %v217 = vpop.f32.mrb[0].mxu0
    %218 = vdwg.mxu0
    %v219 = vadd.f32 %v157, %v214
    %v220 = vmul.f32 %v219, %v62
    %v221 = vtanh.pop %v220
    %v222 = vmul.f32 %v221, %v62
    %v223 = vadd.f32 %v222, %v63
    %v224 = vmul.f32 %v223, 0.0
    %226 = vrot.lane.b32.xlu0 %v223, 64
    %v227 = vpop.permute.xlu0 %226
    %v229 = vmul.f32 %v223, %v227
    %231 = vrot.lane.b32.xlu0 %v229, 32
    %v232 = vpop.permute.xlu0 %231
    %v234 = vadd.f32 %v224, %v232
    %v235 = vtanh.pop %v234
    %237 = vrot.lane.b32.xlu0 %v235, 64
    %v238 = vpop.permute.xlu0 %237
    %v240 = vmul.f32 %v223, %v238
    %242 = vrot.lane.b32.xlu0 %v240, 32
    %v243 = vpop.permute.xlu0 %242
    %vm245 = vcmask 254976
    %246 = vst.msk [vmem:[#allocation2] sm:$0x3] %vm245, %v243
    %v247 = vpack.c.bf16 %v240, %v240
    %249 = vrot.lane.b32.xlu0 %v247, 32
    %v250 = vpop.permute.xlu0 %249
    %v252 = vsel %vm175, %v250, 0
    %254 = vmatprep.subr.bf16.mxu0 0
    %255 = vmatpush1.bf16.msra.mxu0 %v171
    %256 = vmatprep.subr.bf16.mxu0 0
    %257 = vmatpush1.bf16.msra.mxu0 %v172
    %258 = vmatprep.subr.bf16.mxu0 0
    %259 = vmatpush1.bf16.msra.mxu0 0
    %260 = vmatprep.subr.bf16.mxu0 0
    %261 = vmatpush1.bf16.msra.mxu0 0
    %262 = vmatprep.subr.bf16.mxu0 0
    %263 = vmatpush1.bf16.msra.mxu0 0
    %264 = vmatprep.subr.bf16.mxu0 0
    %265 = vmatpush1.bf16.msra.mxu0 0
    %266 = vmatprep.subr.bf16.mxu0 0
    %267 = vmatpush1.bf16.msra.mxu0 0
    %268 = vmatprep.subr.bf16.mxu0 0
    %269 = vmatpush1.bf16.msra.mxu0 0
    %270 = vmatprep.subr.bf16.mxu0 0
    %271 = vmatpush1.bf16.msra.mxu0 0
    %272 = vmatprep.subr.bf16.mxu0 0
    %273 = vmatpush1.bf16.msra.mxu0 0
    %274 = vmatprep.subr.bf16.mxu0 0
    %275 = vmatpush1.bf16.msra.mxu0 0
    %276 = vmatprep.subr.bf16.mxu0 0
    %277 = vmatpush1.bf16.msra.mxu0 0
    %278 = vmatprep.subr.bf16.mxu0 0
    %279 = vmatpush1.bf16.msra.mxu0 0
    %280 = vmatprep.subr.bf16.mxu0 0
    %281 = vmatpush1.bf16.msra.mxu0 0
    %282 = vmatprep.subr.bf16.mxu0 0
    %283 = vmatpush1.bf16.msra.mxu0 0
    %284 = vmatprep.subr.bf16.mxu0 0
    %285 = vmatpush1.bf16.msra.mxu0 0
    %286 = vmatprep.mubr.bf16.mxu0 0
    %287 = vmatmul.mubr.bf16.gmra.mrb[0].mxu0 %v252
    %v288 = vpop.f32.mrb[0].mxu0
    %v289 = vadd.f32 0.0, %v288
    %v290 = vpop.f32.mrb[0].mxu0
    %v291 = vpop.f32.mrb[0].mxu0
    %v292 = vpop.f32.mrb[0].mxu0
    %293 = vdwg.mxu0
    %v295 = vrot.slane %v289, 6
    %v297 = vadd.f32 %v157, %v295
    %v298 = vmul.f32 %v297, %v62
    %v299 = vtanh.pop %v298
    %v300 = vmul.f32 %v299, %v62
    %v301 = vadd.f32 %v300, %v63
    %v303 = vrot.slane %v234, 6
    %v305 = vmul.f32 %v301, %v303
    %307 = vrot.lane.b32.xlu0 %v301, 64
    %v308 = vpop.permute.xlu0 %307
    %v310 = vmul.f32 %v301, %v308
    %312 = vrot.lane.b32.xlu0 %v310, 32
    %v313 = vpop.permute.xlu0 %312
    %v315 = vadd.f32 %v305, %v313
    %v316 = vtanh.pop %v315
    %318 = vrot.lane.b32.xlu0 %v316, 64
    %v319 = vpop.permute.xlu0 %318
    %v321 = vmul.f32 %v301, %v319
    %323 = vrot.lane.b32.xlu0 %v321, 32
    %v324 = vpop.permute.xlu0 %323
    %vm326 = vcmask 257026
    %327 = vst.msk [vmem:[#allocation2] sm:$0xc] %vm326, %v324
    %v328 = vpack.c.bf16 %v321, %v321
    %v330 = vrot.slane %v328, 1
    %331 = vrot.lane.b32.xlu0 %v330, 32
    %v332 = vpop.permute.xlu0 %331
    %v334 = vsel %vm175, %v332, 0
    %336 = vmatprep.subr.bf16.mxu0 0
    %337 = vmatpush1.bf16.msra.mxu0 %v171
    %338 = vmatprep.subr.bf16.mxu0 0
    %339 = vmatpush1.bf16.msra.mxu0 %v172
    %340 = vmatprep.subr.bf16.mxu0 0
    %341 = vmatpush1.bf16.msra.mxu0 0
    %342 = vmatprep.subr.bf16.mxu0 0
    %343 = vmatpush1.bf16.msra.mxu0 0
    %344 = vmatprep.subr.bf16.mxu0 0
    %345 = vmatpush1.bf16.msra.mxu0 0
    %346 = vmatprep.subr.bf16.mxu0 0
    %347 = vmatpush1.bf16.msra.mxu0 0
    %348 = vmatprep.subr.bf16.mxu0 0
    %349 = vmatpush1.bf16.msra.mxu0 0
    %350 = vmatprep.subr.bf16.mxu0 0
    %351 = vmatpush1.bf16.msra.mxu0 0
    %352 = vmatprep.subr.bf16.mxu0 0
    %353 = vmatpush1.bf16.msra.mxu0 0
    %354 = vmatprep.subr.bf16.mxu0 0
    %355 = vmatpush1.bf16.msra.mxu0 0
    %356 = vmatprep.subr.bf16.mxu0 0
    %357 = vmatpush1.bf16.msra.mxu0 0
    %358 = vmatprep.subr.bf16.mxu0 0
    %359 = vmatpush1.bf16.msra.mxu0 0
    %360 = vmatprep.subr.bf16.mxu0 0
    %361 = vmatpush1.bf16.msra.mxu0 0
    %362 = vmatprep.subr.bf16.mxu0 0
    %363 = vmatpush1.bf16.msra.mxu0 0
    %364 = vmatprep.subr.bf16.mxu0 0
    %365 = vmatpush1.bf16.msra.mxu0 0
    %366 = vmatprep.subr.bf16.mxu0 0
    %367 = vmatpush1.bf16.msra.mxu0 0
    %368 = vmatprep.mubr.bf16.mxu0 0
    %369 = vmatmul.mubr.bf16.gmra.mrb[0].mxu0 %v334
    %v370 = vpop.f32.mrb[0].mxu0
    %v371 = vadd.f32 0.0, %v370
    %v372 = vpop.f32.mrb[0].mxu0
    %v373 = vpop.f32.mrb[0].mxu0
    %v374 = vpop.f32.mrb[0].mxu0
    %375 = vdwg.mxu0
    %v377 = vrot.slane %v371, 4
    %v379 = vadd.f32 %v157, %v377
    %v380 = vmul.f32 %v379, %v62
    %v381 = vtanh.pop %v380
    %v382 = vmul.f32 %v381, %v62
    %v383 = vadd.f32 %v382, %v63
    %v385 = vrot.slane %v315, 6
    %v387 = vmul.f32 %v383, %v385
    %389 = vrot.lane.b32.xlu0 %v383, 64
    %v390 = vpop.permute.xlu0 %389
    %v392 = vmul.f32 %v383, %v390
    %394 = vrot.lane.b32.xlu0 %v392, 32
    %v395 = vpop.permute.xlu0 %394
    %v397 = vadd.f32 %v387, %v395
    %v398 = vtanh.pop %v397
    %400 = vrot.lane.b32.xlu0 %v398, 64
    %v401 = vpop.permute.xlu0 %400
    %v403 = vmul.f32 %v383, %v401
    %405 = vrot.lane.b32.xlu0 %v403, 32
    %v406 = vpop.permute.xlu0 %405
    %vm408 = vcmask 259076
    %409 = vst.msk [vmem:[#allocation2] sm:$0x30] %vm408, %v406
    %v410 = vpack.c.bf16 %v403, %v403
    %v412 = vrot.slane %v410, 2
    %413 = vrot.lane.b32.xlu0 %v412, 32
    %v414 = vpop.permute.xlu0 %413
    %v416 = vsel %vm175, %v414, 0
    %418 = vmatprep.subr.bf16.mxu0 0
    %419 = vmatpush1.bf16.msra.mxu0 %v171
    %420 = vmatprep.subr.bf16.mxu0 0
    %421 = vmatpush1.bf16.msra.mxu0 %v172
    %422 = vmatprep.subr.bf16.mxu0 0
    %423 = vmatpush1.bf16.msra.mxu0 0
    %424 = vmatprep.subr.bf16.mxu0 0
    %425 = vmatpush1.bf16.msra.mxu0 0
    %426 = vmatprep.subr.bf16.mxu0 0
    %427 = vmatpush1.bf16.msra.mxu0 0
    %428 = vmatprep.subr.bf16.mxu0 0
    %429 = vmatpush1.bf16.msra.mxu0 0
    %430 = vmatprep.subr.bf16.mxu0 0
    %431 = vmatpush1.bf16.msra.mxu0 0
    %432 = vmatprep.subr.bf16.mxu0 0
    %433 = vmatpush1.bf16.msra.mxu0 0
    %434 = vmatprep.subr.bf16.mxu0 0
    %435 = vmatpush1.bf16.msra.mxu0 0
    %436 = vmatprep.subr.bf16.mxu0 0
    %437 = vmatpush1.bf16.msra.mxu0 0
    %438 = vmatprep.subr.bf16.mxu0 0
    %439 = vmatpush1.bf16.msra.mxu0 0
    %440 = vmatprep.subr.bf16.mxu0 0
    %441 = vmatpush1.bf16.msra.mxu0 0
    %442 = vmatprep.subr.bf16.mxu0 0
    %443 = vmatpush1.bf16.msra.mxu0 0
    %444 = vmatprep.subr.bf16.mxu0 0
    %445 = vmatpush1.bf16.msra.mxu0 0
    %446 = vmatprep.subr.bf16.mxu0 0
    %447 = vmatpush1.bf16.msra.mxu0 0
    %448 = vmatprep.subr.bf16.mxu0 0
    %449 = vmatpush1.bf16.msra.mxu0 0
    %450 = vmatprep.mubr.bf16.mxu0 0
    %451 = vmatmul.mubr.bf16.gmra.mrb[0].mxu0 %v416
    %v452 = vpop.f32.mrb[0].mxu0
    %v453 = vadd.f32 0.0, %v452
    %v454 = vpop.f32.mrb[0].mxu0
    %v455 = vpop.f32.mrb[0].mxu0
    %v456 = vpop.f32.mrb[0].mxu0
    %457 = vdwg.mxu0
    %v459 = vrot.slane %v453, 2
    %v461 = vadd.f32 %v157, %v459
    %v462 = vmul.f32 %v461, %v62
    %v463 = vtanh.pop %v462
    %v464 = vmul.f32 %v463, %v62
    %v465 = vadd.f32 %v464, %v63
    %v467 = vrot.slane %v397, 6
    %v469 = vmul.f32 %v465, %v467
    %471 = vrot.lane.b32.xlu0 %v465, 64
    %v472 = vpop.permute.xlu0 %471
    %v474 = vmul.f32 %v465, %v472
    %476 = vrot.lane.b32.xlu0 %v474, 32
    %v477 = vpop.permute.xlu0 %476
    %v479 = vadd.f32 %v469, %v477
    %v480 = vtanh.pop %v479
    %482 = vrot.lane.b32.xlu0 %v480, 64
    %v483 = vpop.permute.xlu0 %482
    %v485 = vmul.f32 %v465, %v483
    %487 = vrot.lane.b32.xlu0 %v485, 32
    %v488 = vpop.permute.xlu0 %487
    %vm490 = vcmask 261126
    %491 = vst.msk [vmem:[#allocation2] sm:$0xc0] %vm490, %v488
    %v492 = vpack.c.bf16 %v485, %v485
    %v494 = vrot.slane %v492, 3
    %495 = vrot.lane.b32.xlu0 %v494, 32
    %v496 = vpop.permute.xlu0 %495
    %v498 = vsel %vm175, %v496, 0
    %500 = vmatprep.subr.bf16.mxu0 0
    %501 = vmatpush1.bf16.msra.mxu0 %v171
    %502 = vmatprep.subr.bf16.mxu0 0
    %503 = vmatpush1.bf16.msra.mxu0 %v172
    %504 = vmatprep.subr.bf16.mxu0 0
    %505 = vmatpush1.bf16.msra.mxu0 0
    %506 = vmatprep.subr.bf16.mxu0 0
    %507 = vmatpush1.bf16.msra.mxu0 0
    %508 = vmatprep.subr.bf16.mxu0 0
    %509 = vmatpush1.bf16.msra.mxu0 0
    %510 = vmatprep.subr.bf16.mxu0 0
    %511 = vmatpush1.bf16.msra.mxu0 0
    %512 = vmatprep.subr.bf16.mxu0 0
    %513 = vmatpush1.bf16.msra.mxu0 0
    %514 = vmatprep.subr.bf16.mxu0 0
    %515 = vmatpush1.bf16.msra.mxu0 0
    %516 = vmatprep.subr.bf16.mxu0 0
    %517 = vmatpush1.bf16.msra.mxu0 0
    %518 = vmatprep.subr.bf16.mxu0 0
    %519 = vmatpush1.bf16.msra.mxu0 0
    %520 = vmatprep.subr.bf16.mxu0 0
    %521 = vmatpush1.bf16.msra.mxu0 0
    %522 = vmatprep.subr.bf16.mxu0 0
    %523 = vmatpush1.bf16.msra.mxu0 0
    %524 = vmatprep.subr.bf16.mxu0 0
    %525 = vmatpush1.bf16.msra.mxu0 0
    %526 = vmatprep.subr.bf16.mxu0 0
    %527 = vmatpush1.bf16.msra.mxu0 0
    %528 = vmatprep.subr.bf16.mxu0 0
    %529 = vmatpush1.bf16.msra.mxu0 0
    %530 = vmatprep.subr.bf16.mxu0 0
    %531 = vmatpush1.bf16.msra.mxu0 0
    %532 = vmatprep.mubr.bf16.mxu0 0
    %533 = vmatmul.mubr.bf16.gmra.mrb[0].mxu0 %v498
    %v534 = vpop.f32.mrb[0].mxu0
    %v535 = vadd.f32 0.0, %v534
    %v536 = vpop.f32.mrb[0].mxu0
    %v537 = vpop.f32.mrb[0].mxu0
    %v538 = vpop.f32.mrb[0].mxu0
    %539 = vdwg.mxu0
    %v540 = vadd.f32 %v160, %v535
    %v541 = vmul.f32 %v540, %v62
    %v542 = vtanh.pop %v541
    %v543 = vmul.f32 %v542, %v62
    %v544 = vadd.f32 %v543, %v63
    %v546 = vrot.slane %v479, 6
    %v548 = vmul.f32 %v544, %v546
    %550 = vrot.lane.b32.xlu0 %v544, 64
    %v551 = vpop.permute.xlu0 %550
    %v553 = vmul.f32 %v544, %v551
    %555 = vrot.lane.b32.xlu0 %v553, 32
    %v556 = vpop.permute.xlu0 %555
    %v558 = vadd.f32 %v548, %v556
    %v559 = vtanh.pop %v558
    %561 = vrot.lane.b32.xlu0 %v559, 64
    %v562 = vpop.permute.xlu0 %561
    %v564 = vmul.f32 %v544, %v562
    %566 = vrot.lane.b32.xlu0 %v564, 32
    %v567 = vpop.permute.xlu0 %566
    %569 = vst.msk [vmem:[#allocation2 + $0x8] sm:$0x3] %vm245, %v567
    %v570 = vpack.c.bf16 %v564, %v564
    %572 = vrot.lane.b32.xlu0 %v570, 32
    %v573 = vpop.permute.xlu0 %572
    %v575 = vsel %vm175, %v573, 0
    %577 = vmatprep.subr.bf16.mxu0 0
    %578 = vmatpush1.bf16.msra.mxu0 %v171
    %579 = vmatprep.subr.bf16.mxu0 0
    %580 = vmatpush1.bf16.msra.mxu0 %v172
    %581 = vmatprep.subr.bf16.mxu0 0
    %582 = vmatpush1.bf16.msra.mxu0 0
    %583 = vmatprep.subr.bf16.mxu0 0
    %584 = vmatpush1.bf16.msra.mxu0 0
    %585 = vmatprep.subr.bf16.mxu0 0
    %586 = vmatpush1.bf16.msra.mxu0 0
    %587 = vmatprep.subr.bf16.mxu0 0
    %588 = vmatpush1.bf16.msra.mxu0 0
    %589 = vmatprep.subr.bf16.mxu0 0
    %590 = vmatpush1.bf16.msra.mxu0 0
    %591 = vmatprep.subr.bf16.mxu0 0
    %592 = vmatpush1.bf16.msra.mxu0 0
    %593 = vmatprep.subr.bf16.mxu0 0
    %594 = vmatpush1.bf16.msra.mxu0 0
    %595 = vmatprep.subr.bf16.mxu0 0
    %596 = vmatpush1.bf16.msra.mxu0 0
    %597 = vmatprep.subr.bf16.mxu0 0
    %598 = vmatpush1.bf16.msra.mxu0 0
    %599 = vmatprep.subr.bf16.mxu0 0
    %600 = vmatpush1.bf16.msra.mxu0 0
    %601 = vmatprep.subr.bf16.mxu0 0
    %602 = vmatpush1.bf16.msra.mxu0 0
    %603 = vmatprep.subr.bf16.mxu0 0
    %604 = vmatpush1.bf16.msra.mxu0 0
    %605 = vmatprep.subr.bf16.mxu0 0
    %606 = vmatpush1.bf16.msra.mxu0 0
    %607 = vmatprep.subr.bf16.mxu0 0
    %608 = vmatpush1.bf16.msra.mxu0 0
    %609 = vmatprep.mubr.bf16.mxu0 0
    %610 = vmatmul.mubr.bf16.gmra.mrb[0].mxu0 %v575
    %v611 = vpop.f32.mrb[0].mxu0
    %v612 = vadd.f32 0.0, %v611
    %v613 = vpop.f32.mrb[0].mxu0
    %v614 = vpop.f32.mrb[0].mxu0
    %v615 = vpop.f32.mrb[0].mxu0
    %616 = vdwg.mxu0
    %v618 = vrot.slane %v612, 6
    %v620 = vadd.f32 %v160, %v618
    %v621 = vmul.f32 %v620, %v62
    %v622 = vtanh.pop %v621
    %v623 = vmul.f32 %v622, %v62
    %v624 = vadd.f32 %v623, %v63
    %v626 = vrot.slane %v558, 6
    %v628 = vmul.f32 %v624, %v626
    %630 = vrot.lane.b32.xlu0 %v624, 64
    %v631 = vpop.permute.xlu0 %630
    %v633 = vmul.f32 %v624, %v631
    %635 = vrot.lane.b32.xlu0 %v633, 32
    %v636 = vpop.permute.xlu0 %635
    %v638 = vadd.f32 %v628, %v636
    %v639 = vtanh.pop %v638
    %641 = vrot.lane.b32.xlu0 %v639, 64
    %v642 = vpop.permute.xlu0 %641
    %v644 = vmul.f32 %v624, %v642
    %646 = vrot.lane.b32.xlu0 %v644, 32
    %v647 = vpop.permute.xlu0 %646
    %649 = vst.msk [vmem:[#allocation2 + $0x8] sm:$0xc] %vm326, %v647
    %v650 = vpack.c.bf16 %v644, %v644
    %v652 = vrot.slane %v650, 1
    %653 = vrot.lane.b32.xlu0 %v652, 32
    %v654 = vpop.permute.xlu0 %653
    %v656 = vsel %vm175, %v654, 0
    %658 = vmatprep.subr.bf16.mxu0 0
    %659 = vmatpush1.bf16.msra.mxu0 %v171
    %660 = vmatprep.subr.bf16.mxu0 0
    %661 = vmatpush1.bf16.msra.mxu0 %v172
    %662 = vmatprep.subr.bf16.mxu0 0
    %663 = vmatpush1.bf16.msra.mxu0 0
    %664 = vmatprep.subr.bf16.mxu0 0
    %665 = vmatpush1.bf16.msra.mxu0 0
    %666 = vmatprep.subr.bf16.mxu0 0
    %667 = vmatpush1.bf16.msra.mxu0 0
    %668 = vmatprep.subr.bf16.mxu0 0
    %669 = vmatpush1.bf16.msra.mxu0 0
    %670 = vmatprep.subr.bf16.mxu0 0
    %671 = vmatpush1.bf16.msra.mxu0 0
    %672 = vmatprep.subr.bf16.mxu0 0
    %673 = vmatpush1.bf16.msra.mxu0 0
    %674 = vmatprep.subr.bf16.mxu0 0
    %675 = vmatpush1.bf16.msra.mxu0 0
    %676 = vmatprep.subr.bf16.mxu0 0
    %677 = vmatpush1.bf16.msra.mxu0 0
    %678 = vmatprep.subr.bf16.mxu0 0
    %679 = vmatpush1.bf16.msra.mxu0 0
    %680 = vmatprep.subr.bf16.mxu0 0
    %681 = vmatpush1.bf16.msra.mxu0 0
    %682 = vmatprep.subr.bf16.mxu0 0
    %683 = vmatpush1.bf16.msra.mxu0 0
    %684 = vmatprep.subr.bf16.mxu0 0
    %685 = vmatpush1.bf16.msra.mxu0 0
    %686 = vmatprep.subr.bf16.mxu0 0
    %687 = vmatpush1.bf16.msra.mxu0 0
    %688 = vmatprep.subr.bf16.mxu0 0
    %689 = vmatpush1.bf16.msra.mxu0 0
    %690 = vmatprep.mubr.bf16.mxu0 0
    %691 = vmatmul.mubr.bf16.gmra.mrb[0].mxu0 %v656
    %v692 = vpop.f32.mrb[0].mxu0
    %v693 = vadd.f32 0.0, %v692
    %v694 = vpop.f32.mrb[0].mxu0
    %v695 = vpop.f32.mrb[0].mxu0
    %v696 = vpop.f32.mrb[0].mxu0
    %697 = vdwg.mxu0
    %v699 = vrot.slane %v693, 4
    %v701 = vadd.f32 %v160, %v699
    %v702 = vmul.f32 %v701, %v62
    %v703 = vtanh.pop %v702
    %v704 = vmul.f32 %v703, %v62
    %v705 = vadd.f32 %v704, %v63
    %v707 = vrot.slane %v638, 6
    %v709 = vmul.f32 %v705, %v707
    %711 = vrot.lane.b32.xlu0 %v705, 64
    %v712 = vpop.permute.xlu0 %711
    %v714 = vmul.f32 %v705, %v712
    %716 = vrot.lane.b32.xlu0 %v714, 32
    %v717 = vpop.permute.xlu0 %716
    %v719 = vadd.f32 %v709, %v717
    %v720 = vtanh.pop %v719
    %722 = vrot.lane.b32.xlu0 %v720, 64
    %v723 = vpop.permute.xlu0 %722
    %v725 = vmul.f32 %v705, %v723
    %727 = vrot.lane.b32.xlu0 %v725, 32
    %v728 = vpop.permute.xlu0 %727
    %730 = vst.msk [vmem:[#allocation2 + $0x8] sm:$0x30] %vm408, %v728
    %v731 = vpack.c.bf16 %v725, %v725
    %v733 = vrot.slane %v731, 2
    %734 = vrot.lane.b32.xlu0 %v733, 32
    %v735 = vpop.permute.xlu0 %734
    %v737 = vsel %vm175, %v735, 0
    %739 = vmatprep.subr.bf16.mxu0 0
    %740 = vmatpush1.bf16.msra.mxu0 %v171
    %741 = vmatprep.subr.bf16.mxu0 0
    %742 = vmatpush1.bf16.msra.mxu0 %v172
    %743 = vmatprep.subr.bf16.mxu0 0
    %744 = vmatpush1.bf16.msra.mxu0 0
    %745 = vmatprep.subr.bf16.mxu0 0
    %746 = vmatpush1.bf16.msra.mxu0 0
    %747 = vmatprep.subr.bf16.mxu0 0
    %748 = vmatpush1.bf16.msra.mxu0 0
    %749 = vmatprep.subr.bf16.mxu0 0
    %750 = vmatpush1.bf16.msra.mxu0 0
    %751 = vmatprep.subr.bf16.mxu0 0
    %752 = vmatpush1.bf16.msra.mxu0 0
    %753 = vmatprep.subr.bf16.mxu0 0
    %754 = vmatpush1.bf16.msra.mxu0 0
    %755 = vmatprep.subr.bf16.mxu0 0
    %756 = vmatpush1.bf16.msra.mxu0 0
    %757 = vmatprep.subr.bf16.mxu0 0
    %758 = vmatpush1.bf16.msra.mxu0 0
    %759 = vmatprep.subr.bf16.mxu0 0
    %760 = vmatpush1.bf16.msra.mxu0 0
    %761 = vmatprep.subr.bf16.mxu0 0
    %762 = vmatpush1.bf16.msra.mxu0 0
    %763 = vmatprep.subr.bf16.mxu0 0
    %764 = vmatpush1.bf16.msra.mxu0 0
    %765 = vmatprep.subr.bf16.mxu0 0
    %766 = vmatpush1.bf16.msra.mxu0 0
    %767 = vmatprep.subr.bf16.mxu0 0
    %768 = vmatpush1.bf16.msra.mxu0 0
    %769 = vmatprep.subr.bf16.mxu0 0
    %770 = vmatpush1.bf16.msra.mxu0 0
    %771 = vmatprep.mubr.bf16.mxu0 0
    %772 = vmatmul.mubr.bf16.gmra.mrb[0].mxu0 %v737
    %v773 = vpop.f32.mrb[0].mxu0
    %v774 = vadd.f32 0.0, %v773
    %v775 = vpop.f32.mrb[0].mxu0
    %v776 = vpop.f32.mrb[0].mxu0
    %v777 = vpop.f32.mrb[0].mxu0
    %778 = vdwg.mxu0
    %v780 = vrot.slane %v774, 2
    %v782 = vadd.f32 %v160, %v780
    %v783 = vmul.f32 %v782, %v62
    %v784 = vtanh.pop %v783
    %v785 = vmul.f32 %v784, %v62
    %v786 = vadd.f32 %v785, %v63
    %v788 = vrot.slane %v719, 6
    %v790 = vmul.f32 %v786, %v788
    %792 = vrot.lane.b32.xlu0 %v786, 64
    %v793 = vpop.permute.xlu0 %792
    %v795 = vmul.f32 %v786, %v793
    %797 = vrot.lane.b32.xlu0 %v795, 32
    %v798 = vpop.permute.xlu0 %797
    %v800 = vadd.f32 %v790, %v798
    %v801 = vtanh.pop %v800
    %803 = vrot.lane.b32.xlu0 %v801, 64
    %v804 = vpop.permute.xlu0 %803
    %v806 = vmul.f32 %v786, %v804
    %808 = vrot.lane.b32.xlu0 %v806, 32
    %v809 = vpop.permute.xlu0 %808
    %811 = vst.msk [vmem:[#allocation2 + $0x8] sm:$0xc0] %vm490, %v809
    %v812 = vld [vmem:[#allocation2] sm:$0xff]
    %v813 = vld [vmem:[#allocation2 + $0x8] sm:$0xff]
    %v814 = vpack.c.bf16 %v813, %v812
    %v816 = vlaneseq
    %v817 = vshrl.u32 %v816, 7
    %v818 = vsub.s32 0, %v817
    %v819 = vrot.slane %v100, %v818
    %v825 = vunpack.c.l.b16 %v65
    %v826 = vunpack.c.l.b16 %v66
    %v827 = vunpack.c.l.b16 %v67
    %v828 = vunpack.c.l.b16 %v68
    %v829 = vpack.c.b16 %v826, %v825
    %v830 = vpack.c.b16 %v828, %v827
    %v834 = vsel %vm175, %v814, 0
    %836 = vmatprep.subr.bf16.mxu0 0
    %837 = vmatpush1.bf16.msra.mxu0 %v829
    %838 = vmatprep.subr.bf16.mxu0 0
    %839 = vmatpush1.bf16.msra.mxu0 %v830
    %840 = vmatprep.subr.bf16.mxu0 0
    %841 = vmatpush1.bf16.msra.mxu0 0
    %842 = vmatprep.subr.bf16.mxu0 0
    %843 = vmatpush1.bf16.msra.mxu0 0
    %844 = vmatprep.subr.bf16.mxu0 0
    %845 = vmatpush1.bf16.msra.mxu0 0
    %846 = vmatprep.subr.bf16.mxu0 0
    %847 = vmatpush1.bf16.msra.mxu0 0
    %848 = vmatprep.subr.bf16.mxu0 0
    %849 = vmatpush1.bf16.msra.mxu0 0
    %850 = vmatprep.subr.bf16.mxu0 0
    %851 = vmatpush1.bf16.msra.mxu0 0
    %852 = vmatprep.subr.bf16.mxu0 0
    %853 = vmatpush1.bf16.msra.mxu0 0
    %854 = vmatprep.subr.bf16.mxu0 0
    %855 = vmatpush1.bf16.msra.mxu0 0
    %856 = vmatprep.subr.bf16.mxu0 0
    %857 = vmatpush1.bf16.msra.mxu0 0
    %858 = vmatprep.subr.bf16.mxu0 0
    %859 = vmatpush1.bf16.msra.mxu0 0
    %860 = vmatprep.subr.bf16.mxu0 0
    %861 = vmatpush1.bf16.msra.mxu0 0
    %862 = vmatprep.subr.bf16.mxu0 0
    %863 = vmatpush1.bf16.msra.mxu0 0
    %864 = vmatprep.subr.bf16.mxu0 0
    %865 = vmatpush1.bf16.msra.mxu0 0
    %866 = vmatprep.subr.bf16.mxu0 0
    %867 = vmatpush1.bf16.msra.mxu0 0
    %868 = vmatprep.mubr.bf16.mxu0 0
    %869 = vmatmul.mubr.bf16.gmra.mrb[0].mxu0 %v834
    %v870 = vpop.f32.mrb[0].mxu0
    %v871 = vadd.f32 %v819, %v870
    %v872 = vpop.f32.mrb[0].mxu0
    %v873 = vpop.f32.mrb[0].mxu0
    %v874 = vadd.f32 %v819, %v873
    %v875 = vpop.f32.mrb[0].mxu0
    %876 = vdwg.mxu0
    %v881 = vunpack.c.l.b16 %v84
    %v882 = vunpack.c.l.b16 %v85
    %v883 = vunpack.c.l.b16 %v86
    %v884 = vunpack.c.l.b16 %v87
    %v885 = vpack.c.b16 %v882, %v881
    %v886 = vpack.c.b16 %v884, %v883
    %889 = vmatprep.subr.bf16.mxu0 0
    %890 = vmatpush1.bf16.msra.mxu0 %v885
    %891 = vmatprep.subr.bf16.mxu0 0
    %892 = vmatpush1.bf16.msra.mxu0 %v886
    %893 = vmatprep.subr.bf16.mxu0 0
    %894 = vmatpush1.bf16.msra.mxu0 0
    %895 = vmatprep.subr.bf16.mxu0 0
    %896 = vmatpush1.bf16.msra.mxu0 0
    %897 = vmatprep.subr.bf16.mxu0 0
    %898 = vmatpush1.bf16.msra.mxu0 0
    %899 = vmatprep.subr.bf16.mxu0 0
    %900 = vmatpush1.bf16.msra.mxu0 0
    %901 = vmatprep.subr.bf16.mxu0 0
    %902 = vmatpush1.bf16.msra.mxu0 0
    %903 = vmatprep.subr.bf16.mxu0 0
    %904 = vmatpush1.bf16.msra.mxu0 0
    %905 = vmatprep.subr.bf16.mxu0 0
    %906 = vmatpush1.bf16.msra.mxu0 0
    %907 = vmatprep.subr.bf16.mxu0 0
    %908 = vmatpush1.bf16.msra.mxu0 0
    %909 = vmatprep.subr.bf16.mxu0 0
    %910 = vmatpush1.bf16.msra.mxu0 0
    %911 = vmatprep.subr.bf16.mxu0 0
    %912 = vmatpush1.bf16.msra.mxu0 0
    %913 = vmatprep.subr.bf16.mxu0 0
    %914 = vmatpush1.bf16.msra.mxu0 0
    %915 = vmatprep.subr.bf16.mxu0 0
    %916 = vmatpush1.bf16.msra.mxu0 0
    %917 = vmatprep.subr.bf16.mxu0 0
    %918 = vmatpush1.bf16.msra.mxu0 0
    %919 = vmatprep.subr.bf16.mxu0 0
    %920 = vmatpush1.bf16.msra.mxu0 0
    %921 = vmatprep.mubr.bf16.mxu0 0
    %922 = vmatmul.mubr.bf16.gmra.mrb[0].mxu0 %v177
    %v923 = vpop.f32.mrb[0].mxu0
    %v924 = vadd.f32 0.0, %v923
    %v925 = vpop.f32.mrb[0].mxu0
    %v926 = vpop.f32.mrb[0].mxu0
    %v927 = vpop.f32.mrb[0].mxu0
    %928 = vdwg.mxu0
    %v929 = vadd.f32 %v871, %v924
    %v930 = vmul.f32 %v929, %v62
    %v931 = vtanh.pop %v930
    %v932 = vmul.f32 %v931, %v62
    %v933 = vadd.f32 %v932, %v63
    %v934 = vmul.f32 %v933, 0.0
    %936 = vrot.lane.b32.xlu0 %v933, 64
    %v937 = vpop.permute.xlu0 %936
    %v939 = vmul.f32 %v933, %v937
    %941 = vrot.lane.b32.xlu0 %v939, 32
    %v942 = vpop.permute.xlu0 %941
    %v944 = vadd.f32 %v934, %v942
    %v945 = vtanh.pop %v944
    %947 = vrot.lane.b32.xlu0 %v945, 64
    %v948 = vpop.permute.xlu0 %947
    %v950 = vmul.f32 %v933, %v948
    %952 = vrot.lane.b32.xlu0 %v950, 32
    %v953 = vpop.permute.xlu0 %952
    %955 = vst.msk [vmem:[#allocation2] sm:$0x3] %vm245, %v953
    %v956 = vpack.c.bf16 %v950, %v950
    %958 = vrot.lane.b32.xlu0 %v956, 32
    %v959 = vpop.permute.xlu0 %958
    %v961 = vsel %vm175, %v959, 0
    %963 = vmatprep.subr.bf16.mxu0 0
    %964 = vmatpush1.bf16.msra.mxu0 %v885
    %965 = vmatprep.subr.bf16.mxu0 0
    %966 = vmatpush1.bf16.msra.mxu0 %v886
    %967 = vmatprep.subr.bf16.mxu0 0
    %968 = vmatpush1.bf16.msra.mxu0 0
    %969 = vmatprep.subr.bf16.mxu0 0
    %970 = vmatpush1.bf16.msra.mxu0 0
    %971 = vmatprep.subr.bf16.mxu0 0
    %972 = vmatpush1.bf16.msra.mxu0 0
    %973 = vmatprep.subr.bf16.mxu0 0
    %974 = vmatpush1.bf16.msra.mxu0 0
    %975 = vmatprep.subr.bf16.mxu0 0
    %976 = vmatpush1.bf16.msra.mxu0 0
    %977 = vmatprep.subr.bf16.mxu0 0
    %978 = vmatpush1.bf16.msra.mxu0 0
    %979 = vmatprep.subr.bf16.mxu0 0
    %980 = vmatpush1.bf16.msra.mxu0 0
    %981 = vmatprep.subr.bf16.mxu0 0
    %982 = vmatpush1.bf16.msra.mxu0 0
    %983 = vmatprep.subr.bf16.mxu0 0
    %984 = vmatpush1.bf16.msra.mxu0 0
    %985 = vmatprep.subr.bf16.mxu0 0
    %986 = vmatpush1.bf16.msra.mxu0 0
    %987 = vmatprep.subr.bf16.mxu0 0
    %988 = vmatpush1.bf16.msra.mxu0 0
    %989 = vmatprep.subr.bf16.mxu0 0
    %990 = vmatpush1.bf16.msra.mxu0 0
    %991 = vmatprep.subr.bf16.mxu0 0
    %992 = vmatpush1.bf16.msra.mxu0 0
    %993 = vmatprep.subr.bf16.mxu0 0
    %994 = vmatpush1.bf16.msra.mxu0 0
    %995 = vmatprep.mubr.bf16.mxu0 0
    %996 = vmatmul.mubr.bf16.gmra.mrb[0].mxu0 %v961
    %v997 = vpop.f32.mrb[0].mxu0
    %v998 = vadd.f32 0.0, %v997
    %v999 = vpop.f32.mrb[0].mxu0
    %v1000 = vpop.f32.mrb[0].mxu0
    %v1001 = vpop.f32.mrb[0].mxu0
    %1002 = vdwg.mxu0
    %v1004 = vrot.slane %v998, 6
    %v1006 = vadd.f32 %v871, %v1004
    %v1007 = vmul.f32 %v1006, %v62
    %v1008 = vtanh.pop %v1007
    %v1009 = vmul.f32 %v1008, %v62
    %v1010 = vadd.f32 %v1009, %v63
    %v1012 = vrot.slane %v944, 6
    %v1014 = vmul.f32 %v1010, %v1012
    %1016 = vrot.lane.b32.xlu0 %v1010, 64
    %v1017 = vpop.permute.xlu0 %1016
    %v1019 = vmul.f32 %v1010, %v1017
    %1021 = vrot.lane.b32.xlu0 %v1019, 32
    %v1022 = vpop.permute.xlu0 %1021
    %v1024 = vadd.f32 %v1014, %v1022
    %v1025 = vtanh.pop %v1024
    %1027 = vrot.lane.b32.xlu0 %v1025, 64
    %v1028 = vpop.permute.xlu0 %1027
    %v1030 = vmul.f32 %v1010, %v1028
    %1032 = vrot.lane.b32.xlu0 %v1030, 32
    %v1033 = vpop.permute.xlu0 %1032
    %1035 = vst.msk [vmem:[#allocation2] sm:$0xc] %vm326, %v1033
    %v1036 = vpack.c.bf16 %v1030, %v1030
    %v1038 = vrot.slane %v1036, 1
    %1039 = vrot.lane.b32.xlu0 %v1038, 32
    %v1040 = vpop.permute.xlu0 %1039
    %v1042 = vsel %vm175, %v1040, 0
    %1044 = vmatprep.subr.bf16.mxu0 0
    %1045 = vmatpush1.bf16.msra.mxu0 %v885
    %1046 = vmatprep.subr.bf16.mxu0 0
    %1047 = vmatpush1.bf16.msra.mxu0 %v886
    %1048 = vmatprep.subr.bf16.mxu0 0
    %1049 = vmatpush1.bf16.msra.mxu0 0
    %1050 = vmatprep.subr.bf16.mxu0 0
    %1051 = vmatpush1.bf16.msra.mxu0 0
    %1052 = vmatprep.subr.bf16.mxu0 0
    %1053 = vmatpush1.bf16.msra.mxu0 0
    %1054 = vmatprep.subr.bf16.mxu0 0
    %1055 = vmatpush1.bf16.msra.mxu0 0
    %1056 = vmatprep.subr.bf16.mxu0 0
    %1057 = vmatpush1.bf16.msra.mxu0 0
    %1058 = vmatprep.subr.bf16.mxu0 0
    %1059 = vmatpush1.bf16.msra.mxu0 0
    %1060 = vmatprep.subr.bf16.mxu0 0
    %1061 = vmatpush1.bf16.msra.mxu0 0
    %1062 = vmatprep.subr.bf16.mxu0 0
    %1063 = vmatpush1.bf16.msra.mxu0 0
    %1064 = vmatprep.subr.bf16.mxu0 0
    %1065 = vmatpush1.bf16.msra.mxu0 0
    %1066 = vmatprep.subr.bf16.mxu0 0
    %1067 = vmatpush1.bf16.msra.mxu0 0
    %1068 = vmatprep.subr.bf16.mxu0 0
    %1069 = vmatpush1.bf16.msra.mxu0 0
    %1070 = vmatprep.subr.bf16.mxu0 0
    %1071 = vmatpush1.bf16.msra.mxu0 0
    %1072 = vmatprep.subr.bf16.mxu0 0
    %1073 = vmatpush1.bf16.msra.mxu0 0
    %1074 = vmatprep.subr.bf16.mxu0 0
    %1075 = vmatpush1.bf16.msra.mxu0 0
    %1076 = vmatprep.mubr.bf16.mxu0 0
    %1077 = vmatmul.mubr.bf16.gmra.mrb[0].mxu0 %v1042
    %v1078 = vpop.f32.mrb[0].mxu0
    %v1079 = vadd.f32 0.0, %v1078
    %v1080 = vpop.f32.mrb[0].mxu0
    %v1081 = vpop.f32.mrb[0].mxu0
    %v1082 = vpop.f32.mrb[0].mxu0
    %1083 = vdwg.mxu0
    %v1085 = vrot.slane %v1079, 4
    %v1087 = vadd.f32 %v871, %v1085
    %v1088 = vmul.f32 %v1087, %v62
    %v1089 = vtanh.pop %v1088
    %v1090 = vmul.f32 %v1089, %v62
    %v1091 = vadd.f32 %v1090, %v63
    %v1093 = vrot.slane %v1024, 6
    %v1095 = vmul.f32 %v1091, %v1093
    %1097 = vrot.lane.b32.xlu0 %v1091, 64
    %v1098 = vpop.permute.xlu0 %1097
    %v1100 = vmul.f32 %v1091, %v1098
    %1102 = vrot.lane.b32.xlu0 %v1100, 32
    %v1103 = vpop.permute.xlu0 %1102
    %v1105 = vadd.f32 %v1095, %v1103
    %v1106 = vtanh.pop %v1105
    %1108 = vrot.lane.b32.xlu0 %v1106, 64
    %v1109 = vpop.permute.xlu0 %1108
    %v1111 = vmul.f32 %v1091, %v1109
    %1113 = vrot.lane.b32.xlu0 %v1111, 32
    %v1114 = vpop.permute.xlu0 %1113
    %1116 = vst.msk [vmem:[#allocation2] sm:$0x30] %vm408, %v1114
    %v1117 = vpack.c.bf16 %v1111, %v1111
    %v1119 = vrot.slane %v1117, 2
    %1120 = vrot.lane.b32.xlu0 %v1119, 32
    %v1121 = vpop.permute.xlu0 %1120
    %v1123 = vsel %vm175, %v1121, 0
    %1125 = vmatprep.subr.bf16.mxu0 0
    %1126 = vmatpush1.bf16.msra.mxu0 %v885
    %1127 = vmatprep.subr.bf16.mxu0 0
    %1128 = vmatpush1.bf16.msra.mxu0 %v886
    %1129 = vmatprep.subr.bf16.mxu0 0
    %1130 = vmatpush1.bf16.msra.mxu0 0
    %1131 = vmatprep.subr.bf16.mxu0 0
    %1132 = vmatpush1.bf16.msra.mxu0 0
    %1133 = vmatprep.subr.bf16.mxu0 0
    %1134 = vmatpush1.bf16.msra.mxu0 0
    %1135 = vmatprep.subr.bf16.mxu0 0
    %1136 = vmatpush1.bf16.msra.mxu0 0
    %1137 = vmatprep.subr.bf16.mxu0 0
    %1138 = vmatpush1.bf16.msra.mxu0 0
    %1139 = vmatprep.subr.bf16.mxu0 0
    %1140 = vmatpush1.bf16.msra.mxu0 0
    %1141 = vmatprep.subr.bf16.mxu0 0
    %1142 = vmatpush1.bf16.msra.mxu0 0
    %1143 = vmatprep.subr.bf16.mxu0 0
    %1144 = vmatpush1.bf16.msra.mxu0 0
    %1145 = vmatprep.subr.bf16.mxu0 0
    %1146 = vmatpush1.bf16.msra.mxu0 0
    %1147 = vmatprep.subr.bf16.mxu0 0
    %1148 = vmatpush1.bf16.msra.mxu0 0
    %1149 = vmatprep.subr.bf16.mxu0 0
    %1150 = vmatpush1.bf16.msra.mxu0 0
    %1151 = vmatprep.subr.bf16.mxu0 0
    %1152 = vmatpush1.bf16.msra.mxu0 0
    %1153 = vmatprep.subr.bf16.mxu0 0
    %1154 = vmatpush1.bf16.msra.mxu0 0
    %1155 = vmatprep.subr.bf16.mxu0 0
    %1156 = vmatpush1.bf16.msra.mxu0 0
    %1157 = vmatprep.mubr.bf16.mxu0 0
    %1158 = vmatmul.mubr.bf16.gmra.mrb[0].mxu0 %v1123
    %v1159 = vpop.f32.mrb[0].mxu0
    %v1160 = vadd.f32 0.0, %v1159
    %v1161 = vpop.f32.mrb[0].mxu0
    %v1162 = vpop.f32.mrb[0].mxu0
    %v1163 = vpop.f32.mrb[0].mxu0
    %1164 = vdwg.mxu0
    %v1166 = vrot.slane %v1160, 2
    %v1168 = vadd.f32 %v871, %v1166
    %v1169 = vmul.f32 %v1168, %v62
    %v1170 = vtanh.pop %v1169
    %v1171 = vmul.f32 %v1170, %v62
    %v1172 = vadd.f32 %v1171, %v63
    %v1174 = vrot.slane %v1105, 6
    %v1176 = vmul.f32 %v1172, %v1174
    %1178 = vrot.lane.b32.xlu0 %v1172, 64
    %v1179 = vpop.permute.xlu0 %1178
    %v1181 = vmul.f32 %v1172, %v1179
    %1183 = vrot.lane.b32.xlu0 %v1181, 32
    %v1184 = vpop.permute.xlu0 %1183
    %v1186 = vadd.f32 %v1176, %v1184
    %v1187 = vtanh.pop %v1186
    %1189 = vrot.lane.b32.xlu0 %v1187, 64
    %v1190 = vpop.permute.xlu0 %1189
    %v1192 = vmul.f32 %v1172, %v1190
    %1194 = vrot.lane.b32.xlu0 %v1192, 32
    %v1195 = vpop.permute.xlu0 %1194
    %1197 = vst.msk [vmem:[#allocation2] sm:$0xc0] %vm490, %v1195
    %v1198 = vpack.c.bf16 %v1192, %v1192
    %v1200 = vrot.slane %v1198, 3
    %1201 = vrot.lane.b32.xlu0 %v1200, 32
    %v1202 = vpop.permute.xlu0 %1201
    %v1204 = vsel %vm175, %v1202, 0
    %1206 = vmatprep.subr.bf16.mxu0 0
    %1207 = vmatpush1.bf16.msra.mxu0 %v885
    %1208 = vmatprep.subr.bf16.mxu0 0
    %1209 = vmatpush1.bf16.msra.mxu0 %v886
    %1210 = vmatprep.subr.bf16.mxu0 0
    %1211 = vmatpush1.bf16.msra.mxu0 0
    %1212 = vmatprep.subr.bf16.mxu0 0
    %1213 = vmatpush1.bf16.msra.mxu0 0
    %1214 = vmatprep.subr.bf16.mxu0 0
    %1215 = vmatpush1.bf16.msra.mxu0 0
    %1216 = vmatprep.subr.bf16.mxu0 0
    %1217 = vmatpush1.bf16.msra.mxu0 0
    %1218 = vmatprep.subr.bf16.mxu0 0
    %1219 = vmatpush1.bf16.msra.mxu0 0
    %1220 = vmatprep.subr.bf16.mxu0 0
    %1221 = vmatpush1.bf16.msra.mxu0 0
    %1222 = vmatprep.subr.bf16.mxu0 0
    %1223 = vmatpush1.bf16.msra.mxu0 0
    %1224 = vmatprep.subr.bf16.mxu0 0
    %1225 = vmatpush1.bf16.msra.mxu0 0
    %1226 = vmatprep.subr.bf16.mxu0 0
    %1227 = vmatpush1.bf16.msra.mxu0 0
    %1228 = vmatprep.subr.bf16.mxu0 0
    %1229 = vmatpush1.bf16.msra.mxu0 0
    %1230 = vmatprep.subr.bf16.mxu0 0
    %1231 = vmatpush1.bf16.msra.mxu0 0
    %1232 = vmatprep.subr.bf16.mxu0 0
    %1233 = vmatpush1.bf16.msra.mxu0 0
    %1234 = vmatprep.subr.bf16.mxu0 0
    %1235 = vmatpush1.bf16.msra.mxu0 0
    %1236 = vmatprep.subr.bf16.mxu0 0
    %1237 = vmatpush1.bf16.msra.mxu0 0
    %1238 = vmatprep.mubr.bf16.mxu0 0
    %1239 = vmatmul.mubr.bf16.gmra.mrb[0].mxu0 %v1204
    %v1240 = vpop.f32.mrb[0].mxu0
    %v1241 = vadd.f32 0.0, %v1240
    %v1242 = vpop.f32.mrb[0].mxu0
    %v1243 = vpop.f32.mrb[0].mxu0
    %v1244 = vpop.f32.mrb[0].mxu0
    %1245 = vdwg.mxu0
    %v1246 = vadd.f32 %v874, %v1241
    %v1247 = vmul.f32 %v1246, %v62
    %v1248 = vtanh.pop %v1247
    %v1249 = vmul.f32 %v1248, %v62
    %v1250 = vadd.f32 %v1249, %v63
    %v1252 = vrot.slane %v1186, 6
    %v1254 = vmul.f32 %v1250, %v1252
    %1256 = vrot.lane.b32.xlu0 %v1250, 64
    %v1257 = vpop.permute.xlu0 %1256
    %v1259 = vmul.f32 %v1250, %v1257
    %1261 = vrot.lane.b32.xlu0 %v1259, 32
    %v1262 = vpop.permute.xlu0 %1261
    %v1264 = vadd.f32 %v1254, %v1262
    %v1265 = vtanh.pop %v1264
    %1267 = vrot.lane.b32.xlu0 %v1265, 64
    %v1268 = vpop.permute.xlu0 %1267
    %v1270 = vmul.f32 %v1250, %v1268
    %1272 = vrot.lane.b32.xlu0 %v1270, 32
    %v1273 = vpop.permute.xlu0 %1272
    %1275 = vst.msk [vmem:[#allocation2 + $0x8] sm:$0x3] %vm245, %v1273
    %v1276 = vpack.c.bf16 %v1270, %v1270
    %1278 = vrot.lane.b32.xlu0 %v1276, 32
    %v1279 = vpop.permute.xlu0 %1278
    %v1281 = vsel %vm175, %v1279, 0
    %1283 = vmatprep.subr.bf16.mxu0 0
    %1284 = vmatpush1.bf16.msra.mxu0 %v885
    %1285 = vmatprep.subr.bf16.mxu0 0
    %1286 = vmatpush1.bf16.msra.mxu0 %v886
    %1287 = vmatprep.subr.bf16.mxu0 0
    %1288 = vmatpush1.bf16.msra.mxu0 0
    %1289 = vmatprep.subr.bf16.mxu0 0
    %1290 = vmatpush1.bf16.msra.mxu0 0
    %1291 = vmatprep.subr.bf16.mxu0 0
    %1292 = vmatpush1.bf16.msra.mxu0 0
    %1293 = vmatprep.subr.bf16.mxu0 0
    %1294 = vmatpush1.bf16.msra.mxu0 0
    %1295 = vmatprep.subr.bf16.mxu0 0
    %1296 = vmatpush1.bf16.msra.mxu0 0
    %1297 = vmatprep.subr.bf16.mxu0 0
    %1298 = vmatpush1.bf16.msra.mxu0 0
    %1299 = vmatprep.subr.bf16.mxu0 0
    %1300 = vmatpush1.bf16.msra.mxu0 0
    %1301 = vmatprep.subr.bf16.mxu0 0
    %1302 = vmatpush1.bf16.msra.mxu0 0
    %1303 = vmatprep.subr.bf16.mxu0 0
    %1304 = vmatpush1.bf16.msra.mxu0 0
    %1305 = vmatprep.subr.bf16.mxu0 0
    %1306 = vmatpush1.bf16.msra.mxu0 0
    %1307 = vmatprep.subr.bf16.mxu0 0
    %1308 = vmatpush1.bf16.msra.mxu0 0
    %1309 = vmatprep.subr.bf16.mxu0 0
    %1310 = vmatpush1.bf16.msra.mxu0 0
    %1311 = vmatprep.subr.bf16.mxu0 0
    %1312 = vmatpush1.bf16.msra.mxu0 0
    %1313 = vmatprep.subr.bf16.mxu0 0
    %1314 = vmatpush1.bf16.msra.mxu0 0
    %1315 = vmatprep.mubr.bf16.mxu0 0
    %1316 = vmatmul.mubr.bf16.gmra.mrb[0].mxu0 %v1281
    %v1317 = vpop.f32.mrb[0].mxu0
    %v1318 = vadd.f32 0.0, %v1317
    %v1319 = vpop.f32.mrb[0].mxu0
    %v1320 = vpop.f32.mrb[0].mxu0
    %v1321 = vpop.f32.mrb[0].mxu0
    %1322 = vdwg.mxu0
    %v1324 = vrot.slane %v1318, 6
    %v1326 = vadd.f32 %v874, %v1324
    %v1327 = vmul.f32 %v1326, %v62
    %v1328 = vtanh.pop %v1327
    %v1329 = vmul.f32 %v1328, %v62
    %v1330 = vadd.f32 %v1329, %v63
    %v1332 = vrot.slane %v1264, 6
    %v1334 = vmul.f32 %v1330, %v1332
    %1336 = vrot.lane.b32.xlu0 %v1330, 64
    %v1337 = vpop.permute.xlu0 %1336
    %v1339 = vmul.f32 %v1330, %v1337
    %1341 = vrot.lane.b32.xlu0 %v1339, 32
    %v1342 = vpop.permute.xlu0 %1341
    %v1344 = vadd.f32 %v1334, %v1342
    %v1345 = vtanh.pop %v1344
    %1347 = vrot.lane.b32.xlu0 %v1345, 64
    %v1348 = vpop.permute.xlu0 %1347
    %v1350 = vmul.f32 %v1330, %v1348
    %1352 = vrot.lane.b32.xlu0 %v1350, 32
    %v1353 = vpop.permute.xlu0 %1352
    %1355 = vst.msk [vmem:[#allocation2 + $0x8] sm:$0xc] %vm326, %v1353
    %v1356 = vpack.c.bf16 %v1350, %v1350
    %v1358 = vrot.slane %v1356, 1
    %1359 = vrot.lane.b32.xlu0 %v1358, 32
    %v1360 = vpop.permute.xlu0 %1359
    %v1362 = vsel %vm175, %v1360, 0
    %1364 = vmatprep.subr.bf16.mxu0 0
    %1365 = vmatpush1.bf16.msra.mxu0 %v885
    %1366 = vmatprep.subr.bf16.mxu0 0
    %1367 = vmatpush1.bf16.msra.mxu0 %v886
    %1368 = vmatprep.subr.bf16.mxu0 0
    %1369 = vmatpush1.bf16.msra.mxu0 0
    %1370 = vmatprep.subr.bf16.mxu0 0
    %1371 = vmatpush1.bf16.msra.mxu0 0
    %1372 = vmatprep.subr.bf16.mxu0 0
    %1373 = vmatpush1.bf16.msra.mxu0 0
    %1374 = vmatprep.subr.bf16.mxu0 0
    %1375 = vmatpush1.bf16.msra.mxu0 0
    %1376 = vmatprep.subr.bf16.mxu0 0
    %1377 = vmatpush1.bf16.msra.mxu0 0
    %1378 = vmatprep.subr.bf16.mxu0 0
    %1379 = vmatpush1.bf16.msra.mxu0 0
    %1380 = vmatprep.subr.bf16.mxu0 0
    %1381 = vmatpush1.bf16.msra.mxu0 0
    %1382 = vmatprep.subr.bf16.mxu0 0
    %1383 = vmatpush1.bf16.msra.mxu0 0
    %1384 = vmatprep.subr.bf16.mxu0 0
    %1385 = vmatpush1.bf16.msra.mxu0 0
    %1386 = vmatprep.subr.bf16.mxu0 0
    %1387 = vmatpush1.bf16.msra.mxu0 0
    %1388 = vmatprep.subr.bf16.mxu0 0
    %1389 = vmatpush1.bf16.msra.mxu0 0
    %1390 = vmatprep.subr.bf16.mxu0 0
    %1391 = vmatpush1.bf16.msra.mxu0 0
    %1392 = vmatprep.subr.bf16.mxu0 0
    %1393 = vmatpush1.bf16.msra.mxu0 0
    %1394 = vmatprep.subr.bf16.mxu0 0
    %1395 = vmatpush1.bf16.msra.mxu0 0
    %1396 = vmatprep.mubr.bf16.mxu0 0
    %1397 = vmatmul.mubr.bf16.gmra.mrb[0].mxu0 %v1362
    %v1398 = vpop.f32.mrb[0].mxu0
    %v1399 = vadd.f32 0.0, %v1398
    %v1400 = vpop.f32.mrb[0].mxu0
    %v1401 = vpop.f32.mrb[0].mxu0
    %v1402 = vpop.f32.mrb[0].mxu0
    %1403 = vdwg.mxu0
    %v1405 = vrot.slane %v1399, 4
    %v1407 = vadd.f32 %v874, %v1405
    %v1408 = vmul.f32 %v1407, %v62
    %v1409 = vtanh.pop %v1408
    %v1410 = vmul.f32 %v1409, %v62
    %v1411 = vadd.f32 %v1410, %v63
    %v1413 = vrot.slane %v1344, 6
    %v1415 = vmul.f32 %v1411, %v1413
    %1417 = vrot.lane.b32.xlu0 %v1411, 64
    %v1418 = vpop.permute.xlu0 %1417
    %v1420 = vmul.f32 %v1411, %v1418
    %1422 = vrot.lane.b32.xlu0 %v1420, 32
    %v1423 = vpop.permute.xlu0 %1422
    %v1425 = vadd.f32 %v1415, %v1423
    %v1426 = vtanh.pop %v1425
    %1428 = vrot.lane.b32.xlu0 %v1426, 64
    %v1429 = vpop.permute.xlu0 %1428
    %v1431 = vmul.f32 %v1411, %v1429
    %1433 = vrot.lane.b32.xlu0 %v1431, 32
    %v1434 = vpop.permute.xlu0 %1433
    %1436 = vst.msk [vmem:[#allocation2 + $0x8] sm:$0x30] %vm408, %v1434
    %v1437 = vpack.c.bf16 %v1431, %v1431
    %v1439 = vrot.slane %v1437, 2
    %1440 = vrot.lane.b32.xlu0 %v1439, 32
    %v1441 = vpop.permute.xlu0 %1440
    %v1443 = vsel %vm175, %v1441, 0
    %1445 = vmatprep.subr.bf16.mxu0 0
    %1446 = vmatpush1.bf16.msra.mxu0 %v885
    %1447 = vmatprep.subr.bf16.mxu0 0
    %1448 = vmatpush1.bf16.msra.mxu0 %v886
    %1449 = vmatprep.subr.bf16.mxu0 0
    %1450 = vmatpush1.bf16.msra.mxu0 0
    %1451 = vmatprep.subr.bf16.mxu0 0
    %1452 = vmatpush1.bf16.msra.mxu0 0
    %1453 = vmatprep.subr.bf16.mxu0 0
    %1454 = vmatpush1.bf16.msra.mxu0 0
    %1455 = vmatprep.subr.bf16.mxu0 0
    %1456 = vmatpush1.bf16.msra.mxu0 0
    %1457 = vmatprep.subr.bf16.mxu0 0
    %1458 = vmatpush1.bf16.msra.mxu0 0
    %1459 = vmatprep.subr.bf16.mxu0 0
    %1460 = vmatpush1.bf16.msra.mxu0 0
    %1461 = vmatprep.subr.bf16.mxu0 0
    %1462 = vmatpush1.bf16.msra.mxu0 0
    %1463 = vmatprep.subr.bf16.mxu0 0
    %1464 = vmatpush1.bf16.msra.mxu0 0
    %1465 = vmatprep.subr.bf16.mxu0 0
    %1466 = vmatpush1.bf16.msra.mxu0 0
    %1467 = vmatprep.subr.bf16.mxu0 0
    %1468 = vmatpush1.bf16.msra.mxu0 0
    %1469 = vmatprep.subr.bf16.mxu0 0
    %1470 = vmatpush1.bf16.msra.mxu0 0
    %1471 = vmatprep.subr.bf16.mxu0 0
    %1472 = vmatpush1.bf16.msra.mxu0 0
    %1473 = vmatprep.subr.bf16.mxu0 0
    %1474 = vmatpush1.bf16.msra.mxu0 0
    %1475 = vmatprep.subr.bf16.mxu0 0
    %1476 = vmatpush1.bf16.msra.mxu0 0
    %1477 = vmatprep.mubr.bf16.mxu0 0
    %1478 = vmatmul.mubr.bf16.gmra.mrb[0].mxu0 %v1443
    %v1479 = vpop.f32.mrb[0].mxu0
    %v1480 = vadd.f32 0.0, %v1479
    %v1481 = vpop.f32.mrb[0].mxu0
    %v1482 = vpop.f32.mrb[0].mxu0
    %v1483 = vpop.f32.mrb[0].mxu0
    %1484 = vdwg.mxu0
    %v1486 = vrot.slane %v1480, 2
    %v1488 = vadd.f32 %v874, %v1486
    %v1489 = vmul.f32 %v1488, %v62
    %v1490 = vtanh.pop %v1489
    %v1491 = vmul.f32 %v1490, %v62
    %v1492 = vadd.f32 %v1491, %v63
    %v1494 = vrot.slane %v1425, 6
    %v1496 = vmul.f32 %v1492, %v1494
    %1498 = vrot.lane.b32.xlu0 %v1492, 64
    %v1499 = vpop.permute.xlu0 %1498
    %v1501 = vmul.f32 %v1492, %v1499
    %1503 = vrot.lane.b32.xlu0 %v1501, 32
    %v1504 = vpop.permute.xlu0 %1503
    %v1506 = vadd.f32 %v1496, %v1504
    %v1507 = vtanh.pop %v1506
    %1509 = vrot.lane.b32.xlu0 %v1507, 64
    %v1510 = vpop.permute.xlu0 %1509
    %v1512 = vmul.f32 %v1492, %v1510
    %1514 = vrot.lane.b32.xlu0 %v1512, 32
    %v1515 = vpop.permute.xlu0 %1514
    %1517 = vst.msk [vmem:[#allocation2 + $0x8] sm:$0xc0] %vm490, %v1515
    %v1518 = vld [vmem:[#allocation2] sm:$0xff]
    %v1519 = vld [vmem:[#allocation2 + $0x8] sm:$0xff]
    %v1520 = vpack.c.bf16 %v1519, %v1518
    %v1522 = vlaneseq
    %v1523 = vshrl.u32 %v1522, 7
    %v1524 = vsub.s32 0, %v1523
    %v1525 = vrot.slane %v102, %v1524
    %v1531 = vunpack.c.l.b16 %v70
    %v1532 = vunpack.c.l.b16 %v71
    %v1533 = vunpack.c.l.b16 %v72
    %v1534 = vunpack.c.l.b16 %v73
    %v1535 = vpack.c.b16 %v1532, %v1531
    %v1536 = vpack.c.b16 %v1534, %v1533
    %v1540 = vsel %vm175, %v1520, 0
    %1542 = vmatprep.subr.bf16.mxu0 0
    %1543 = vmatpush1.bf16.msra.mxu0 %v1535
    %1544 = vmatprep.subr.bf16.mxu0 0
    %1545 = vmatpush1.bf16.msra.mxu0 %v1536
    %1546 = vmatprep.subr.bf16.mxu0 0
    %1547 = vmatpush1.bf16.msra.mxu0 0
    %1548 = vmatprep.subr.bf16.mxu0 0
    %1549 = vmatpush1.bf16.msra.mxu0 0
    %1550 = vmatprep.subr.bf16.mxu0 0
    %1551 = vmatpush1.bf16.msra.mxu0 0
    %1552 = vmatprep.subr.bf16.mxu0 0
    %1553 = vmatpush1.bf16.msra.mxu0 0
    %1554 = vmatprep.subr.bf16.mxu0 0
    %1555 = vmatpush1.bf16.msra.mxu0 0
    %1556 = vmatprep.subr.bf16.mxu0 0
    %1557 = vmatpush1.bf16.msra.mxu0 0
    %1558 = vmatprep.subr.bf16.mxu0 0
    %1559 = vmatpush1.bf16.msra.mxu0 0
    %1560 = vmatprep.subr.bf16.mxu0 0
    %1561 = vmatpush1.bf16.msra.mxu0 0
    %1562 = vmatprep.subr.bf16.mxu0 0
    %1563 = vmatpush1.bf16.msra.mxu0 0
    %1564 = vmatprep.subr.bf16.mxu0 0
    %1565 = vmatpush1.bf16.msra.mxu0 0
    %1566 = vmatprep.subr.bf16.mxu0 0
    %1567 = vmatpush1.bf16.msra.mxu0 0
    %1568 = vmatprep.subr.bf16.mxu0 0
    %1569 = vmatpush1.bf16.msra.mxu0 0
    %1570 = vmatprep.subr.bf16.mxu0 0
    %1571 = vmatpush1.bf16.msra.mxu0 0
    %1572 = vmatprep.subr.bf16.mxu0 0
    %1573 = vmatpush1.bf16.msra.mxu0 0
    %1574 = vmatprep.mubr.bf16.mxu0 0
    %1575 = vmatmul.mubr.bf16.gmra.mrb[0].mxu0 %v1540
    %v1576 = vpop.f32.mrb[0].mxu0
    %v1577 = vadd.f32 %v1525, %v1576
    %v1578 = vpop.f32.mrb[0].mxu0
    %v1579 = vpop.f32.mrb[0].mxu0
    %v1580 = vadd.f32 %v1525, %v1579
    %v1581 = vpop.f32.mrb[0].mxu0
    %1582 = vdwg.mxu0
    %v1587 = vunpack.c.l.b16 %v89
    %v1588 = vunpack.c.l.b16 %v90
    %v1589 = vunpack.c.l.b16 %v91
    %v1590 = vunpack.c.l.b16 %v92
    %v1591 = vpack.c.b16 %v1588, %v1587
    %v1592 = vpack.c.b16 %v1590, %v1589
    %1595 = vmatprep.subr.bf16.mxu0 0
    %1596 = vmatpush1.bf16.msra.mxu0 %v1591
    %1597 = vmatprep.subr.bf16.mxu0 0
    %1598 = vmatpush1.bf16.msra.mxu0 %v1592
    %1599 = vmatprep.subr.bf16.mxu0 0
    %1600 = vmatpush1.bf16.msra.mxu0 0
    %1601 = vmatprep.subr.bf16.mxu0 0
    %1602 = vmatpush1.bf16.msra.mxu0 0
    %1603 = vmatprep.subr.bf16.mxu0 0
    %1604 = vmatpush1.bf16.msra.mxu0 0
    %1605 = vmatprep.subr.bf16.mxu0 0
    %1606 = vmatpush1.bf16.msra.mxu0 0
    %1607 = vmatprep.subr.bf16.mxu0 0
    %1608 = vmatpush1.bf16.msra.mxu0 0
    %1609 = vmatprep.subr.bf16.mxu0 0
    %1610 = vmatpush1.bf16.msra.mxu0 0
    %1611 = vmatprep.subr.bf16.mxu0 0
    %1612 = vmatpush1.bf16.msra.mxu0 0
    %1613 = vmatprep.subr.bf16.mxu0 0
    %1614 = vmatpush1.bf16.msra.mxu0 0
    %1615 = vmatprep.subr.bf16.mxu0 0
    %1616 = vmatpush1.bf16.msra.mxu0 0
    %1617 = vmatprep.subr.bf16.mxu0 0
    %1618 = vmatpush1.bf16.msra.mxu0 0
    %1619 = vmatprep.subr.bf16.mxu0 0
    %1620 = vmatpush1.bf16.msra.mxu0 0
    %1621 = vmatprep.subr.bf16.mxu0 0
    %1622 = vmatpush1.bf16.msra.mxu0 0
    %1623 = vmatprep.subr.bf16.mxu0 0
    %1624 = vmatpush1.bf16.msra.mxu0 0
    %1625 = vmatprep.subr.bf16.mxu0 0
    %1626 = vmatpush1.bf16.msra.mxu0 0
    %1627 = vmatprep.mubr.bf16.mxu0 0
    %1628 = vmatmul.mubr.bf16.gmra.mrb[0].mxu0 %v177
    %v1629 = vpop.f32.mrb[0].mxu0
    %v1630 = vadd.f32 0.0, %v1629
    %v1631 = vpop.f32.mrb[0].mxu0
    %v1632 = vpop.f32.mrb[0].mxu0
    %v1633 = vpop.f32.mrb[0].mxu0
    %1634 = vdwg.mxu0
    %v1635 = vadd.f32 %v1577, %v1630
    %v1636 = vmul.f32 %v1635, %v62
    %v1637 = vtanh.pop %v1636
    %v1638 = vmul.f32 %v1637, %v62
    %v1639 = vadd.f32 %v1638, %v63
    %v1640 = vmul.f32 %v1639, 0.0
    %1642 = vrot.lane.b32.xlu0 %v1639, 64
    %v1643 = vpop.permute.xlu0 %1642
    %v1645 = vmul.f32 %v1639, %v1643
    %1647 = vrot.lane.b32.xlu0 %v1645, 32
    %v1648 = vpop.permute.xlu0 %1647
    %v1650 = vadd.f32 %v1640, %v1648
    %v1651 = vtanh.pop %v1650
    %1653 = vrot.lane.b32.xlu0 %v1651, 64
    %v1654 = vpop.permute.xlu0 %1653
    %v1656 = vmul.f32 %v1639, %v1654
    %1658 = vrot.lane.b32.xlu0 %v1656, 32
    %v1659 = vpop.permute.xlu0 %1658
    %1661 = vst.msk [vmem:[#allocation2] sm:$0x3] %vm245, %v1659
    %v1662 = vpack.c.bf16 %v1656, %v1656
    %1664 = vrot.lane.b32.xlu0 %v1662, 32
    %v1665 = vpop.permute.xlu0 %1664
    %v1667 = vsel %vm175, %v1665, 0
    %1669 = vmatprep.subr.bf16.mxu0 0
    %1670 = vmatpush1.bf16.msra.mxu0 %v1591
    %1671 = vmatprep.subr.bf16.mxu0 0
    %1672 = vmatpush1.bf16.msra.mxu0 %v1592
    %1673 = vmatprep.subr.bf16.mxu0 0
    %1674 = vmatpush1.bf16.msra.mxu0 0
    %1675 = vmatprep.subr.bf16.mxu0 0
    %1676 = vmatpush1.bf16.msra.mxu0 0
    %1677 = vmatprep.subr.bf16.mxu0 0
    %1678 = vmatpush1.bf16.msra.mxu0 0
    %1679 = vmatprep.subr.bf16.mxu0 0
    %1680 = vmatpush1.bf16.msra.mxu0 0
    %1681 = vmatprep.subr.bf16.mxu0 0
    %1682 = vmatpush1.bf16.msra.mxu0 0
    %1683 = vmatprep.subr.bf16.mxu0 0
    %1684 = vmatpush1.bf16.msra.mxu0 0
    %1685 = vmatprep.subr.bf16.mxu0 0
    %1686 = vmatpush1.bf16.msra.mxu0 0
    %1687 = vmatprep.subr.bf16.mxu0 0
    %1688 = vmatpush1.bf16.msra.mxu0 0
    %1689 = vmatprep.subr.bf16.mxu0 0
    %1690 = vmatpush1.bf16.msra.mxu0 0
    %1691 = vmatprep.subr.bf16.mxu0 0
    %1692 = vmatpush1.bf16.msra.mxu0 0
    %1693 = vmatprep.subr.bf16.mxu0 0
    %1694 = vmatpush1.bf16.msra.mxu0 0
    %1695 = vmatprep.subr.bf16.mxu0 0
    %1696 = vmatpush1.bf16.msra.mxu0 0
    %1697 = vmatprep.subr.bf16.mxu0 0
    %1698 = vmatpush1.bf16.msra.mxu0 0
    %1699 = vmatprep.subr.bf16.mxu0 0
    %1700 = vmatpush1.bf16.msra.mxu0 0
    %1701 = vmatprep.mubr.bf16.mxu0 0
    %1702 = vmatmul.mubr.bf16.gmra.mrb[0].mxu0 %v1667
    %v1703 = vpop.f32.mrb[0].mxu0
    %v1704 = vadd.f32 0.0, %v1703
    %v1705 = vpop.f32.mrb[0].mxu0
    %v1706 = vpop.f32.mrb[0].mxu0
    %v1707 = vpop.f32.mrb[0].mxu0
    %1708 = vdwg.mxu0
    %v1710 = vrot.slane %v1704, 6
    %v1712 = vadd.f32 %v1577, %v1710
    %v1713 = vmul.f32 %v1712, %v62
    %v1714 = vtanh.pop %v1713
    %v1715 = vmul.f32 %v1714, %v62
    %v1716 = vadd.f32 %v1715, %v63
    %v1718 = vrot.slane %v1650, 6
    %v1720 = vmul.f32 %v1716, %v1718
    %1722 = vrot.lane.b32.xlu0 %v1716, 64
    %v1723 = vpop.permute.xlu0 %1722
    %v1725 = vmul.f32 %v1716, %v1723
    %1727 = vrot.lane.b32.xlu0 %v1725, 32
    %v1728 = vpop.permute.xlu0 %1727
    %v1730 = vadd.f32 %v1720, %v1728
    %v1731 = vtanh.pop %v1730
    %1733 = vrot.lane.b32.xlu0 %v1731, 64
    %v1734 = vpop.permute.xlu0 %1733
    %v1736 = vmul.f32 %v1716, %v1734
    %1738 = vrot.lane.b32.xlu0 %v1736, 32
    %v1739 = vpop.permute.xlu0 %1738
    %1741 = vst.msk [vmem:[#allocation2] sm:$0xc] %vm326, %v1739
    %v1742 = vpack.c.bf16 %v1736, %v1736
    %v1744 = vrot.slane %v1742, 1
    %1745 = vrot.lane.b32.xlu0 %v1744, 32
    %v1746 = vpop.permute.xlu0 %1745
    %v1748 = vsel %vm175, %v1746, 0
    %1750 = vmatprep.subr.bf16.mxu0 0
    %1751 = vmatpush1.bf16.msra.mxu0 %v1591
    %1752 = vmatprep.subr.bf16.mxu0 0
    %1753 = vmatpush1.bf16.msra.mxu0 %v1592
    %1754 = vmatprep.subr.bf16.mxu0 0
    %1755 = vmatpush1.bf16.msra.mxu0 0
    %1756 = vmatprep.subr.bf16.mxu0 0
    %1757 = vmatpush1.bf16.msra.mxu0 0
    %1758 = vmatprep.subr.bf16.mxu0 0
    %1759 = vmatpush1.bf16.msra.mxu0 0
    %1760 = vmatprep.subr.bf16.mxu0 0
    %1761 = vmatpush1.bf16.msra.mxu0 0
    %1762 = vmatprep.subr.bf16.mxu0 0
    %1763 = vmatpush1.bf16.msra.mxu0 0
    %1764 = vmatprep.subr.bf16.mxu0 0
    %1765 = vmatpush1.bf16.msra.mxu0 0
    %1766 = vmatprep.subr.bf16.mxu0 0
    %1767 = vmatpush1.bf16.msra.mxu0 0
    %1768 = vmatprep.subr.bf16.mxu0 0
    %1769 = vmatpush1.bf16.msra.mxu0 0
    %1770 = vmatprep.subr.bf16.mxu0 0
    %1771 = vmatpush1.bf16.msra.mxu0 0
    %1772 = vmatprep.subr.bf16.mxu0 0
    %1773 = vmatpush1.bf16.msra.mxu0 0
    %1774 = vmatprep.subr.bf16.mxu0 0
    %1775 = vmatpush1.bf16.msra.mxu0 0
    %1776 = vmatprep.subr.bf16.mxu0 0
    %1777 = vmatpush1.bf16.msra.mxu0 0
    %1778 = vmatprep.subr.bf16.mxu0 0
    %1779 = vmatpush1.bf16.msra.mxu0 0
    %1780 = vmatprep.subr.bf16.mxu0 0
    %1781 = vmatpush1.bf16.msra.mxu0 0
    %1782 = vmatprep.mubr.bf16.mxu0 0
    %1783 = vmatmul.mubr.bf16.gmra.mrb[0].mxu0 %v1748
    %v1784 = vpop.f32.mrb[0].mxu0
    %v1785 = vadd.f32 0.0, %v1784
    %v1786 = vpop.f32.mrb[0].mxu0
    %v1787 = vpop.f32.mrb[0].mxu0
    %v1788 = vpop.f32.mrb[0].mxu0
    %1789 = vdwg.mxu0
    %v1791 = vrot.slane %v1785, 4
    %v1793 = vadd.f32 %v1577, %v1791
    %v1794 = vmul.f32 %v1793, %v62
    %v1795 = vtanh.pop %v1794
    %v1796 = vmul.f32 %v1795, %v62
    %v1797 = vadd.f32 %v1796, %v63
    %v1799 = vrot.slane %v1730, 6
    %v1801 = vmul.f32 %v1797, %v1799
    %1803 = vrot.lane.b32.xlu0 %v1797, 64
    %v1804 = vpop.permute.xlu0 %1803
    %v1806 = vmul.f32 %v1797, %v1804
    %1808 = vrot.lane.b32.xlu0 %v1806, 32
    %v1809 = vpop.permute.xlu0 %1808
    %v1811 = vadd.f32 %v1801, %v1809
    %v1812 = vtanh.pop %v1811
    %1814 = vrot.lane.b32.xlu0 %v1812, 64
    %v1815 = vpop.permute.xlu0 %1814
    %v1817 = vmul.f32 %v1797, %v1815
    %1819 = vrot.lane.b32.xlu0 %v1817, 32
    %v1820 = vpop.permute.xlu0 %1819
    %1822 = vst.msk [vmem:[#allocation2] sm:$0x30] %vm408, %v1820
    %v1823 = vpack.c.bf16 %v1817, %v1817
    %v1825 = vrot.slane %v1823, 2
    %1826 = vrot.lane.b32.xlu0 %v1825, 32
    %v1827 = vpop.permute.xlu0 %1826
    %v1829 = vsel %vm175, %v1827, 0
    %1831 = vmatprep.subr.bf16.mxu0 0
    %1832 = vmatpush1.bf16.msra.mxu0 %v1591
    %1833 = vmatprep.subr.bf16.mxu0 0
    %1834 = vmatpush1.bf16.msra.mxu0 %v1592
    %1835 = vmatprep.subr.bf16.mxu0 0
    %1836 = vmatpush1.bf16.msra.mxu0 0
    %1837 = vmatprep.subr.bf16.mxu0 0
    %1838 = vmatpush1.bf16.msra.mxu0 0
    %1839 = vmatprep.subr.bf16.mxu0 0
    %1840 = vmatpush1.bf16.msra.mxu0 0
    %1841 = vmatprep.subr.bf16.mxu0 0
    %1842 = vmatpush1.bf16.msra.mxu0 0
    %1843 = vmatprep.subr.bf16.mxu0 0
    %1844 = vmatpush1.bf16.msra.mxu0 0
    %1845 = vmatprep.subr.bf16.mxu0 0
    %1846 = vmatpush1.bf16.msra.mxu0 0
    %1847 = vmatprep.subr.bf16.mxu0 0
    %1848 = vmatpush1.bf16.msra.mxu0 0
    %1849 = vmatprep.subr.bf16.mxu0 0
    %1850 = vmatpush1.bf16.msra.mxu0 0
    %1851 = vmatprep.subr.bf16.mxu0 0
    %1852 = vmatpush1.bf16.msra.mxu0 0
    %1853 = vmatprep.subr.bf16.mxu0 0
    %1854 = vmatpush1.bf16.msra.mxu0 0
    %1855 = vmatprep.subr.bf16.mxu0 0
    %1856 = vmatpush1.bf16.msra.mxu0 0
    %1857 = vmatprep.subr.bf16.mxu0 0
    %1858 = vmatpush1.bf16.msra.mxu0 0
    %1859 = vmatprep.subr.bf16.mxu0 0
    %1860 = vmatpush1.bf16.msra.mxu0 0
    %1861 = vmatprep.subr.bf16.mxu0 0
    %1862 = vmatpush1.bf16.msra.mxu0 0
    %1863 = vmatprep.mubr.bf16.mxu0 0
    %1864 = vmatmul.mubr.bf16.gmra.mrb[0].mxu0 %v1829
    %v1865 = vpop.f32.mrb[0].mxu0
    %v1866 = vadd.f32 0.0, %v1865
    %v1867 = vpop.f32.mrb[0].mxu0
    %v1868 = vpop.f32.mrb[0].mxu0
    %v1869 = vpop.f32.mrb[0].mxu0
    %1870 = vdwg.mxu0
    %v1872 = vrot.slane %v1866, 2
    %v1874 = vadd.f32 %v1577, %v1872
    %v1875 = vmul.f32 %v1874, %v62
    %v1876 = vtanh.pop %v1875
    %v1877 = vmul.f32 %v1876, %v62
    %v1878 = vadd.f32 %v1877, %v63
    %v1880 = vrot.slane %v1811, 6
    %v1882 = vmul.f32 %v1878, %v1880
    %1884 = vrot.lane.b32.xlu0 %v1878, 64
    %v1885 = vpop.permute.xlu0 %1884
    %v1887 = vmul.f32 %v1878, %v1885
    %1889 = vrot.lane.b32.xlu0 %v1887, 32
    %v1890 = vpop.permute.xlu0 %1889
    %v1892 = vadd.f32 %v1882, %v1890
    %v1893 = vtanh.pop %v1892
    %1895 = vrot.lane.b32.xlu0 %v1893, 64
    %v1896 = vpop.permute.xlu0 %1895
    %v1898 = vmul.f32 %v1878, %v1896
    %1900 = vrot.lane.b32.xlu0 %v1898, 32
    %v1901 = vpop.permute.xlu0 %1900
    %1903 = vst.msk [vmem:[#allocation2] sm:$0xc0] %vm490, %v1901
    %v1904 = vpack.c.bf16 %v1898, %v1898
    %v1906 = vrot.slane %v1904, 3
    %1907 = vrot.lane.b32.xlu0 %v1906, 32
    %v1908 = vpop.permute.xlu0 %1907
    %v1910 = vsel %vm175, %v1908, 0
    %1912 = vmatprep.subr.bf16.mxu0 0
    %1913 = vmatpush1.bf16.msra.mxu0 %v1591
    %1914 = vmatprep.subr.bf16.mxu0 0
    %1915 = vmatpush1.bf16.msra.mxu0 %v1592
    %1916 = vmatprep.subr.bf16.mxu0 0
    %1917 = vmatpush1.bf16.msra.mxu0 0
    %1918 = vmatprep.subr.bf16.mxu0 0
    %1919 = vmatpush1.bf16.msra.mxu0 0
    %1920 = vmatprep.subr.bf16.mxu0 0
    %1921 = vmatpush1.bf16.msra.mxu0 0
    %1922 = vmatprep.subr.bf16.mxu0 0
    %1923 = vmatpush1.bf16.msra.mxu0 0
    %1924 = vmatprep.subr.bf16.mxu0 0
    %1925 = vmatpush1.bf16.msra.mxu0 0
    %1926 = vmatprep.subr.bf16.mxu0 0
    %1927 = vmatpush1.bf16.msra.mxu0 0
    %1928 = vmatprep.subr.bf16.mxu0 0
    %1929 = vmatpush1.bf16.msra.mxu0 0
    %1930 = vmatprep.subr.bf16.mxu0 0
    %1931 = vmatpush1.bf16.msra.mxu0 0
    %1932 = vmatprep.subr.bf16.mxu0 0
    %1933 = vmatpush1.bf16.msra.mxu0 0
    %1934 = vmatprep.subr.bf16.mxu0 0
    %1935 = vmatpush1.bf16.msra.mxu0 0
    %1936 = vmatprep.subr.bf16.mxu0 0
    %1937 = vmatpush1.bf16.msra.mxu0 0
    %1938 = vmatprep.subr.bf16.mxu0 0
    %1939 = vmatpush1.bf16.msra.mxu0 0
    %1940 = vmatprep.subr.bf16.mxu0 0
    %1941 = vmatpush1.bf16.msra.mxu0 0
    %1942 = vmatprep.subr.bf16.mxu0 0
    %1943 = vmatpush1.bf16.msra.mxu0 0
    %1944 = vmatprep.mubr.bf16.mxu0 0
    %1945 = vmatmul.mubr.bf16.gmra.mrb[0].mxu0 %v1910
    %v1946 = vpop.f32.mrb[0].mxu0
    %v1947 = vadd.f32 0.0, %v1946
    %v1948 = vpop.f32.mrb[0].mxu0
    %v1949 = vpop.f32.mrb[0].mxu0
    %v1950 = vpop.f32.mrb[0].mxu0
    %1951 = vdwg.mxu0
    %v1952 = vadd.f32 %v1580, %v1947
    %v1953 = vmul.f32 %v1952, %v62
    %v1954 = vtanh.pop %v1953
    %v1955 = vmul.f32 %v1954, %v62
    %v1956 = vadd.f32 %v1955, %v63
    %v1958 = vrot.slane %v1892, 6
    %v1960 = vmul.f32 %v1956, %v1958
    %1962 = vrot.lane.b32.xlu0 %v1956, 64
    %v1963 = vpop.permute.xlu0 %1962
    %v1965 = vmul.f32 %v1956, %v1963
    %1967 = vrot.lane.b32.xlu0 %v1965, 32
    %v1968 = vpop.permute.xlu0 %1967
    %v1970 = vadd.f32 %v1960, %v1968
    %v1971 = vtanh.pop %v1970
    %1973 = vrot.lane.b32.xlu0 %v1971, 64
    %v1974 = vpop.permute.xlu0 %1973
    %v1976 = vmul.f32 %v1956, %v1974
    %1978 = vrot.lane.b32.xlu0 %v1976, 32
    %v1979 = vpop.permute.xlu0 %1978
    %1981 = vst.msk [vmem:[#allocation2 + $0x8] sm:$0x3] %vm245, %v1979
    %v1982 = vpack.c.bf16 %v1976, %v1976
    %1984 = vrot.lane.b32.xlu0 %v1982, 32
    %v1985 = vpop.permute.xlu0 %1984
    %v1987 = vsel %vm175, %v1985, 0
    %1989 = vmatprep.subr.bf16.mxu0 0
    %1990 = vmatpush1.bf16.msra.mxu0 %v1591
    %1991 = vmatprep.subr.bf16.mxu0 0
    %1992 = vmatpush1.bf16.msra.mxu0 %v1592
    %1993 = vmatprep.subr.bf16.mxu0 0
    %1994 = vmatpush1.bf16.msra.mxu0 0
    %1995 = vmatprep.subr.bf16.mxu0 0
    %1996 = vmatpush1.bf16.msra.mxu0 0
    %1997 = vmatprep.subr.bf16.mxu0 0
    %1998 = vmatpush1.bf16.msra.mxu0 0
    %1999 = vmatprep.subr.bf16.mxu0 0
    %2000 = vmatpush1.bf16.msra.mxu0 0
    %2001 = vmatprep.subr.bf16.mxu0 0
    %2002 = vmatpush1.bf16.msra.mxu0 0
    %2003 = vmatprep.subr.bf16.mxu0 0
    %2004 = vmatpush1.bf16.msra.mxu0 0
    %2005 = vmatprep.subr.bf16.mxu0 0
    %2006 = vmatpush1.bf16.msra.mxu0 0
    %2007 = vmatprep.subr.bf16.mxu0 0
    %2008 = vmatpush1.bf16.msra.mxu0 0
    %2009 = vmatprep.subr.bf16.mxu0 0
    %2010 = vmatpush1.bf16.msra.mxu0 0
    %2011 = vmatprep.subr.bf16.mxu0 0
    %2012 = vmatpush1.bf16.msra.mxu0 0
    %2013 = vmatprep.subr.bf16.mxu0 0
    %2014 = vmatpush1.bf16.msra.mxu0 0
    %2015 = vmatprep.subr.bf16.mxu0 0
    %2016 = vmatpush1.bf16.msra.mxu0 0
    %2017 = vmatprep.subr.bf16.mxu0 0
    %2018 = vmatpush1.bf16.msra.mxu0 0
    %2019 = vmatprep.subr.bf16.mxu0 0
    %2020 = vmatpush1.bf16.msra.mxu0 0
    %2021 = vmatprep.mubr.bf16.mxu0 0
    %2022 = vmatmul.mubr.bf16.gmra.mrb[0].mxu0 %v1987
    %v2023 = vpop.f32.mrb[0].mxu0
    %v2024 = vadd.f32 0.0, %v2023
    %v2025 = vpop.f32.mrb[0].mxu0
    %v2026 = vpop.f32.mrb[0].mxu0
    %v2027 = vpop.f32.mrb[0].mxu0
    %2028 = vdwg.mxu0
    %v2030 = vrot.slane %v2024, 6
    %v2032 = vadd.f32 %v1580, %v2030
    %v2033 = vmul.f32 %v2032, %v62
    %v2034 = vtanh.pop %v2033
    %v2035 = vmul.f32 %v2034, %v62
    %v2036 = vadd.f32 %v2035, %v63
    %v2038 = vrot.slane %v1970, 6
    %v2040 = vmul.f32 %v2036, %v2038
    %2042 = vrot.lane.b32.xlu0 %v2036, 64
    %v2043 = vpop.permute.xlu0 %2042
    %v2045 = vmul.f32 %v2036, %v2043
    %2047 = vrot.lane.b32.xlu0 %v2045, 32
    %v2048 = vpop.permute.xlu0 %2047
    %v2050 = vadd.f32 %v2040, %v2048
    %v2051 = vtanh.pop %v2050
    %2053 = vrot.lane.b32.xlu0 %v2051, 64
    %v2054 = vpop.permute.xlu0 %2053
    %v2056 = vmul.f32 %v2036, %v2054
    %2058 = vrot.lane.b32.xlu0 %v2056, 32
    %v2059 = vpop.permute.xlu0 %2058
    %2061 = vst.msk [vmem:[#allocation2 + $0x8] sm:$0xc] %vm326, %v2059
    %v2062 = vpack.c.bf16 %v2056, %v2056
    %v2064 = vrot.slane %v2062, 1
    %2065 = vrot.lane.b32.xlu0 %v2064, 32
    %v2066 = vpop.permute.xlu0 %2065
    %v2068 = vsel %vm175, %v2066, 0
    %2070 = vmatprep.subr.bf16.mxu0 0
    %2071 = vmatpush1.bf16.msra.mxu0 %v1591
    %2072 = vmatprep.subr.bf16.mxu0 0
    %2073 = vmatpush1.bf16.msra.mxu0 %v1592
    %2074 = vmatprep.subr.bf16.mxu0 0
    %2075 = vmatpush1.bf16.msra.mxu0 0
    %2076 = vmatprep.subr.bf16.mxu0 0
    %2077 = vmatpush1.bf16.msra.mxu0 0
    %2078 = vmatprep.subr.bf16.mxu0 0
    %2079 = vmatpush1.bf16.msra.mxu0 0
    %2080 = vmatprep.subr.bf16.mxu0 0
    %2081 = vmatpush1.bf16.msra.mxu0 0
    %2082 = vmatprep.subr.bf16.mxu0 0
    %2083 = vmatpush1.bf16.msra.mxu0 0
    %2084 = vmatprep.subr.bf16.mxu0 0
    %2085 = vmatpush1.bf16.msra.mxu0 0
    %2086 = vmatprep.subr.bf16.mxu0 0
    %2087 = vmatpush1.bf16.msra.mxu0 0
    %2088 = vmatprep.subr.bf16.mxu0 0
    %2089 = vmatpush1.bf16.msra.mxu0 0
    %2090 = vmatprep.subr.bf16.mxu0 0
    %2091 = vmatpush1.bf16.msra.mxu0 0
    %2092 = vmatprep.subr.bf16.mxu0 0
    %2093 = vmatpush1.bf16.msra.mxu0 0
    %2094 = vmatprep.subr.bf16.mxu0 0
    %2095 = vmatpush1.bf16.msra.mxu0 0
    %2096 = vmatprep.subr.bf16.mxu0 0
    %2097 = vmatpush1.bf16.msra.mxu0 0
    %2098 = vmatprep.subr.bf16.mxu0 0
    %2099 = vmatpush1.bf16.msra.mxu0 0
    %2100 = vmatprep.subr.bf16.mxu0 0
    %2101 = vmatpush1.bf16.msra.mxu0 0
    %2102 = vmatprep.mubr.bf16.mxu0 0
    %2103 = vmatmul.mubr.bf16.gmra.mrb[0].mxu0 %v2068
    %v2104 = vpop.f32.mrb[0].mxu0
    %v2105 = vadd.f32 0.0, %v2104
    %v2106 = vpop.f32.mrb[0].mxu0
    %v2107 = vpop.f32.mrb[0].mxu0
    %v2108 = vpop.f32.mrb[0].mxu0
    %2109 = vdwg.mxu0
    %v2111 = vrot.slane %v2105, 4
    %v2113 = vadd.f32 %v1580, %v2111
    %v2114 = vmul.f32 %v2113, %v62
    %v2115 = vtanh.pop %v2114
    %v2116 = vmul.f32 %v2115, %v62
    %v2117 = vadd.f32 %v2116, %v63
    %v2119 = vrot.slane %v2050, 6
    %v2121 = vmul.f32 %v2117, %v2119
    %2123 = vrot.lane.b32.xlu0 %v2117, 64
    %v2124 = vpop.permute.xlu0 %2123
    %v2126 = vmul.f32 %v2117, %v2124
    %2128 = vrot.lane.b32.xlu0 %v2126, 32
    %v2129 = vpop.permute.xlu0 %2128
    %v2131 = vadd.f32 %v2121, %v2129
    %v2132 = vtanh.pop %v2131
    %2134 = vrot.lane.b32.xlu0 %v2132, 64
    %v2135 = vpop.permute.xlu0 %2134
    %v2137 = vmul.f32 %v2117, %v2135
    %2139 = vrot.lane.b32.xlu0 %v2137, 32
    %v2140 = vpop.permute.xlu0 %2139
    %2142 = vst.msk [vmem:[#allocation2 + $0x8] sm:$0x30] %vm408, %v2140
    %v2143 = vpack.c.bf16 %v2137, %v2137
    %v2145 = vrot.slane %v2143, 2
    %2146 = vrot.lane.b32.xlu0 %v2145, 32
    %v2147 = vpop.permute.xlu0 %2146
    %v2149 = vsel %vm175, %v2147, 0
    %2151 = vmatprep.subr.bf16.mxu0 0
    %2152 = vmatpush1.bf16.msra.mxu0 %v1591
    %2153 = vmatprep.subr.bf16.mxu0 0
    %2154 = vmatpush1.bf16.msra.mxu0 %v1592
    %2155 = vmatprep.subr.bf16.mxu0 0
    %2156 = vmatpush1.bf16.msra.mxu0 0
    %2157 = vmatprep.subr.bf16.mxu0 0
    %2158 = vmatpush1.bf16.msra.mxu0 0
    %2159 = vmatprep.subr.bf16.mxu0 0
    %2160 = vmatpush1.bf16.msra.mxu0 0
    %2161 = vmatprep.subr.bf16.mxu0 0
    %2162 = vmatpush1.bf16.msra.mxu0 0
    %2163 = vmatprep.subr.bf16.mxu0 0
    %2164 = vmatpush1.bf16.msra.mxu0 0
    %2165 = vmatprep.subr.bf16.mxu0 0
    %2166 = vmatpush1.bf16.msra.mxu0 0
    %2167 = vmatprep.subr.bf16.mxu0 0
    %2168 = vmatpush1.bf16.msra.mxu0 0
    %2169 = vmatprep.subr.bf16.mxu0 0
    %2170 = vmatpush1.bf16.msra.mxu0 0
    %2171 = vmatprep.subr.bf16.mxu0 0
    %2172 = vmatpush1.bf16.msra.mxu0 0
    %2173 = vmatprep.subr.bf16.mxu0 0
    %2174 = vmatpush1.bf16.msra.mxu0 0
    %2175 = vmatprep.subr.bf16.mxu0 0
    %2176 = vmatpush1.bf16.msra.mxu0 0
    %2177 = vmatprep.subr.bf16.mxu0 0
    %2178 = vmatpush1.bf16.msra.mxu0 0
    %2179 = vmatprep.subr.bf16.mxu0 0
    %2180 = vmatpush1.bf16.msra.mxu0 0
    %2181 = vmatprep.subr.bf16.mxu0 0
    %2182 = vmatpush1.bf16.msra.mxu0 0
    %2183 = vmatprep.mubr.bf16.mxu0 0
    %2184 = vmatmul.mubr.bf16.gmra.mrb[0].mxu0 %v2149
    %v2185 = vpop.f32.mrb[0].mxu0
    %v2186 = vadd.f32 0.0, %v2185
    %v2187 = vpop.f32.mrb[0].mxu0
    %v2188 = vpop.f32.mrb[0].mxu0
    %v2189 = vpop.f32.mrb[0].mxu0
    %2190 = vdwg.mxu0
    %v2192 = vrot.slane %v2186, 2
    %v2194 = vadd.f32 %v1580, %v2192
    %v2195 = vmul.f32 %v2194, %v62
    %v2196 = vtanh.pop %v2195
    %v2197 = vmul.f32 %v2196, %v62
    %v2198 = vadd.f32 %v2197, %v63
    %v2200 = vrot.slane %v2131, 6
    %v2202 = vmul.f32 %v2198, %v2200
    %2204 = vrot.lane.b32.xlu0 %v2198, 64
    %v2205 = vpop.permute.xlu0 %2204
    %v2207 = vmul.f32 %v2198, %v2205
    %2209 = vrot.lane.b32.xlu0 %v2207, 32
    %v2210 = vpop.permute.xlu0 %2209
    %v2212 = vadd.f32 %v2202, %v2210
    %v2213 = vtanh.pop %v2212
    %2215 = vrot.lane.b32.xlu0 %v2213, 64
    %v2216 = vpop.permute.xlu0 %2215
    %v2218 = vmul.f32 %v2198, %v2216
    %2220 = vrot.lane.b32.xlu0 %v2218, 32
    %v2221 = vpop.permute.xlu0 %2220
    %2223 = vst.msk [vmem:[#allocation2 + $0x8] sm:$0xc0] %vm490, %v2221
    %v2224 = vld [vmem:[#allocation2] sm:$0xff]
    %v2225 = vld [vmem:[#allocation2 + $0x8] sm:$0xff]
    %v2226 = vpack.c.bf16 %v2225, %v2224
    %v2228 = vlaneseq
    %v2229 = vshrl.u32 %v2228, 7
    %v2230 = vsub.s32 0, %v2229
    %v2231 = vrot.slane %v104, %v2230
    %v2237 = vunpack.c.l.b16 %v75
    %v2238 = vunpack.c.l.b16 %v76
    %v2239 = vunpack.c.l.b16 %v77
    %v2240 = vunpack.c.l.b16 %v78
    %v2241 = vpack.c.b16 %v2238, %v2237
    %v2242 = vpack.c.b16 %v2240, %v2239
    %v2246 = vsel %vm175, %v2226, 0
    %2248 = vmatprep.subr.bf16.mxu0 0
    %2249 = vmatpush1.bf16.msra.mxu0 %v2241
    %2250 = vmatprep.subr.bf16.mxu0 0
    %2251 = vmatpush1.bf16.msra.mxu0 %v2242
    %2252 = vmatprep.subr.bf16.mxu0 0
    %2253 = vmatpush1.bf16.msra.mxu0 0
    %2254 = vmatprep.subr.bf16.mxu0 0
    %2255 = vmatpush1.bf16.msra.mxu0 0
    %2256 = vmatprep.subr.bf16.mxu0 0
    %2257 = vmatpush1.bf16.msra.mxu0 0
    %2258 = vmatprep.subr.bf16.mxu0 0
    %2259 = vmatpush1.bf16.msra.mxu0 0
    %2260 = vmatprep.subr.bf16.mxu0 0
    %2261 = vmatpush1.bf16.msra.mxu0 0
    %2262 = vmatprep.subr.bf16.mxu0 0
    %2263 = vmatpush1.bf16.msra.mxu0 0
    %2264 = vmatprep.subr.bf16.mxu0 0
    %2265 = vmatpush1.bf16.msra.mxu0 0
    %2266 = vmatprep.subr.bf16.mxu0 0
    %2267 = vmatpush1.bf16.msra.mxu0 0
    %2268 = vmatprep.subr.bf16.mxu0 0
    %2269 = vmatpush1.bf16.msra.mxu0 0
    %2270 = vmatprep.subr.bf16.mxu0 0
    %2271 = vmatpush1.bf16.msra.mxu0 0
    %2272 = vmatprep.subr.bf16.mxu0 0
    %2273 = vmatpush1.bf16.msra.mxu0 0
    %2274 = vmatprep.subr.bf16.mxu0 0
    %2275 = vmatpush1.bf16.msra.mxu0 0
    %2276 = vmatprep.subr.bf16.mxu0 0
    %2277 = vmatpush1.bf16.msra.mxu0 0
    %2278 = vmatprep.subr.bf16.mxu0 0
    %2279 = vmatpush1.bf16.msra.mxu0 0
    %2280 = vmatprep.mubr.bf16.mxu0 0
    %2281 = vmatmul.mubr.bf16.gmra.mrb[0].mxu0 %v2246
    %v2282 = vpop.f32.mrb[0].mxu0
    %v2283 = vadd.f32 %v2231, %v2282
    %v2284 = vpop.f32.mrb[0].mxu0
    %v2285 = vpop.f32.mrb[0].mxu0
    %v2286 = vadd.f32 %v2231, %v2285
    %v2287 = vpop.f32.mrb[0].mxu0
    %2288 = vdwg.mxu0
    %v2293 = vunpack.c.l.b16 %v94
    %v2294 = vunpack.c.l.b16 %v95
    %v2295 = vunpack.c.l.b16 %v96
    %v2296 = vunpack.c.l.b16 %v97
    %v2297 = vpack.c.b16 %v2294, %v2293
    %v2298 = vpack.c.b16 %v2296, %v2295
    %2301 = vmatprep.subr.bf16.mxu0 0
    %2302 = vmatpush1.bf16.msra.mxu0 %v2297
    %2303 = vmatprep.subr.bf16.mxu0 0
    %2304 = vmatpush1.bf16.msra.mxu0 %v2298
    %2305 = vmatprep.subr.bf16.mxu0 0
    %2306 = vmatpush1.bf16.msra.mxu0 0
    %2307 = vmatprep.subr.bf16.mxu0 0
    %2308 = vmatpush1.bf16.msra.mxu0 0
    %2309 = vmatprep.subr.bf16.mxu0 0
    %2310 = vmatpush1.bf16.msra.mxu0 0
    %2311 = vmatprep.subr.bf16.mxu0 0
    %2312 = vmatpush1.bf16.msra.mxu0 0
    %2313 = vmatprep.subr.bf16.mxu0 0
    %2314 = vmatpush1.bf16.msra.mxu0 0
    %2315 = vmatprep.subr.bf16.mxu0 0
    %2316 = vmatpush1.bf16.msra.mxu0 0
    %2317 = vmatprep.subr.bf16.mxu0 0
    %2318 = vmatpush1.bf16.msra.mxu0 0
    %2319 = vmatprep.subr.bf16.mxu0 0
    %2320 = vmatpush1.bf16.msra.mxu0 0
    %2321 = vmatprep.subr.bf16.mxu0 0
    %2322 = vmatpush1.bf16.msra.mxu0 0
    %2323 = vmatprep.subr.bf16.mxu0 0
    %2324 = vmatpush1.bf16.msra.mxu0 0
    %2325 = vmatprep.subr.bf16.mxu0 0
    %2326 = vmatpush1.bf16.msra.mxu0 0
    %2327 = vmatprep.subr.bf16.mxu0 0
    %2328 = vmatpush1.bf16.msra.mxu0 0
    %2329 = vmatprep.subr.bf16.mxu0 0
    %2330 = vmatpush1.bf16.msra.mxu0 0
    %2331 = vmatprep.subr.bf16.mxu0 0
    %2332 = vmatpush1.bf16.msra.mxu0 0
    %2333 = vmatprep.mubr.bf16.mxu0 0
    %2334 = vmatmul.mubr.bf16.gmra.mrb[0].mxu0 %v177
    %v2335 = vpop.f32.mrb[0].mxu0
    %v2336 = vadd.f32 0.0, %v2335
    %v2337 = vpop.f32.mrb[0].mxu0
    %v2338 = vpop.f32.mrb[0].mxu0
    %v2339 = vpop.f32.mrb[0].mxu0
    %2340 = vdwg.mxu0
    %v2341 = vadd.f32 %v2283, %v2336
    %v2342 = vmul.f32 %v2341, %v62
    %v2343 = vtanh.pop %v2342
    %v2344 = vmul.f32 %v2343, %v62
    %v2345 = vadd.f32 %v2344, %v63
    %v2346 = vmul.f32 %v2345, 0.0
    %2348 = vrot.lane.b32.xlu0 %v2345, 64
    %v2349 = vpop.permute.xlu0 %2348
    %v2351 = vmul.f32 %v2345, %v2349
    %2353 = vrot.lane.b32.xlu0 %v2351, 32
    %v2354 = vpop.permute.xlu0 %2353
    %v2356 = vadd.f32 %v2346, %v2354
    %v2357 = vtanh.pop %v2356
    %2359 = vrot.lane.b32.xlu0 %v2357, 64
    %v2360 = vpop.permute.xlu0 %2359
    %v2362 = vmul.f32 %v2345, %v2360
    %v2363 = vpack.c.bf16 %v2362, %v2362
    %2365 = vrot.lane.b32.xlu0 %v2363, 32
    %v2366 = vpop.permute.xlu0 %2365
    %v2368 = vsel %vm175, %v2366, 0
    %2370 = vmatprep.subr.bf16.mxu0 0
    %2371 = vmatpush1.bf16.msra.mxu0 %v2297
    %2372 = vmatprep.subr.bf16.mxu0 0
    %2373 = vmatpush1.bf16.msra.mxu0 %v2298
    %2374 = vmatprep.subr.bf16.mxu0 0
    %2375 = vmatpush1.bf16.msra.mxu0 0
    %2376 = vmatprep.subr.bf16.mxu0 0
    %2377 = vmatpush1.bf16.msra.mxu0 0
    %2378 = vmatprep.subr.bf16.mxu0 0
    %2379 = vmatpush1.bf16.msra.mxu0 0
    %2380 = vmatprep.subr.bf16.mxu0 0
    %2381 = vmatpush1.bf16.msra.mxu0 0
    %2382 = vmatprep.subr.bf16.mxu0 0
    %2383 = vmatpush1.bf16.msra.mxu0 0
    %2384 = vmatprep.subr.bf16.mxu0 0
    %2385 = vmatpush1.bf16.msra.mxu0 0
    %2386 = vmatprep.subr.bf16.mxu0 0
    %2387 = vmatpush1.bf16.msra.mxu0 0
    %2388 = vmatprep.subr.bf16.mxu0 0
    %2389 = vmatpush1.bf16.msra.mxu0 0
    %2390 = vmatprep.subr.bf16.mxu0 0
    %2391 = vmatpush1.bf16.msra.mxu0 0
    %2392 = vmatprep.subr.bf16.mxu0 0
    %2393 = vmatpush1.bf16.msra.mxu0 0
    %2394 = vmatprep.subr.bf16.mxu0 0
    %2395 = vmatpush1.bf16.msra.mxu0 0
    %2396 = vmatprep.subr.bf16.mxu0 0
    %2397 = vmatpush1.bf16.msra.mxu0 0
    %2398 = vmatprep.subr.bf16.mxu0 0
    %2399 = vmatpush1.bf16.msra.mxu0 0
    %2400 = vmatprep.subr.bf16.mxu0 0
    %2401 = vmatpush1.bf16.msra.mxu0 0
    %2402 = vmatprep.mubr.bf16.mxu0 0
    %2403 = vmatmul.mubr.bf16.gmra.mrb[0].mxu0 %v2368
    %v2404 = vpop.f32.mrb[0].mxu0
    %v2405 = vadd.f32 0.0, %v2404
    %v2406 = vpop.f32.mrb[0].mxu0
    %v2407 = vpop.f32.mrb[0].mxu0
    %v2408 = vpop.f32.mrb[0].mxu0
    %2409 = vdwg.mxu0
    %v2411 = vrot.slane %v2405, 6
    %v2413 = vadd.f32 %v2283, %v2411
    %v2414 = vmul.f32 %v2413, %v62
    %v2415 = vtanh.pop %v2414
    %v2416 = vmul.f32 %v2415, %v62
    %v2417 = vadd.f32 %v2416, %v63
    %v2419 = vrot.slane %v2356, 6
    %v2421 = vmul.f32 %v2417, %v2419
    %2423 = vrot.lane.b32.xlu0 %v2417, 64
    %v2424 = vpop.permute.xlu0 %2423
    %v2426 = vmul.f32 %v2417, %v2424
    %2428 = vrot.lane.b32.xlu0 %v2426, 32
    %v2429 = vpop.permute.xlu0 %2428
    %v2431 = vadd.f32 %v2421, %v2429
    %v2432 = vtanh.pop %v2431
    %2434 = vrot.lane.b32.xlu0 %v2432, 64
    %v2435 = vpop.permute.xlu0 %2434
    %v2437 = vmul.f32 %v2417, %v2435
    %v2438 = vpack.c.bf16 %v2437, %v2437
    %v2440 = vrot.slane %v2438, 1
    %2441 = vrot.lane.b32.xlu0 %v2440, 32
    %v2442 = vpop.permute.xlu0 %2441
    %v2444 = vsel %vm175, %v2442, 0
    %2446 = vmatprep.subr.bf16.mxu0 0
    %2447 = vmatpush1.bf16.msra.mxu0 %v2297
    %2448 = vmatprep.subr.bf16.mxu0 0
    %2449 = vmatpush1.bf16.msra.mxu0 %v2298
    %2450 = vmatprep.subr.bf16.mxu0 0
    %2451 = vmatpush1.bf16.msra.mxu0 0
    %2452 = vmatprep.subr.bf16.mxu0 0
    %2453 = vmatpush1.bf16.msra.mxu0 0
    %2454 = vmatprep.subr.bf16.mxu0 0
    %2455 = vmatpush1.bf16.msra.mxu0 0
    %2456 = vmatprep.subr.bf16.mxu0 0
    %2457 = vmatpush1.bf16.msra.mxu0 0
    %2458 = vmatprep.subr.bf16.mxu0 0
    %2459 = vmatpush1.bf16.msra.mxu0 0
    %2460 = vmatprep.subr.bf16.mxu0 0
    %2461 = vmatpush1.bf16.msra.mxu0 0
    %2462 = vmatprep.subr.bf16.mxu0 0
    %2463 = vmatpush1.bf16.msra.mxu0 0
    %2464 = vmatprep.subr.bf16.mxu0 0
    %2465 = vmatpush1.bf16.msra.mxu0 0
    %2466 = vmatprep.subr.bf16.mxu0 0
    %2467 = vmatpush1.bf16.msra.mxu0 0
    %2468 = vmatprep.subr.bf16.mxu0 0
    %2469 = vmatpush1.bf16.msra.mxu0 0
    %2470 = vmatprep.subr.bf16.mxu0 0
    %2471 = vmatpush1.bf16.msra.mxu0 0
    %2472 = vmatprep.subr.bf16.mxu0 0
    %2473 = vmatpush1.bf16.msra.mxu0 0
    %2474 = vmatprep.subr.bf16.mxu0 0
    %2475 = vmatpush1.bf16.msra.mxu0 0
    %2476 = vmatprep.subr.bf16.mxu0 0
    %2477 = vmatpush1.bf16.msra.mxu0 0
    %2478 = vmatprep.mubr.bf16.mxu0 0
    %2479 = vmatmul.mubr.bf16.gmra.mrb[0].mxu0 %v2444
    %v2480 = vpop.f32.mrb[0].mxu0
    %v2481 = vadd.f32 0.0, %v2480
    %v2482 = vpop.f32.mrb[0].mxu0
    %v2483 = vpop.f32.mrb[0].mxu0
    %v2484 = vpop.f32.mrb[0].mxu0
    %2485 = vdwg.mxu0
    %v2487 = vrot.slane %v2481, 4
    %v2489 = vadd.f32 %v2283, %v2487
    %v2490 = vmul.f32 %v2489, %v62
    %v2491 = vtanh.pop %v2490
    %v2492 = vmul.f32 %v2491, %v62
    %v2493 = vadd.f32 %v2492, %v63
    %v2495 = vrot.slane %v2431, 6
    %v2497 = vmul.f32 %v2493, %v2495
    %2499 = vrot.lane.b32.xlu0 %v2493, 64
    %v2500 = vpop.permute.xlu0 %2499
    %v2502 = vmul.f32 %v2493, %v2500
    %2504 = vrot.lane.b32.xlu0 %v2502, 32
    %v2505 = vpop.permute.xlu0 %2504
    %v2507 = vadd.f32 %v2497, %v2505
    %v2508 = vtanh.pop %v2507
    %2510 = vrot.lane.b32.xlu0 %v2508, 64
    %v2511 = vpop.permute.xlu0 %2510
    %v2513 = vmul.f32 %v2493, %v2511
    %v2514 = vpack.c.bf16 %v2513, %v2513
    %v2516 = vrot.slane %v2514, 2
    %2517 = vrot.lane.b32.xlu0 %v2516, 32
    %v2518 = vpop.permute.xlu0 %2517
    %v2520 = vsel %vm175, %v2518, 0
    %2522 = vmatprep.subr.bf16.mxu0 0
    %2523 = vmatpush1.bf16.msra.mxu0 %v2297
    %2524 = vmatprep.subr.bf16.mxu0 0
    %2525 = vmatpush1.bf16.msra.mxu0 %v2298
    %2526 = vmatprep.subr.bf16.mxu0 0
    %2527 = vmatpush1.bf16.msra.mxu0 0
    %2528 = vmatprep.subr.bf16.mxu0 0
    %2529 = vmatpush1.bf16.msra.mxu0 0
    %2530 = vmatprep.subr.bf16.mxu0 0
    %2531 = vmatpush1.bf16.msra.mxu0 0
    %2532 = vmatprep.subr.bf16.mxu0 0
    %2533 = vmatpush1.bf16.msra.mxu0 0
    %2534 = vmatprep.subr.bf16.mxu0 0
    %2535 = vmatpush1.bf16.msra.mxu0 0
    %2536 = vmatprep.subr.bf16.mxu0 0
    %2537 = vmatpush1.bf16.msra.mxu0 0
    %2538 = vmatprep.subr.bf16.mxu0 0
    %2539 = vmatpush1.bf16.msra.mxu0 0
    %2540 = vmatprep.subr.bf16.mxu0 0
    %2541 = vmatpush1.bf16.msra.mxu0 0
    %2542 = vmatprep.subr.bf16.mxu0 0
    %2543 = vmatpush1.bf16.msra.mxu0 0
    %2544 = vmatprep.subr.bf16.mxu0 0
    %2545 = vmatpush1.bf16.msra.mxu0 0
    %2546 = vmatprep.subr.bf16.mxu0 0
    %2547 = vmatpush1.bf16.msra.mxu0 0
    %2548 = vmatprep.subr.bf16.mxu0 0
    %2549 = vmatpush1.bf16.msra.mxu0 0
    %2550 = vmatprep.subr.bf16.mxu0 0
    %2551 = vmatpush1.bf16.msra.mxu0 0
    %2552 = vmatprep.subr.bf16.mxu0 0
    %2553 = vmatpush1.bf16.msra.mxu0 0
    %2554 = vmatprep.mubr.bf16.mxu0 0
    %2555 = vmatmul.mubr.bf16.gmra.mrb[0].mxu0 %v2520
    %v2556 = vpop.f32.mrb[0].mxu0
    %v2557 = vadd.f32 0.0, %v2556
    %v2558 = vpop.f32.mrb[0].mxu0
    %v2559 = vpop.f32.mrb[0].mxu0
    %v2560 = vpop.f32.mrb[0].mxu0
    %2561 = vdwg.mxu0
    %v2563 = vrot.slane %v2557, 2
    %v2565 = vadd.f32 %v2283, %v2563
    %v2566 = vmul.f32 %v2565, %v62
    %v2567 = vtanh.pop %v2566
    %v2568 = vmul.f32 %v2567, %v62
    %v2569 = vadd.f32 %v2568, %v63
    %v2571 = vrot.slane %v2507, 6
    %v2573 = vmul.f32 %v2569, %v2571
    %2575 = vrot.lane.b32.xlu0 %v2569, 64
    %v2576 = vpop.permute.xlu0 %2575
    %v2578 = vmul.f32 %v2569, %v2576
    %2580 = vrot.lane.b32.xlu0 %v2578, 32
    %v2581 = vpop.permute.xlu0 %2580
    %v2583 = vadd.f32 %v2573, %v2581
    %v2584 = vtanh.pop %v2583
    %2586 = vrot.lane.b32.xlu0 %v2584, 64
    %v2587 = vpop.permute.xlu0 %2586
    %v2589 = vmul.f32 %v2569, %v2587
    %v2590 = vpack.c.bf16 %v2589, %v2589
    %v2592 = vrot.slane %v2590, 3
    %2593 = vrot.lane.b32.xlu0 %v2592, 32
    %v2594 = vpop.permute.xlu0 %2593
    %v2596 = vsel %vm175, %v2594, 0
    %2598 = vmatprep.subr.bf16.mxu0 0
    %2599 = vmatpush1.bf16.msra.mxu0 %v2297
    %2600 = vmatprep.subr.bf16.mxu0 0
    %2601 = vmatpush1.bf16.msra.mxu0 %v2298
    %2602 = vmatprep.subr.bf16.mxu0 0
    %2603 = vmatpush1.bf16.msra.mxu0 0
    %2604 = vmatprep.subr.bf16.mxu0 0
    %2605 = vmatpush1.bf16.msra.mxu0 0
    %2606 = vmatprep.subr.bf16.mxu0 0
    %2607 = vmatpush1.bf16.msra.mxu0 0
    %2608 = vmatprep.subr.bf16.mxu0 0
    %2609 = vmatpush1.bf16.msra.mxu0 0
    %2610 = vmatprep.subr.bf16.mxu0 0
    %2611 = vmatpush1.bf16.msra.mxu0 0
    %2612 = vmatprep.subr.bf16.mxu0 0
    %2613 = vmatpush1.bf16.msra.mxu0 0
    %2614 = vmatprep.subr.bf16.mxu0 0
    %2615 = vmatpush1.bf16.msra.mxu0 0
    %2616 = vmatprep.subr.bf16.mxu0 0
    %2617 = vmatpush1.bf16.msra.mxu0 0
    %2618 = vmatprep.subr.bf16.mxu0 0
    %2619 = vmatpush1.bf16.msra.mxu0 0
    %2620 = vmatprep.subr.bf16.mxu0 0
    %2621 = vmatpush1.bf16.msra.mxu0 0
    %2622 = vmatprep.subr.bf16.mxu0 0
    %2623 = vmatpush1.bf16.msra.mxu0 0
    %2624 = vmatprep.subr.bf16.mxu0 0
    %2625 = vmatpush1.bf16.msra.mxu0 0
    %2626 = vmatprep.subr.bf16.mxu0 0
    %2627 = vmatpush1.bf16.msra.mxu0 0
    %2628 = vmatprep.subr.bf16.mxu0 0
    %2629 = vmatpush1.bf16.msra.mxu0 0
    %2630 = vmatprep.mubr.bf16.mxu0 0
    %2631 = vmatmul.mubr.bf16.gmra.mrb[0].mxu0 %v2596
    %v2632 = vpop.f32.mrb[0].mxu0
    %v2633 = vadd.f32 0.0, %v2632
    %v2634 = vpop.f32.mrb[0].mxu0
    %v2635 = vpop.f32.mrb[0].mxu0
    %v2636 = vpop.f32.mrb[0].mxu0
    %2637 = vdwg.mxu0
    %v2638 = vadd.f32 %v2286, %v2633
    %v2639 = vmul.f32 %v2638, %v62
    %v2640 = vtanh.pop %v2639
    %v2641 = vmul.f32 %v2640, %v62
    %v2642 = vadd.f32 %v2641, %v63
    %v2644 = vrot.slane %v2583, 6
    %v2646 = vmul.f32 %v2642, %v2644
    %2648 = vrot.lane.b32.xlu0 %v2642, 64
    %v2649 = vpop.permute.xlu0 %2648
    %v2651 = vmul.f32 %v2642, %v2649
    %2653 = vrot.lane.b32.xlu0 %v2651, 32
    %v2654 = vpop.permute.xlu0 %2653
    %v2656 = vadd.f32 %v2646, %v2654
    %v2657 = vtanh.pop %v2656
    %2659 = vrot.lane.b32.xlu0 %v2657, 64
    %v2660 = vpop.permute.xlu0 %2659
    %v2662 = vmul.f32 %v2642, %v2660
    %v2663 = vpack.c.bf16 %v2662, %v2662
    %2665 = vrot.lane.b32.xlu0 %v2663, 32
    %v2666 = vpop.permute.xlu0 %2665
    %v2668 = vsel %vm175, %v2666, 0
    %2670 = vmatprep.subr.bf16.mxu0 0
    %2671 = vmatpush1.bf16.msra.mxu0 %v2297
    %2672 = vmatprep.subr.bf16.mxu0 0
    %2673 = vmatpush1.bf16.msra.mxu0 %v2298
    %2674 = vmatprep.subr.bf16.mxu0 0
    %2675 = vmatpush1.bf16.msra.mxu0 0
    %2676 = vmatprep.subr.bf16.mxu0 0
    %2677 = vmatpush1.bf16.msra.mxu0 0
    %2678 = vmatprep.subr.bf16.mxu0 0
    %2679 = vmatpush1.bf16.msra.mxu0 0
    %2680 = vmatprep.subr.bf16.mxu0 0
    %2681 = vmatpush1.bf16.msra.mxu0 0
    %2682 = vmatprep.subr.bf16.mxu0 0
    %2683 = vmatpush1.bf16.msra.mxu0 0
    %2684 = vmatprep.subr.bf16.mxu0 0
    %2685 = vmatpush1.bf16.msra.mxu0 0
    %2686 = vmatprep.subr.bf16.mxu0 0
    %2687 = vmatpush1.bf16.msra.mxu0 0
    %2688 = vmatprep.subr.bf16.mxu0 0
    %2689 = vmatpush1.bf16.msra.mxu0 0
    %2690 = vmatprep.subr.bf16.mxu0 0
    %2691 = vmatpush1.bf16.msra.mxu0 0
    %2692 = vmatprep.subr.bf16.mxu0 0
    %2693 = vmatpush1.bf16.msra.mxu0 0
    %2694 = vmatprep.subr.bf16.mxu0 0
    %2695 = vmatpush1.bf16.msra.mxu0 0
    %2696 = vmatprep.subr.bf16.mxu0 0
    %2697 = vmatpush1.bf16.msra.mxu0 0
    %2698 = vmatprep.subr.bf16.mxu0 0
    %2699 = vmatpush1.bf16.msra.mxu0 0
    %2700 = vmatprep.subr.bf16.mxu0 0
    %2701 = vmatpush1.bf16.msra.mxu0 0
    %2702 = vmatprep.mubr.bf16.mxu0 0
    %2703 = vmatmul.mubr.bf16.gmra.mrb[0].mxu0 %v2668
    %v2704 = vpop.f32.mrb[0].mxu0
    %v2705 = vadd.f32 0.0, %v2704
    %v2706 = vpop.f32.mrb[0].mxu0
    %v2707 = vpop.f32.mrb[0].mxu0
    %v2708 = vpop.f32.mrb[0].mxu0
    %2709 = vdwg.mxu0
    %v2711 = vrot.slane %v2705, 6
    %v2713 = vadd.f32 %v2286, %v2711
    %v2714 = vmul.f32 %v2713, %v62
    %v2715 = vtanh.pop %v2714
    %v2716 = vmul.f32 %v2715, %v62
    %v2717 = vadd.f32 %v2716, %v63
    %v2719 = vrot.slane %v2656, 6
    %v2721 = vmul.f32 %v2717, %v2719
    %2723 = vrot.lane.b32.xlu0 %v2717, 64
    %v2724 = vpop.permute.xlu0 %2723
    %v2726 = vmul.f32 %v2717, %v2724
    %2728 = vrot.lane.b32.xlu0 %v2726, 32
    %v2729 = vpop.permute.xlu0 %2728
    %v2731 = vadd.f32 %v2721, %v2729
    %v2732 = vtanh.pop %v2731
    %2734 = vrot.lane.b32.xlu0 %v2732, 64
    %v2735 = vpop.permute.xlu0 %2734
    %v2737 = vmul.f32 %v2717, %v2735
    %v2738 = vpack.c.bf16 %v2737, %v2737
    %v2740 = vrot.slane %v2738, 1
    %2741 = vrot.lane.b32.xlu0 %v2740, 32
    %v2742 = vpop.permute.xlu0 %2741
    %v2744 = vsel %vm175, %v2742, 0
    %2746 = vmatprep.subr.bf16.mxu0 0
    %2747 = vmatpush1.bf16.msra.mxu0 %v2297
    %2748 = vmatprep.subr.bf16.mxu0 0
    %2749 = vmatpush1.bf16.msra.mxu0 %v2298
    %2750 = vmatprep.subr.bf16.mxu0 0
    %2751 = vmatpush1.bf16.msra.mxu0 0
    %2752 = vmatprep.subr.bf16.mxu0 0
    %2753 = vmatpush1.bf16.msra.mxu0 0
    %2754 = vmatprep.subr.bf16.mxu0 0
    %2755 = vmatpush1.bf16.msra.mxu0 0
    %2756 = vmatprep.subr.bf16.mxu0 0
    %2757 = vmatpush1.bf16.msra.mxu0 0
    %2758 = vmatprep.subr.bf16.mxu0 0
    %2759 = vmatpush1.bf16.msra.mxu0 0
    %2760 = vmatprep.subr.bf16.mxu0 0
    %2761 = vmatpush1.bf16.msra.mxu0 0
    %2762 = vmatprep.subr.bf16.mxu0 0
    %2763 = vmatpush1.bf16.msra.mxu0 0
    %2764 = vmatprep.subr.bf16.mxu0 0
    %2765 = vmatpush1.bf16.msra.mxu0 0
    %2766 = vmatprep.subr.bf16.mxu0 0
    %2767 = vmatpush1.bf16.msra.mxu0 0
    %2768 = vmatprep.subr.bf16.mxu0 0
    %2769 = vmatpush1.bf16.msra.mxu0 0
    %2770 = vmatprep.subr.bf16.mxu0 0
    %2771 = vmatpush1.bf16.msra.mxu0 0
    %2772 = vmatprep.subr.bf16.mxu0 0
    %2773 = vmatpush1.bf16.msra.mxu0 0
    %2774 = vmatprep.subr.bf16.mxu0 0
    %2775 = vmatpush1.bf16.msra.mxu0 0
    %2776 = vmatprep.subr.bf16.mxu0 0
    %2777 = vmatpush1.bf16.msra.mxu0 0
    %2778 = vmatprep.mubr.bf16.mxu0 0
    %2779 = vmatmul.mubr.bf16.gmra.mrb[0].mxu0 %v2744
    %v2780 = vpop.f32.mrb[0].mxu0
    %v2781 = vadd.f32 0.0, %v2780
    %v2782 = vpop.f32.mrb[0].mxu0
    %v2783 = vpop.f32.mrb[0].mxu0
    %v2784 = vpop.f32.mrb[0].mxu0
    %2785 = vdwg.mxu0
    %v2787 = vrot.slane %v2781, 4
    %v2789 = vadd.f32 %v2286, %v2787
    %v2790 = vmul.f32 %v2789, %v62
    %v2791 = vtanh.pop %v2790
    %v2792 = vmul.f32 %v2791, %v62
    %v2793 = vadd.f32 %v2792, %v63
    %v2795 = vrot.slane %v2731, 6
    %v2797 = vmul.f32 %v2793, %v2795
    %2799 = vrot.lane.b32.xlu0 %v2793, 64
    %v2800 = vpop.permute.xlu0 %2799
    %v2802 = vmul.f32 %v2793, %v2800
    %2804 = vrot.lane.b32.xlu0 %v2802, 32
    %v2805 = vpop.permute.xlu0 %2804
    %v2807 = vadd.f32 %v2797, %v2805
    %v2808 = vtanh.pop %v2807
    %2810 = vrot.lane.b32.xlu0 %v2808, 64
    %v2811 = vpop.permute.xlu0 %2810
    %v2813 = vmul.f32 %v2793, %v2811
    %v2814 = vpack.c.bf16 %v2813, %v2813
    %v2816 = vrot.slane %v2814, 2
    %2817 = vrot.lane.b32.xlu0 %v2816, 32
    %v2818 = vpop.permute.xlu0 %2817
    %v2820 = vsel %vm175, %v2818, 0
    %2822 = vmatprep.subr.bf16.mxu0 0
    %2823 = vmatpush1.bf16.msra.mxu0 %v2297
    %2824 = vmatprep.subr.bf16.mxu0 0
    %2825 = vmatpush1.bf16.msra.mxu0 %v2298
    %2826 = vmatprep.subr.bf16.mxu0 0
    %2827 = vmatpush1.bf16.msra.mxu0 0
    %2828 = vmatprep.subr.bf16.mxu0 0
    %2829 = vmatpush1.bf16.msra.mxu0 0
    %2830 = vmatprep.subr.bf16.mxu0 0
    %2831 = vmatpush1.bf16.msra.mxu0 0
    %2832 = vmatprep.subr.bf16.mxu0 0
    %2833 = vmatpush1.bf16.msra.mxu0 0
    %2834 = vmatprep.subr.bf16.mxu0 0
    %2835 = vmatpush1.bf16.msra.mxu0 0
    %2836 = vmatprep.subr.bf16.mxu0 0
    %2837 = vmatpush1.bf16.msra.mxu0 0
    %2838 = vmatprep.subr.bf16.mxu0 0
    %2839 = vmatpush1.bf16.msra.mxu0 0
    %2840 = vmatprep.subr.bf16.mxu0 0
    %2841 = vmatpush1.bf16.msra.mxu0 0
    %2842 = vmatprep.subr.bf16.mxu0 0
    %2843 = vmatpush1.bf16.msra.mxu0 0
    %2844 = vmatprep.subr.bf16.mxu0 0
    %2845 = vmatpush1.bf16.msra.mxu0 0
    %2846 = vmatprep.subr.bf16.mxu0 0
    %2847 = vmatpush1.bf16.msra.mxu0 0
    %2848 = vmatprep.subr.bf16.mxu0 0
    %2849 = vmatpush1.bf16.msra.mxu0 0
    %2850 = vmatprep.subr.bf16.mxu0 0
    %2851 = vmatpush1.bf16.msra.mxu0 0
    %2852 = vmatprep.subr.bf16.mxu0 0
    %2853 = vmatpush1.bf16.msra.mxu0 0
    %2854 = vmatprep.mubr.bf16.mxu0 0
    %2855 = vmatmul.mubr.bf16.gmra.mrb[0].mxu0 %v2820
    %v2856 = vpop.f32.mrb[0].mxu0
    %v2857 = vadd.f32 0.0, %v2856
    %v2858 = vpop.f32.mrb[0].mxu0
    %v2859 = vpop.f32.mrb[0].mxu0
    %v2860 = vpop.f32.mrb[0].mxu0
    %2861 = vdwg.mxu0
    %v2863 = vrot.slane %v2857, 2
    %v2865 = vadd.f32 %v2286, %v2863
    %v2866 = vmul.f32 %v2865, %v62
    %v2867 = vtanh.pop %v2866
    %v2868 = vmul.f32 %v2867, %v62
    %v2869 = vadd.f32 %v2868, %v63
    %v2871 = vrot.slane %v2807, 6
    %v2873 = vmul.f32 %v2869, %v2871
    %2875 = vrot.lane.b32.xlu0 %v2869, 64
    %v2876 = vpop.permute.xlu0 %2875
    %v2878 = vmul.f32 %v2869, %v2876
    %2880 = vrot.lane.b32.xlu0 %v2878, 32
    %v2881 = vpop.permute.xlu0 %2880
    %v2883 = vadd.f32 %v2873, %v2881
    %v2884 = vtanh.pop %v2883
    %2886 = vrot.lane.b32.xlu0 %v2884, 64
    %v2887 = vpop.permute.xlu0 %2886
    %v2889 = vmul.f32 %v2869, %v2887
    %v2890 = vpack.c.bf16 %v2889, %v2889
    %v2891 = vld [vmem:[%s5] sm:$0xf]
    %v2892 = vld [vmem:[%s5 + $0x4] sm:$0xf]
    %v2893 = vld [vmem:[%s5 + $0x8] sm:$0xf]
    %v2894 = vld [vmem:[%s5 + $0xc] sm:$0xf]
    %v2895 = vld [vmem:[#allocation3] sm:$0x1]
    %v2897 = vlaneseq
    %v2898 = vshrl.u32 %v2897, 7
    %v2899 = vsub.s32 0, %v2898
    %v2900 = vrot.slane %v2895, %v2899
    %v2903 = vrot.slane %v2890, 3
    %2904 = vrot.lane.b32.xlu0 %v2903, 32
    %v2905 = vpop.permute.xlu0 %2904
    %v2910 = vunpack.c.l.b16 %v2891
    %v2911 = vunpack.c.l.b16 %v2892
    %v2912 = vunpack.c.l.b16 %v2893
    %v2913 = vunpack.c.l.b16 %v2894
    %v2914 = vpack.c.b16 %v2911, %v2910
    %v2915 = vpack.c.b16 %v2913, %v2912
    %v2919 = vsel %vm175, %v2905, 0
    %2921 = vmatprep.subr.bf16.mxu0 0
    %2922 = vmatpush1.bf16.msra.mxu0 %v2914
    %2923 = vmatprep.subr.bf16.mxu0 0
    %2924 = vmatpush1.bf16.msra.mxu0 %v2915
    %2925 = vmatprep.subr.bf16.mxu0 0
    %2926 = vmatpush1.bf16.msra.mxu0 0
    %2927 = vmatprep.subr.bf16.mxu0 0
    %2928 = vmatpush1.bf16.msra.mxu0 0
    %2929 = vmatprep.subr.bf16.mxu0 0
    %2930 = vmatpush1.bf16.msra.mxu0 0
    %2931 = vmatprep.subr.bf16.mxu0 0
    %2932 = vmatpush1.bf16.msra.mxu0 0
    %2933 = vmatprep.subr.bf16.mxu0 0
    %2934 = vmatpush1.bf16.msra.mxu0 0
    %2935 = vmatprep.subr.bf16.mxu0 0
    %2936 = vmatpush1.bf16.msra.mxu0 0
    %2937 = vmatprep.subr.bf16.mxu0 0
    %2938 = vmatpush1.bf16.msra.mxu0 0
    %2939 = vmatprep.subr.bf16.mxu0 0
    %2940 = vmatpush1.bf16.msra.mxu0 0
    %2941 = vmatprep.subr.bf16.mxu0 0
    %2942 = vmatpush1.bf16.msra.mxu0 0
    %2943 = vmatprep.subr.bf16.mxu0 0
    %2944 = vmatpush1.bf16.msra.mxu0 0
    %2945 = vmatprep.subr.bf16.mxu0 0
    %2946 = vmatpush1.bf16.msra.mxu0 0
    %2947 = vmatprep.subr.bf16.mxu0 0
    %2948 = vmatpush1.bf16.msra.mxu0 0
    %2949 = vmatprep.subr.bf16.mxu0 0
    %2950 = vmatpush1.bf16.msra.mxu0 0
    %2951 = vmatprep.subr.bf16.mxu0 0
    %2952 = vmatpush1.bf16.msra.mxu0 0
    %2953 = vmatprep.mubr.bf16.mxu0 0
    %2954 = vmatmul.mubr.bf16.gmra.mrb[0].mxu0 %v2919
    %v2955 = vpop.f32.mrb[0].mxu0
    %v2956 = vadd.f32 %v2900, %v2955
    %v2957 = vpop.f32.mrb[0].mxu0
    %v2958 = vpop.f32.mrb[0].mxu0
    %v2959 = vpop.f32.mrb[0].mxu0
    %2960 = vdwg.mxu0
    %vm2961 = vcmask 1024
    %2962 = vst.msk [vmem:[%s7] sm:$0x3] %vm2961, %v2956
    // Predicated region
    $region38: #{tpu_custom_call.1} parent=1 // pred_check
      _
    $region39: #{tpu_custom_call.1} parent=1 // pred_check_branch
      %2964 = sbr.rel (0) target = $region41
    $region40: #{tpu_custom_call.1} parent=1 // pred_region
      _
    $region41: #{tpu_custom_call.1} parent=1 // pred_fallthru
      _
    // Predicated region
    $region42: #{tpu_custom_call.1} parent=1 // pred_check
      _
    $region43: #{tpu_custom_call.1} parent=1 // pred_check_branch
      %2966 = sbr.rel (0) target = $region45
    $region44: #{tpu_custom_call.1} parent=1 // pred_region
      _
    $region45: #{tpu_custom_call.1} parent=1 // pred_fallthru
      _
    %2967 = vsyncpa [#allocation5], 1
    %2968 = vsyncpa [#allocation7], 1

</llo_original>
